<compile_context>
chip_gen: v7x
topology: tpu7x:2x2x1
jax: 0.10.0
libtpu: 0.0.40
codegen_flags: <defaults>
</compile_context>

<pallas_src>
import jax
import jax.numpy as jnp
from jax.experimental import pallas as pl
from jax.experimental.pallas import tpu as pltpu


def _round_up(n, m):
    return ((n + m - 1) // m) * m


def ffnn_kernel(x_ref, w_in_ref, b_in_ref, w_out_ref, b_out_ref, o_ref, h_ref):
    # Layer 1 on the MXU: (tb, sys_pad) @ (sys_pad, res_pad). x is zero-padded
    # past dim_system, so the extra K columns contribute nothing.
    h = jnp.dot(x_ref[...], w_in_ref[...],
                preferred_element_type=jnp.float32,
                precision=jax.lax.Precision.HIGHEST)
    h = jnp.maximum(h + b_in_ref[...], 0.0)          # bias + ReLU on the VPU
    h_ref[...] = h                                   # stage in VMEM scratch

    # Layer 2 on the MXU: (tb, res_pad) @ (res_pad, sys_pad), lane-dense output.
    y = jnp.dot(h_ref[...], w_out_ref[...],
                preferred_element_type=jnp.float32,
                precision=jax.lax.Precision.HIGHEST)
    o_ref[...] = (y + b_out_ref[...]).astype(o_ref.dtype)


def prepare_params(w_in, b_in, w_out, b_out):
    """One-time parameter prep (hoisted off the per-call hot path).

    torch layouts in:
      w_in : (dim_reservoir, dim_system), b_in : (dim_reservoir,)
      w_out: (dim_system, dim_reservoir), b_out: (dim_system,)
    Stored as (in, out) layouts, zero-padded to 128-lane multiples:
      w_in_t : (sys_pad, res_pad)   -- layer 1 now runs on the MXU
      w_out_t: (res_pad, sys_pad)
    """
    dim_reservoir, dim_system = w_in.shape
    res_pad = _round_up(dim_reservoir, 128)   # 300 -> 384
    sys_pad = _round_up(dim_system, 128)      # 3   -> 128

    w_in_t = jnp.zeros((sys_pad, res_pad), jnp.float32)
    w_in_t = w_in_t.at[:dim_system, :dim_reservoir].set(
        w_in.T.astype(jnp.float32))

    b_in_p = jnp.zeros((1, res_pad), jnp.float32)
    b_in_p = b_in_p.at[:, :dim_reservoir].set(b_in.astype(jnp.float32))

    # Padded reservoir rows of W_out^T and padded b_in entries are zero, so the
    # padded hidden lanes contribute nothing to the second matmul.
    w_out_t = jnp.zeros((res_pad, sys_pad), jnp.float32)
    w_out_t = w_out_t.at[:dim_reservoir, :dim_system].set(
        w_out.T.astype(jnp.float32))

    b_out_p = jnp.zeros((1, sys_pad), jnp.float32)
    b_out_p = b_out_p.at[:, :dim_system].set(b_out.astype(jnp.float32))

    return {
        "w_in_t": w_in_t, "b_in": b_in_p,
        "w_out_t": w_out_t, "b_out": b_out_p,
        "dim_system": dim_system, "dim_reservoir": dim_reservoir,
        "sys_pad": sys_pad, "res_pad": res_pad,
    }


def feedforward_nn(x, params, max_tile_b=512):
    """x: (B, dim_system) float; params from prepare_params(). Returns (B, dim_system)."""
    B, d_in = x.shape
    assert d_in == params["dim_system"]
    res_pad = params["res_pad"]
    sys_pad = params["sys_pad"]

    # Tile selection: one fat grid step for small B; max_tile_b-row tiles for
    # large B (sharded across TensorCores via "parallel" semantics).
    if B <= max_tile_b:
        tile_b = _round_up(max(B, 8), 8)
        B_pad = tile_b                       # grid = (1,)
    else:
        tile_b = max_tile_b
        B_pad = _round_up(B, tile_b)
    grid = (B_pad // tile_b,)

    # Zero-pad x once: batch to B_pad rows, features to sys_pad lanes so the
    # first matmul runs lane-dense on the MXU.
    x_p = jnp.zeros((B_pad, sys_pad), jnp.float32)
    x_p = x_p.at[:B, :d_in].set(x.astype(jnp.float32))

    out = pl.pallas_call(
        ffnn_kernel,
        out_shape=jax.ShapeDtypeStruct((B_pad, sys_pad), jnp.float32),
        grid=grid,
        in_specs=[
            # activations: tiled along the batch axis
            pl.BlockSpec((tile_b, sys_pad), lambda i: (i, 0)),
            # weights/biases: constant index_map -> stay resident in VMEM
            pl.BlockSpec((sys_pad, res_pad), lambda i: (0, 0)),
            pl.BlockSpec((1, res_pad), lambda i: (0, 0)),
            pl.BlockSpec((res_pad, sys_pad), lambda i: (0, 0)),
            pl.BlockSpec((1, sys_pad), lambda i: (0, 0)),
        ],
        out_specs=pl.BlockSpec((tile_b, sys_pad), lambda i: (i, 0)),
        scratch_shapes=[pltpu.VMEM((tile_b, res_pad), jnp.float32)],
        compiler_params=pltpu.CompilerParams(
            dimension_semantics=("parallel",)),   # shard batch across TCs on v7x
    )(x_p, params["w_in_t"], params["b_in"], params["w_out_t"], params["b_out"])

    return out[:B, :d_in]


if __name__ == "__main__":
    dim_system = 3
    dim_reservoir = 300
    batch = 64          # batched evaluations amortize the pallas_call launch

    key = jax.random.PRNGKey(0)
    kx, k1, k2, k3, k4 = jax.random.split(key, 5)

    # Deterministic parameter init (uniform in +/- 1/sqrt(fan_in), like nn.Linear).
    bound_in = 1.0 / (dim_system ** 0.5)
    bound_out = 1.0 / (dim_reservoir ** 0.5)
    w_in = jax.random.uniform(k1, (dim_reservoir, dim_system), jnp.float32,
                              -bound_in, bound_in)
    b_in = jax.random.uniform(k2, (dim_reservoir,), jnp.float32,
                              -bound_in, bound_in)
    w_out = jax.random.uniform(k3, (dim_system, dim_reservoir), jnp.float32,
                               -bound_out, bound_out)
    b_out = jax.random.uniform(k4, (dim_system,), jnp.float32,
                               -bound_out, bound_out)

    x = jax.random.normal(kx, (batch, dim_system), jnp.float32)

    # One-time prep (transpose + padding) -- not part of the per-call hot path.
    params = jax.block_until_ready(prepare_params(w_in, b_in, w_out, b_out))

    out = feedforward_nn(x, params)
    out = jax.block_until_ready(out)

    # Pure-JAX reference check.
    h_ref = jnp.maximum(x @ w_in.T + b_in, 0.0)
    y_ref = h_ref @ w_out.T + b_out
    assert out.shape == (batch, dim_system)
    assert jnp.allclose(out, y_ref, atol=1e-5, rtol=1e-5)

    print("KERNEL_OK")
</pallas_src>

<mosaic_0001>
module attributes {stable_mosaic.version = 11 : i64} {
  func.func @ffnn_kernel(%arg0: i32, %arg1: memref<64x128xf32, #tpu.memory_space<vmem>>, %arg2: memref<128x384xf32, #tpu.memory_space<vmem>>, %arg3: memref<1x384xf32, #tpu.memory_space<vmem>>, %arg4: memref<384x128xf32, #tpu.memory_space<vmem>>, %arg5: memref<1x128xf32, #tpu.memory_space<vmem>>, %arg6: memref<64x128xf32, #tpu.memory_space<vmem>>, %arg7: memref<64x384xf32, #tpu.memory_space<vmem>>) attributes {dimension_semantics = [#tpu.dimension_semantics<parallel>], iteration_bounds = array<i64: 1>, scalar_prefetch = 0 : i64, scratch_operands = 1 : i64, tpu.core_type = #tpu.core_type<tc>, window_params = [{transform_indices = @transform_0, window_bounds = array<i64: 64, 128>}, {pipeline_mode = #tpu.pipeline_mode<synchronous>, transform_indices = @transform_1, window_bounds = array<i64: 128, 384>}, {pipeline_mode = #tpu.pipeline_mode<synchronous>, transform_indices = @transform_2, window_bounds = array<i64: 1, 384>}, {pipeline_mode = #tpu.pipeline_mode<synchronous>, transform_indices = @transform_3, window_bounds = array<i64: 384, 128>}, {pipeline_mode = #tpu.pipeline_mode<synchronous>, transform_indices = @transform_4, window_bounds = array<i64: 1, 128>}, {transform_indices = @transform_5, window_bounds = array<i64: 64, 128>}]} {
    %c0 = arith.constant 0 : index
    %c0_0 = arith.constant 0 : index
    %0 = vector.load %arg1[%c0, %c0_0] : memref<64x128xf32, #tpu.memory_space<vmem>>, vector<64x128xf32>
    %c0_1 = arith.constant 0 : index
    %c0_2 = arith.constant 0 : index
    %1 = vector.load %arg2[%c0_1, %c0_2] : memref<128x384xf32, #tpu.memory_space<vmem>>, vector<128x384xf32>
    %cst = arith.constant dense<0.000000e+00> : vector<64x384xf32>
    %2 = tpu.matmul %0, %1, %cst {dimension_numbers = #tpu.dot_dimension_numbers<[1], [0], [0], [1], [0, 0, 1, 1], [], []>, precision = #tpu.contract_precision<fp32>} : vector<64x128xf32>, vector<128x384xf32>, vector<64x384xf32> -> vector<64x384xf32>
    %c0_3 = arith.constant 0 : index
    %c0_4 = arith.constant 0 : index
    %3 = vector.load %arg3[%c0_3, %c0_4] : memref<1x384xf32, #tpu.memory_space<vmem>>, vector<1x384xf32>
    %4 = vector.broadcast %3 : vector<1x384xf32> to vector<64x384xf32>
    %5 = arith.addf %2, %4 : vector<64x384xf32>
    %cst_5 = arith.constant 0.000000e+00 : f32
    %6 = vector.broadcast %cst_5 : f32 to vector<64x384xf32>
    %7 = arith.maximumf %5, %6 : vector<64x384xf32>
    %c0_6 = arith.constant 0 : index
    %c0_7 = arith.constant 0 : index
    %8 = vector.load %arg7[%c0_6, %c0_7] : memref<64x384xf32, #tpu.memory_space<vmem>>, vector<64x384xf32>
    tpu.vector_store %arg7[%c0_6, %c0_7], %7 {strides = array<i32>} : memref<64x384xf32, #tpu.memory_space<vmem>>, vector<64x384xf32>,
    %c0_8 = arith.constant 0 : index
    %c0_9 = arith.constant 0 : index
    %9 = vector.load %arg7[%c0_8, %c0_9] : memref<64x384xf32, #tpu.memory_space<vmem>>, vector<64x384xf32>
    %c0_10 = arith.constant 0 : index
    %c0_11 = arith.constant 0 : index
    %10 = vector.load %arg4[%c0_10, %c0_11] : memref<384x128xf32, #tpu.memory_space<vmem>>, vector<384x128xf32>
    %cst_12 = arith.constant dense<0.000000e+00> : vector<64x128xf32>
    %11 = tpu.matmul %9, %10, %cst_12 {dimension_numbers = #tpu.dot_dimension_numbers<[1], [0], [0], [1], [0, 0, 1, 1], [], []>, precision = #tpu.contract_precision<fp32>} : vector<64x384xf32>, vector<384x128xf32>, vector<64x128xf32> -> vector<64x128xf32>
    %c0_13 = arith.constant 0 : index
    %c0_14 = arith.constant 0 : index
    %12 = vector.load %arg5[%c0_13, %c0_14] : memref<1x128xf32, #tpu.memory_space<vmem>>, vector<1x128xf32>
    %13 = vector.broadcast %12 : vector<1x128xf32> to vector<64x128xf32>
    %14 = arith.addf %11, %13 : vector<64x128xf32>
    %c0_15 = arith.constant 0 : index
    %c0_16 = arith.constant 0 : index
    %15 = vector.load %arg6[%c0_15, %c0_16] : memref<64x128xf32, #tpu.memory_space<vmem>>, vector<64x128xf32>
    tpu.vector_store %arg6[%c0_15, %c0_16], %14 {strides = array<i32>} : memref<64x128xf32, #tpu.memory_space<vmem>>, vector<64x128xf32>,
    return
  }
  func.func @transform_0(%arg0: i32) -> (i32, i32) {
    %c0_i32 = arith.constant 0 : i32
    %c0_i32_0 = arith.constant 0 : i32
    return %arg0, %c0_i32 : i32, i32
  }
  func.func @transform_1(%arg0: i32) -> (i32, i32) {
    %c0_i32 = arith.constant 0 : i32
    %c0_i32_0 = arith.constant 0 : i32
    %c0_i32_1 = arith.constant 0 : i32
    return %c0_i32, %c0_i32_0 : i32, i32
  }
  func.func @transform_2(%arg0: i32) -> (i32, i32) {
    %c0_i32 = arith.constant 0 : i32
    %c0_i32_0 = arith.constant 0 : i32
    %c0_i32_1 = arith.constant 0 : i32
    return %c0_i32, %c0_i32_0 : i32, i32
  }
  func.func @transform_3(%arg0: i32) -> (i32, i32) {
    %c0_i32 = arith.constant 0 : i32
    %c0_i32_0 = arith.constant 0 : i32
    %c0_i32_1 = arith.constant 0 : i32
    return %c0_i32, %c0_i32_0 : i32, i32
  }
  func.func @transform_4(%arg0: i32) -> (i32, i32) {
    %c0_i32 = arith.constant 0 : i32
    %c0_i32_0 = arith.constant 0 : i32
    %c0_i32_1 = arith.constant 0 : i32
    return %c0_i32, %c0_i32_0 : i32, i32
  }
  func.func @transform_5(%arg0: i32) -> (i32, i32) {
    %c0_i32 = arith.constant 0 : i32
    %c0_i32_0 = arith.constant 0 : i32
    return %arg0, %c0_i32 : i32, i32
  }
}

</mosaic_0001>

<llo_original>
// kernel: tpu_custom_call.1
$region0: #{tpu_custom_call.1}
  #allocation0 [shape = 'u32[]', space=smem, size = 0x4, offset = 0x4, fixed_abs, tag = 'smem constant byte address 0x4 - core index']
  #allocation1 [shape = 'u32[144,128]{1,0:T(1,128)}', space=vmem, size = 0x12000, scoped, tag = 'internal scratch']
  #allocation2 [shape = 'f32[64,384]{1,0:T(8,128)}', space=vmem, size = 0x18000, scoped, tag = 'scratch operand']
  %s0 = inlined_call_operand.hbm [shape: f32[64,128], index: 0, kind: input, shape index: {}]
  %s1 = inlined_call_operand.hbm [shape: f32[128,384], index: 1, kind: input, shape index: {}]
  %s2 = inlined_call_operand.vmem [shape: f32[1,384], index: 2, kind: input, shape index: {}]
  %s3 = inlined_call_operand.hbm [shape: f32[384,128], index: 3, kind: input, shape index: {}]
  %s4 = inlined_call_operand.vmem [shape: f32[1,128], index: 4, kind: input, shape index: {}]
  %s5 = inlined_call_operand.hbm [shape: f32[64,128], index: 5, kind: output, shape index: {}]
  %s6 = sld [smem:[#allocation0]]
  $region42: #{tpu_custom_call.1} parent=0
    _
  %s8 = ssub.s32 1, %s6
  %s9 = scalar_select 0, %s8, %s6
  $region1: #{tpu_custom_call.1} parent=0
    #allocation3 [shape = 'u8[32768]{0}', space=vmem, size = 0x8000, scoped, tag = 'input window, operand 0, single buffered']
    #allocation4 [shape = 's32[1]{0}', space=sflag, size = 0x4, scoped, tag = 'scoped memory for tpu_custom_call.1']
    #allocation5 [shape = 's32[1]{0}', space=sflag, size = 0x4, scoped, tag = 'scoped memory for tpu_custom_call.1']
    #allocation6 [shape = 'u8[196608]{0}', space=vmem, size = 0x30000, scoped, tag = 'input window, operand 1, single buffered']
    #allocation7 [shape = 's32[1]{0}', space=sflag, size = 0x4, scoped, tag = 'scoped memory for tpu_custom_call.1']
    #allocation8 [shape = 'u8[196608]{0}', space=vmem, size = 0x30000, scoped, tag = 'input window, operand 3, single buffered']
    #allocation9 [shape = 'u8[32768]{0}', space=vmem, size = 0x8000, scoped, tag = 'output window, operand 0, single buffered']
    %10 = vsyncpa [#allocation4], 0
    %11 = vsyncpa [#allocation7], 0
    %12 = vsyncpa [#allocation5], 0
    // Predicated region
    $region2: #{tpu_custom_call.1} parent=1 // pred_check
      _
    $region3: #{tpu_custom_call.1} parent=1 // pred_check_branch
      %14 = sbr.rel (0) target = $region5
    $region4: #{tpu_custom_call.1} parent=1 // pred_region
      %s16 = ssub.s32 1024, 1024
      %17 = vsyncadd [#allocation4], %s16
      %s18 = sshll.u32 [#allocation3], 4
      %s19 = int_to_ptr.vmem [resolvable:$true] %s18
      %24 = dma.hbm_to_vmem [thread:$0]  %s0, 1024, %s19, [#allocation4], 128, 128, 8
    $region5: #{tpu_custom_call.1} parent=1 // pred_fallthru
      _
    // Predicated region
    $region6: #{tpu_custom_call.1} parent=1 // pred_check
      _
    $region7: #{tpu_custom_call.1} parent=1 // pred_check_branch
      %26 = sbr.rel (0) target = $region9
    $region8: #{tpu_custom_call.1} parent=1 // pred_region
      %s28 = ssub.s32 6144, 6144
      %29 = vsyncadd [#allocation7], %s28
      %s30 = sshll.u32 [#allocation6], 4
      %s31 = int_to_ptr.vmem [resolvable:$true] %s30
      %36 = dma.hbm_to_vmem [thread:$0]  %s1, 6144, %s31, [#allocation7], 384, 384, 24
    $region9: #{tpu_custom_call.1} parent=1 // pred_fallthru
      _
    // Predicated region
    $region10: #{tpu_custom_call.1} parent=1 // pred_check
      _
    $region11: #{tpu_custom_call.1} parent=1 // pred_check_branch
      %38 = sbr.rel (0) target = $region13
    $region12: #{tpu_custom_call.1} parent=1 // pred_region
      _
    $region13: #{tpu_custom_call.1} parent=1 // pred_fallthru
      _
    // Predicated region
    $region14: #{tpu_custom_call.1} parent=1 // pred_check
      _
    $region15: #{tpu_custom_call.1} parent=1 // pred_check_branch
      %40 = sbr.rel (0) target = $region17
    $region16: #{tpu_custom_call.1} parent=1 // pred_region
      %s42 = ssub.s32 6144, 6144
      %43 = vsyncadd [#allocation7], %s42
      %s44 = sshll.u32 [#allocation8], 4
      %s45 = int_to_ptr.vmem [resolvable:$true] %s44
      %50 = dma.hbm_to_vmem [thread:$0]  %s3, 6144, %s45, [#allocation7], 128, 128, 8
    $region17: #{tpu_custom_call.1} parent=1 // pred_fallthru
      _
    // Predicated region
    $region18: #{tpu_custom_call.1} parent=1 // pred_check
      _
    $region19: #{tpu_custom_call.1} parent=1 // pred_check_branch
      %52 = sbr.rel (0) target = $region21
    $region20: #{tpu_custom_call.1} parent=1 // pred_region
      _
    $region21: #{tpu_custom_call.1} parent=1 // pred_fallthru
      _
    // Predicated region
    $region22: #{tpu_custom_call.1} parent=1 // pred_check
      _
    $region23: #{tpu_custom_call.1} parent=1 // pred_check_branch
      %54 = sbr.rel (0) target = $region25
    $region24: #{tpu_custom_call.1} parent=1 // pred_region
      %55 = dma.done [#allocation4], 1024
    $region25: #{tpu_custom_call.1} parent=1 // pred_fallthru
      _
    // Predicated region
    $region26: #{tpu_custom_call.1} parent=1 // pred_check
      _
    $region27: #{tpu_custom_call.1} parent=1 // pred_check_branch
      %57 = sbr.rel (0) target = $region29
    $region28: #{tpu_custom_call.1} parent=1 // pred_region
      %58 = dma.done [#allocation7], 6144
    $region29: #{tpu_custom_call.1} parent=1 // pred_fallthru
      _
    // Predicated region
    $region30: #{tpu_custom_call.1} parent=1 // pred_check
      _
    $region31: #{tpu_custom_call.1} parent=1 // pred_check_branch
      %60 = sbr.rel (0) target = $region33
    $region32: #{tpu_custom_call.1} parent=1 // pred_region
      %61 = dma.done [#allocation7], 6144
    $region33: #{tpu_custom_call.1} parent=1 // pred_fallthru
      _
    %v62 = vld [vmem:[#allocation3] sm:$0xff]
    %v63 = vld [vmem:[#allocation3 + $0x8] sm:$0xff]
    %v64 = vld [vmem:[#allocation3 + $0x10] sm:$0xff]
    %v65 = vld [vmem:[#allocation3 + $0x18] sm:$0xff]
    %v66 = vld [vmem:[#allocation3 + $0x20] sm:$0xff]
    %v67 = vld [vmem:[#allocation3 + $0x28] sm:$0xff]
    %v68 = vld [vmem:[#allocation3 + $0x30] sm:$0xff]
    %v69 = vld [vmem:[#allocation3 + $0x38] sm:$0xff]
    %v70 = vld [vmem:[#allocation6] sm:$0xff]
    %v71 = vld [vmem:[#allocation6 + $0x8] sm:$0xff]
    %v72 = vld [vmem:[#allocation6 + $0x10] sm:$0xff]
    %v73 = vld [vmem:[#allocation6 + $0x18] sm:$0xff]
    %v74 = vld [vmem:[#allocation6 + $0x20] sm:$0xff]
    %v75 = vld [vmem:[#allocation6 + $0x28] sm:$0xff]
    %v76 = vld [vmem:[#allocation6 + $0x30] sm:$0xff]
    %v77 = vld [vmem:[#allocation6 + $0x38] sm:$0xff]
    %v78 = vld [vmem:[#allocation6 + $0x40] sm:$0xff]
    %v79 = vld [vmem:[#allocation6 + $0x48] sm:$0xff]
    %v80 = vld [vmem:[#allocation6 + $0x50] sm:$0xff]
    %v81 = vld [vmem:[#allocation6 + $0x58] sm:$0xff]
    %v82 = vld [vmem:[#allocation6 + $0x60] sm:$0xff]
    %v83 = vld [vmem:[#allocation6 + $0x68] sm:$0xff]
    %v84 = vld [vmem:[#allocation6 + $0x70] sm:$0xff]
    %v85 = vld [vmem:[#allocation6 + $0x78] sm:$0xff]
    %v86 = vld [vmem:[#allocation6 + $0x80] sm:$0xff]
    %v87 = vld [vmem:[#allocation6 + $0x88] sm:$0xff]
    %v88 = vld [vmem:[#allocation6 + $0x90] sm:$0xff]
    %v89 = vld [vmem:[#allocation6 + $0x98] sm:$0xff]
    %v90 = vld [vmem:[#allocation6 + $0xa0] sm:$0xff]
    %v91 = vld [vmem:[#allocation6 + $0xa8] sm:$0xff]
    %v92 = vld [vmem:[#allocation6 + $0xb0] sm:$0xff]
    %v93 = vld [vmem:[#allocation6 + $0xb8] sm:$0xff]
    %v94 = vld [vmem:[#allocation6 + $0xc0] sm:$0xff]
    %v95 = vld [vmem:[#allocation6 + $0xc8] sm:$0xff]
    %v96 = vld [vmem:[#allocation6 + $0xd0] sm:$0xff]
    %v97 = vld [vmem:[#allocation6 + $0xd8] sm:$0xff]
    %v98 = vld [vmem:[#allocation6 + $0xe0] sm:$0xff]
    %v99 = vld [vmem:[#allocation6 + $0xe8] sm:$0xff]
    %v100 = vld [vmem:[#allocation6 + $0xf0] sm:$0xff]
    %v101 = vld [vmem:[#allocation6 + $0xf8] sm:$0xff]
    %v102 = vld [vmem:[#allocation6 + $0x100] sm:$0xff]
    %v103 = vld [vmem:[#allocation6 + $0x108] sm:$0xff]
    %v104 = vld [vmem:[#allocation6 + $0x110] sm:$0xff]
    %v105 = vld [vmem:[#allocation6 + $0x118] sm:$0xff]
    %v106 = vld [vmem:[#allocation6 + $0x120] sm:$0xff]
    %v107 = vld [vmem:[#allocation6 + $0x128] sm:$0xff]
    %v108 = vld [vmem:[#allocation6 + $0x130] sm:$0xff]
    %v109 = vld [vmem:[#allocation6 + $0x138] sm:$0xff]
    %v110 = vld [vmem:[#allocation6 + $0x140] sm:$0xff]
    %v111 = vld [vmem:[#allocation6 + $0x148] sm:$0xff]
    %v112 = vld [vmem:[#allocation6 + $0x150] sm:$0xff]
    %v113 = vld [vmem:[#allocation6 + $0x158] sm:$0xff]
    %v114 = vld [vmem:[#allocation6 + $0x160] sm:$0xff]
    %v115 = vld [vmem:[#allocation6 + $0x168] sm:$0xff]
    %v116 = vld [vmem:[#allocation6 + $0x170] sm:$0xff]
    %v117 = vld [vmem:[#allocation6 + $0x178] sm:$0xff]
    %v118 = vld [vmem:[%s2] sm:$0x7]
    %v120 = vlaneseq
    %v121 = vshrl.u32 %v120, 7
    %v122 = vsub.s32 0, %v121
    %v123 = vrot.slane %v118, %v122
    %v124 = vlaneseq
    %v125 = vshrl.u32 %v124, 7
    %v126 = vsub.s32 1, %v125
    %v127 = vrot.slane %v118, %v126
    %v128 = vlaneseq
    %v129 = vshrl.u32 %v128, 7
    %v130 = vsub.s32 2, %v129
    %v131 = vrot.slane %v118, %v130
    %v135 = vand.u32 %v71, 4294901760
    %136 = vmatprep.subr.mxu0 %v135
    %v137 = vand.u32 %v70, 4294901760
    %138 = vmatpush1.msra.mxu0 %v137
    %v139 = vand.u32 %v74, 4294901760
    %140 = vmatprep.subr.mxu0 %v139
    %v141 = vand.u32 %v73, 4294901760
    %142 = vmatpush1.msra.mxu0 %v141
    %v143 = vand.u32 %v77, 4294901760
    %144 = vmatprep.subr.mxu0 %v143
    %v145 = vand.u32 %v76, 4294901760
    %146 = vmatpush1.msra.mxu0 %v145
    %v147 = vand.u32 %v80, 4294901760
    %148 = vmatprep.subr.mxu0 %v147
    %v149 = vand.u32 %v79, 4294901760
    %150 = vmatpush1.msra.mxu0 %v149
    %v151 = vand.u32 %v83, 4294901760
    %152 = vmatprep.subr.mxu0 %v151
    %v153 = vand.u32 %v82, 4294901760
    %154 = vmatpush1.msra.mxu0 %v153
    %v155 = vand.u32 %v86, 4294901760
    %156 = vmatprep.subr.mxu0 %v155
    %v157 = vand.u32 %v85, 4294901760
    %158 = vmatpush1.msra.mxu0 %v157
    %v159 = vand.u32 %v89, 4294901760
    %160 = vmatprep.subr.mxu0 %v159
    %v161 = vand.u32 %v88, 4294901760
    %162 = vmatpush1.msra.mxu0 %v161
    %v163 = vand.u32 %v92, 4294901760
    %164 = vmatprep.subr.mxu0 %v163
    %v165 = vand.u32 %v91, 4294901760
    %166 = vmatpush1.msra.mxu0 %v165
    %v167 = vand.u32 %v95, 4294901760
    %168 = vmatprep.subr.mxu0 %v167
    %v169 = vand.u32 %v94, 4294901760
    %170 = vmatpush1.msra.mxu0 %v169
    %v171 = vand.u32 %v98, 4294901760
    %172 = vmatprep.subr.mxu0 %v171
    %v173 = vand.u32 %v97, 4294901760
    %174 = vmatpush1.msra.mxu0 %v173
    %v175 = vand.u32 %v101, 4294901760
    %176 = vmatprep.subr.mxu0 %v175
    %v177 = vand.u32 %v100, 4294901760
    %178 = vmatpush1.msra.mxu0 %v177
    %v179 = vand.u32 %v104, 4294901760
    %180 = vmatprep.subr.mxu0 %v179
    %v181 = vand.u32 %v103, 4294901760
    %182 = vmatpush1.msra.mxu0 %v181
    %v183 = vand.u32 %v107, 4294901760
    %184 = vmatprep.subr.mxu0 %v183
    %v185 = vand.u32 %v106, 4294901760
    %186 = vmatpush1.msra.mxu0 %v185
    %v187 = vand.u32 %v110, 4294901760
    %188 = vmatprep.subr.mxu0 %v187
    %v189 = vand.u32 %v109, 4294901760
    %190 = vmatpush1.msra.mxu0 %v189
    %v191 = vand.u32 %v113, 4294901760
    %192 = vmatprep.subr.mxu0 %v191
    %v193 = vand.u32 %v112, 4294901760
    %194 = vmatpush1.msra.mxu0 %v193
    %v195 = vand.u32 %v116, 4294901760
    %196 = vmatprep.subr.mxu0 %v195
    %v197 = vand.u32 %v115, 4294901760
    %198 = vmatpush1.msra.mxu0 %v197
    %199 = vmatprep.subr.mxu0 0.0
    %200 = vmatpush1.msra.mxu0 0.0
    %201 = vmatprep.subr.mxu0 0.0
    %202 = vmatpush1.msra.mxu0 0.0
    %203 = vmatprep.subr.mxu0 0.0
    %204 = vmatpush1.msra.mxu0 0.0
    %205 = vmatprep.subr.mxu0 0.0
    %206 = vmatpush1.msra.mxu0 0.0
    %207 = vmatprep.subr.mxu0 0.0
    %208 = vmatpush1.msra.mxu0 0.0
    %209 = vmatprep.subr.mxu0 0.0
    %210 = vmatpush1.msra.mxu0 0.0
    %211 = vmatprep.subr.mxu0 0.0
    %212 = vmatpush1.msra.mxu0 0.0
    %213 = vmatprep.subr.mxu0 0.0
    %214 = vmatpush1.msra.mxu0 0.0
    %215 = vmatprep.subr.mxu0 0.0
    %216 = vmatpush1.msra.mxu0 0.0
    %217 = vmatprep.subr.mxu0 0.0
    %218 = vmatpush1.msra.mxu0 0.0
    %219 = vmatprep.subr.mxu0 0.0
    %220 = vmatpush1.msra.mxu0 0.0
    %221 = vmatprep.subr.mxu0 0.0
    %222 = vmatpush1.msra.mxu0 0.0
    %223 = vmatprep.subr.mxu0 0.0
    %224 = vmatpush1.msra.mxu0 0.0
    %225 = vmatprep.subr.mxu0 0.0
    %226 = vmatpush1.msra.mxu0 0.0
    %227 = vmatprep.subr.mxu0 0.0
    %228 = vmatpush1.msra.mxu0 0.0
    %229 = vmatprep.subr.mxu0 0.0
    %230 = vmatpush1.msra.mxu0 0.0
    %231 = vmatprep.mubr.f32.mxu0 0.0
    %v232 = vand.u32 %v62, 4294901760
    %v233 = vsub.f32 %v62, %v232
    %v234 = vand.u32 %v233, 4294901760
    %v235 = vsub.f32 %v233, %v234
    %v236 = vand.u32 %v235, 4294901760
    %237 = vmatmul.mubr.f32.gmra.mrb[0].mxu0 %v236
    %v238 = vpop.f32.mrb[0].mxu0
    %v239 = vadd.f32 %v123, %v238
    %v240 = vpop.f32.mrb[0].mxu0
    %v241 = vadd.f32 %v127, %v240
    %242 = vmatprep.mubr.f32.mxu0 0.0
    %v243 = vand.u32 %v63, 4294901760
    %v244 = vsub.f32 %v63, %v243
    %v245 = vand.u32 %v244, 4294901760
    %v246 = vsub.f32 %v244, %v245
    %v247 = vand.u32 %v246, 4294901760
    %248 = vmatmul.mubr.f32.gmra.mrb[0].mxu0 %v247
    %v249 = vpop.f32.mrb[0].mxu0
    %v250 = vadd.f32 %v123, %v249
    %v251 = vpop.f32.mrb[0].mxu0
    %v252 = vadd.f32 %v127, %v251
    %253 = vmatprep.mubr.f32.mxu0 0.0
    %v254 = vand.u32 %v64, 4294901760
    %v255 = vsub.f32 %v64, %v254
    %v256 = vand.u32 %v255, 4294901760
    %v257 = vsub.f32 %v255, %v256
    %v258 = vand.u32 %v257, 4294901760
    %259 = vmatmul.mubr.f32.gmra.mrb[0].mxu0 %v258
    %v260 = vpop.f32.mrb[0].mxu0
    %v261 = vadd.f32 %v123, %v260
    %v262 = vpop.f32.mrb[0].mxu0
    %v263 = vadd.f32 %v127, %v262
    %264 = vmatprep.mubr.f32.mxu0 0.0
    %v265 = vand.u32 %v65, 4294901760
    %v266 = vsub.f32 %v65, %v265
    %v267 = vand.u32 %v266, 4294901760
    %v268 = vsub.f32 %v266, %v267
    %v269 = vand.u32 %v268, 4294901760
    %270 = vmatmul.mubr.f32.gmra.mrb[0].mxu0 %v269
    %v271 = vpop.f32.mrb[0].mxu0
    %v272 = vadd.f32 %v123, %v271
    %v273 = vpop.f32.mrb[0].mxu0
    %v274 = vadd.f32 %v127, %v273
    %275 = vmatprep.mubr.f32.mxu0 0.0
    %v276 = vand.u32 %v66, 4294901760
    %v277 = vsub.f32 %v66, %v276
    %v278 = vand.u32 %v277, 4294901760
    %v279 = vsub.f32 %v277, %v278
    %v280 = vand.u32 %v279, 4294901760
    %281 = vmatmul.mubr.f32.gmra.mrb[0].mxu0 %v280
    %v282 = vpop.f32.mrb[0].mxu0
    %v283 = vadd.f32 %v123, %v282
    %v284 = vpop.f32.mrb[0].mxu0
    %v285 = vadd.f32 %v127, %v284
    %286 = vmatprep.mubr.f32.mxu0 0.0
    %v287 = vand.u32 %v67, 4294901760
    %v288 = vsub.f32 %v67, %v287
    %v289 = vand.u32 %v288, 4294901760
    %v290 = vsub.f32 %v288, %v289
    %v291 = vand.u32 %v290, 4294901760
    %292 = vmatmul.mubr.f32.gmra.mrb[0].mxu0 %v291
    %v293 = vpop.f32.mrb[0].mxu0
    %v294 = vadd.f32 %v123, %v293
    %v295 = vpop.f32.mrb[0].mxu0
    %v296 = vadd.f32 %v127, %v295
    %297 = vmatprep.mubr.f32.mxu0 0.0
    %v298 = vand.u32 %v68, 4294901760
    %v299 = vsub.f32 %v68, %v298
    %v300 = vand.u32 %v299, 4294901760
    %v301 = vsub.f32 %v299, %v300
    %v302 = vand.u32 %v301, 4294901760
    %303 = vmatmul.mubr.f32.gmra.mrb[0].mxu0 %v302
    %v304 = vpop.f32.mrb[0].mxu0
    %v305 = vadd.f32 %v123, %v304
    %v306 = vpop.f32.mrb[0].mxu0
    %v307 = vadd.f32 %v127, %v306
    %308 = vmatprep.mubr.f32.mxu0 0.0
    %v309 = vand.u32 %v69, 4294901760
    %v310 = vsub.f32 %v69, %v309
    %v311 = vand.u32 %v310, 4294901760
    %v312 = vsub.f32 %v310, %v311
    %v313 = vand.u32 %v312, 4294901760
    %314 = vmatmul.mubr.f32.gmra.mrb[0].mxu0 %v313
    %v315 = vpop.f32.mrb[0].mxu0
    %v316 = vadd.f32 %v123, %v315
    %v317 = vpop.f32.mrb[0].mxu0
    %v318 = vadd.f32 %v127, %v317
    %319 = vdwg.mxu0
    %v320 = vand.u32 %v71, 4294901760
    %v321 = vsub.f32 %v71, %v320
    %v322 = vand.u32 %v321, 4294901760
    %v323 = vsub.f32 %v321, %v322
    %v324 = vand.u32 %v323, 4294901760
    %325 = vmatprep.subr.mxu0 %v324
    %v326 = vand.u32 %v70, 4294901760
    %v327 = vsub.f32 %v70, %v326
    %v328 = vand.u32 %v327, 4294901760
    %v329 = vsub.f32 %v327, %v328
    %v330 = vand.u32 %v329, 4294901760
    %331 = vmatpush1.msra.mxu0 %v330
    %v332 = vand.u32 %v74, 4294901760
    %v333 = vsub.f32 %v74, %v332
    %v334 = vand.u32 %v333, 4294901760
    %v335 = vsub.f32 %v333, %v334
    %v336 = vand.u32 %v335, 4294901760
    %337 = vmatprep.subr.mxu0 %v336
    %v338 = vand.u32 %v73, 4294901760
    %v339 = vsub.f32 %v73, %v338
    %v340 = vand.u32 %v339, 4294901760
    %v341 = vsub.f32 %v339, %v340
    %v342 = vand.u32 %v341, 4294901760
    %343 = vmatpush1.msra.mxu0 %v342
    %v344 = vand.u32 %v77, 4294901760
    %v345 = vsub.f32 %v77, %v344
    %v346 = vand.u32 %v345, 4294901760
    %v347 = vsub.f32 %v345, %v346
    %v348 = vand.u32 %v347, 4294901760
    %349 = vmatprep.subr.mxu0 %v348
    %v350 = vand.u32 %v76, 4294901760
    %v351 = vsub.f32 %v76, %v350
    %v352 = vand.u32 %v351, 4294901760
    %v353 = vsub.f32 %v351, %v352
    %v354 = vand.u32 %v353, 4294901760
    %355 = vmatpush1.msra.mxu0 %v354
    %v356 = vand.u32 %v80, 4294901760
    %v357 = vsub.f32 %v80, %v356
    %v358 = vand.u32 %v357, 4294901760
    %v359 = vsub.f32 %v357, %v358
    %v360 = vand.u32 %v359, 4294901760
    %361 = vmatprep.subr.mxu0 %v360
    %v362 = vand.u32 %v79, 4294901760
    %v363 = vsub.f32 %v79, %v362
    %v364 = vand.u32 %v363, 4294901760
    %v365 = vsub.f32 %v363, %v364
    %v366 = vand.u32 %v365, 4294901760
    %367 = vmatpush1.msra.mxu0 %v366
    %v368 = vand.u32 %v83, 4294901760
    %v369 = vsub.f32 %v83, %v368
    %v370 = vand.u32 %v369, 4294901760
    %v371 = vsub.f32 %v369, %v370
    %v372 = vand.u32 %v371, 4294901760
    %373 = vmatprep.subr.mxu0 %v372
    %v374 = vand.u32 %v82, 4294901760
    %v375 = vsub.f32 %v82, %v374
    %v376 = vand.u32 %v375, 4294901760
    %v377 = vsub.f32 %v375, %v376
    %v378 = vand.u32 %v377, 4294901760
    %379 = vmatpush1.msra.mxu0 %v378
    %v380 = vand.u32 %v86, 4294901760
    %v381 = vsub.f32 %v86, %v380
    %v382 = vand.u32 %v381, 4294901760
    %v383 = vsub.f32 %v381, %v382
    %v384 = vand.u32 %v383, 4294901760
    %385 = vmatprep.subr.mxu0 %v384
    %v386 = vand.u32 %v85, 4294901760
    %v387 = vsub.f32 %v85, %v386
    %v388 = vand.u32 %v387, 4294901760
    %v389 = vsub.f32 %v387, %v388
    %v390 = vand.u32 %v389, 4294901760
    %391 = vmatpush1.msra.mxu0 %v390
    %v392 = vand.u32 %v89, 4294901760
    %v393 = vsub.f32 %v89, %v392
    %v394 = vand.u32 %v393, 4294901760
    %v395 = vsub.f32 %v393, %v394
    %v396 = vand.u32 %v395, 4294901760
    %397 = vmatprep.subr.mxu0 %v396
    %v398 = vand.u32 %v88, 4294901760
    %v399 = vsub.f32 %v88, %v398
    %v400 = vand.u32 %v399, 4294901760
    %v401 = vsub.f32 %v399, %v400
    %v402 = vand.u32 %v401, 4294901760
    %403 = vmatpush1.msra.mxu0 %v402
    %v404 = vand.u32 %v92, 4294901760
    %v405 = vsub.f32 %v92, %v404
    %v406 = vand.u32 %v405, 4294901760
    %v407 = vsub.f32 %v405, %v406
    %v408 = vand.u32 %v407, 4294901760
    %409 = vmatprep.subr.mxu0 %v408
    %v410 = vand.u32 %v91, 4294901760
    %v411 = vsub.f32 %v91, %v410
    %v412 = vand.u32 %v411, 4294901760
    %v413 = vsub.f32 %v411, %v412
    %v414 = vand.u32 %v413, 4294901760
    %415 = vmatpush1.msra.mxu0 %v414
    %v416 = vand.u32 %v95, 4294901760
    %v417 = vsub.f32 %v95, %v416
    %v418 = vand.u32 %v417, 4294901760
    %v419 = vsub.f32 %v417, %v418
    %v420 = vand.u32 %v419, 4294901760
    %421 = vmatprep.subr.mxu0 %v420
    %v422 = vand.u32 %v94, 4294901760
    %v423 = vsub.f32 %v94, %v422
    %v424 = vand.u32 %v423, 4294901760
    %v425 = vsub.f32 %v423, %v424
    %v426 = vand.u32 %v425, 4294901760
    %427 = vmatpush1.msra.mxu0 %v426
    %v428 = vand.u32 %v98, 4294901760
    %v429 = vsub.f32 %v98, %v428
    %v430 = vand.u32 %v429, 4294901760
    %v431 = vsub.f32 %v429, %v430
    %v432 = vand.u32 %v431, 4294901760
    %433 = vmatprep.subr.mxu0 %v432
    %v434 = vand.u32 %v97, 4294901760
    %v435 = vsub.f32 %v97, %v434
    %v436 = vand.u32 %v435, 4294901760
    %v437 = vsub.f32 %v435, %v436
    %v438 = vand.u32 %v437, 4294901760
    %439 = vmatpush1.msra.mxu0 %v438
    %v440 = vand.u32 %v101, 4294901760
    %v441 = vsub.f32 %v101, %v440
    %v442 = vand.u32 %v441, 4294901760
    %v443 = vsub.f32 %v441, %v442
    %v444 = vand.u32 %v443, 4294901760
    %445 = vmatprep.subr.mxu0 %v444
    %v446 = vand.u32 %v100, 4294901760
    %v447 = vsub.f32 %v100, %v446
    %v448 = vand.u32 %v447, 4294901760
    %v449 = vsub.f32 %v447, %v448
    %v450 = vand.u32 %v449, 4294901760
    %451 = vmatpush1.msra.mxu0 %v450
    %v452 = vand.u32 %v104, 4294901760
    %v453 = vsub.f32 %v104, %v452
    %v454 = vand.u32 %v453, 4294901760
    %v455 = vsub.f32 %v453, %v454
    %v456 = vand.u32 %v455, 4294901760
    %457 = vmatprep.subr.mxu0 %v456
    %v458 = vand.u32 %v103, 4294901760
    %v459 = vsub.f32 %v103, %v458
    %v460 = vand.u32 %v459, 4294901760
    %v461 = vsub.f32 %v459, %v460
    %v462 = vand.u32 %v461, 4294901760
    %463 = vmatpush1.msra.mxu0 %v462
    %v464 = vand.u32 %v107, 4294901760
    %v465 = vsub.f32 %v107, %v464
    %v466 = vand.u32 %v465, 4294901760
    %v467 = vsub.f32 %v465, %v466
    %v468 = vand.u32 %v467, 4294901760
    %469 = vmatprep.subr.mxu0 %v468
    %v470 = vand.u32 %v106, 4294901760
    %v471 = vsub.f32 %v106, %v470
    %v472 = vand.u32 %v471, 4294901760
    %v473 = vsub.f32 %v471, %v472
    %v474 = vand.u32 %v473, 4294901760
    %475 = vmatpush1.msra.mxu0 %v474
    %v476 = vand.u32 %v110, 4294901760
    %v477 = vsub.f32 %v110, %v476
    %v478 = vand.u32 %v477, 4294901760
    %v479 = vsub.f32 %v477, %v478
    %v480 = vand.u32 %v479, 4294901760
    %481 = vmatprep.subr.mxu0 %v480
    %v482 = vand.u32 %v109, 4294901760
    %v483 = vsub.f32 %v109, %v482
    %v484 = vand.u32 %v483, 4294901760
    %v485 = vsub.f32 %v483, %v484
    %v486 = vand.u32 %v485, 4294901760
    %487 = vmatpush1.msra.mxu0 %v486
    %v488 = vand.u32 %v113, 4294901760
    %v489 = vsub.f32 %v113, %v488
    %v490 = vand.u32 %v489, 4294901760
    %v491 = vsub.f32 %v489, %v490
    %v492 = vand.u32 %v491, 4294901760
    %493 = vmatprep.subr.mxu0 %v492
    %v494 = vand.u32 %v112, 4294901760
    %v495 = vsub.f32 %v112, %v494
    %v496 = vand.u32 %v495, 4294901760
    %v497 = vsub.f32 %v495, %v496
    %v498 = vand.u32 %v497, 4294901760
    %499 = vmatpush1.msra.mxu0 %v498
    %v500 = vand.u32 %v116, 4294901760
    %v501 = vsub.f32 %v116, %v500
    %v502 = vand.u32 %v501, 4294901760
    %v503 = vsub.f32 %v501, %v502
    %v504 = vand.u32 %v503, 4294901760
    %505 = vmatprep.subr.mxu0 %v504
    %v506 = vand.u32 %v115, 4294901760
    %v507 = vsub.f32 %v115, %v506
    %v508 = vand.u32 %v507, 4294901760
    %v509 = vsub.f32 %v507, %v508
    %v510 = vand.u32 %v509, 4294901760
    %511 = vmatpush1.msra.mxu0 %v510
    %512 = vmatprep.subr.mxu0 0.0
    %513 = vmatpush1.msra.mxu0 0.0
    %514 = vmatprep.subr.mxu0 0.0
    %515 = vmatpush1.msra.mxu0 0.0
    %516 = vmatprep.subr.mxu0 0.0
    %517 = vmatpush1.msra.mxu0 0.0
    %518 = vmatprep.subr.mxu0 0.0
    %519 = vmatpush1.msra.mxu0 0.0
    %520 = vmatprep.subr.mxu0 0.0
    %521 = vmatpush1.msra.mxu0 0.0
    %522 = vmatprep.subr.mxu0 0.0
    %523 = vmatpush1.msra.mxu0 0.0
    %524 = vmatprep.subr.mxu0 0.0
    %525 = vmatpush1.msra.mxu0 0.0
    %526 = vmatprep.subr.mxu0 0.0
    %527 = vmatpush1.msra.mxu0 0.0
    %528 = vmatprep.subr.mxu0 0.0
    %529 = vmatpush1.msra.mxu0 0.0
    %530 = vmatprep.subr.mxu0 0.0
    %531 = vmatpush1.msra.mxu0 0.0
    %532 = vmatprep.subr.mxu0 0.0
    %533 = vmatpush1.msra.mxu0 0.0
    %534 = vmatprep.subr.mxu0 0.0
    %535 = vmatpush1.msra.mxu0 0.0
    %536 = vmatprep.subr.mxu0 0.0
    %537 = vmatpush1.msra.mxu0 0.0
    %538 = vmatprep.subr.mxu0 0.0
    %539 = vmatpush1.msra.mxu0 0.0
    %540 = vmatprep.subr.mxu0 0.0
    %541 = vmatpush1.msra.mxu0 0.0
    %542 = vmatprep.subr.mxu0 0.0
    %543 = vmatpush1.msra.mxu0 0.0
    %544 = vmatprep.mubr.f32.mxu0 0.0
    %v545 = vand.u32 %v62, 4294901760
    %546 = vmatmul.mubr.f32.gmra.mrb[0].mxu0 %v545
    %v547 = vpop.f32.mrb[0].mxu0
    %v548 = vadd.f32 %v239, %v547
    %v549 = vpop.f32.mrb[0].mxu0
    %v550 = vadd.f32 %v241, %v549
    %551 = vmatprep.mubr.f32.mxu0 0.0
    %v552 = vand.u32 %v63, 4294901760
    %553 = vmatmul.mubr.f32.gmra.mrb[0].mxu0 %v552
    %v554 = vpop.f32.mrb[0].mxu0
    %v555 = vadd.f32 %v250, %v554
    %v556 = vpop.f32.mrb[0].mxu0
    %v557 = vadd.f32 %v252, %v556
    %558 = vmatprep.mubr.f32.mxu0 0.0
    %v559 = vand.u32 %v64, 4294901760
    %560 = vmatmul.mubr.f32.gmra.mrb[0].mxu0 %v559
    %v561 = vpop.f32.mrb[0].mxu0
    %v562 = vadd.f32 %v261, %v561
    %v563 = vpop.f32.mrb[0].mxu0
    %v564 = vadd.f32 %v263, %v563
    %565 = vmatprep.mubr.f32.mxu0 0.0
    %v566 = vand.u32 %v65, 4294901760
    %567 = vmatmul.mubr.f32.gmra.mrb[0].mxu0 %v566
    %v568 = vpop.f32.mrb[0].mxu0
    %v569 = vadd.f32 %v272, %v568
    %v570 = vpop.f32.mrb[0].mxu0
    %v571 = vadd.f32 %v274, %v570
    %572 = vmatprep.mubr.f32.mxu0 0.0
    %v573 = vand.u32 %v66, 4294901760
    %574 = vmatmul.mubr.f32.gmra.mrb[0].mxu0 %v573
    %v575 = vpop.f32.mrb[0].mxu0
    %v576 = vadd.f32 %v283, %v575
    %v577 = vpop.f32.mrb[0].mxu0
    %v578 = vadd.f32 %v285, %v577
    %579 = vmatprep.mubr.f32.mxu0 0.0
    %v580 = vand.u32 %v67, 4294901760
    %581 = vmatmul.mubr.f32.gmra.mrb[0].mxu0 %v580
    %v582 = vpop.f32.mrb[0].mxu0
    %v583 = vadd.f32 %v294, %v582
    %v584 = vpop.f32.mrb[0].mxu0
    %v585 = vadd.f32 %v296, %v584
    %586 = vmatprep.mubr.f32.mxu0 0.0
    %v587 = vand.u32 %v68, 4294901760
    %588 = vmatmul.mubr.f32.gmra.mrb[0].mxu0 %v587
    %v589 = vpop.f32.mrb[0].mxu0
    %v590 = vadd.f32 %v305, %v589
    %v591 = vpop.f32.mrb[0].mxu0
    %v592 = vadd.f32 %v307, %v591
    %593 = vmatprep.mubr.f32.mxu0 0.0
    %v594 = vand.u32 %v69, 4294901760
    %595 = vmatmul.mubr.f32.gmra.mrb[0].mxu0 %v594
    %v596 = vpop.f32.mrb[0].mxu0
    %v597 = vadd.f32 %v316, %v596
    %v598 = vpop.f32.mrb[0].mxu0
    %v599 = vadd.f32 %v318, %v598
    %600 = vdwg.mxu0
    %v601 = vand.u32 %v71, 4294901760
    %v602 = vsub.f32 %v71, %v601
    %603 = vmatprep.subr.mxu0 %v602
    %v604 = vand.u32 %v70, 4294901760
    %v605 = vsub.f32 %v70, %v604
    %606 = vmatpush1.msra.mxu0 %v605
    %v607 = vand.u32 %v74, 4294901760
    %v608 = vsub.f32 %v74, %v607
    %609 = vmatprep.subr.mxu0 %v608
    %v610 = vand.u32 %v73, 4294901760
    %v611 = vsub.f32 %v73, %v610
    %612 = vmatpush1.msra.mxu0 %v611
    %v613 = vand.u32 %v77, 4294901760
    %v614 = vsub.f32 %v77, %v613
    %615 = vmatprep.subr.mxu0 %v614
    %v616 = vand.u32 %v76, 4294901760
    %v617 = vsub.f32 %v76, %v616
    %618 = vmatpush1.msra.mxu0 %v617
    %v619 = vand.u32 %v80, 4294901760
    %v620 = vsub.f32 %v80, %v619
    %621 = vmatprep.subr.mxu0 %v620
    %v622 = vand.u32 %v79, 4294901760
    %v623 = vsub.f32 %v79, %v622
    %624 = vmatpush1.msra.mxu0 %v623
    %v625 = vand.u32 %v83, 4294901760
    %v626 = vsub.f32 %v83, %v625
    %627 = vmatprep.subr.mxu0 %v626
    %v628 = vand.u32 %v82, 4294901760
    %v629 = vsub.f32 %v82, %v628
    %630 = vmatpush1.msra.mxu0 %v629
    %v631 = vand.u32 %v86, 4294901760
    %v632 = vsub.f32 %v86, %v631
    %633 = vmatprep.subr.mxu0 %v632
    %v634 = vand.u32 %v85, 4294901760
    %v635 = vsub.f32 %v85, %v634
    %636 = vmatpush1.msra.mxu0 %v635
    %v637 = vand.u32 %v89, 4294901760
    %v638 = vsub.f32 %v89, %v637
    %639 = vmatprep.subr.mxu0 %v638
    %v640 = vand.u32 %v88, 4294901760
    %v641 = vsub.f32 %v88, %v640
    %642 = vmatpush1.msra.mxu0 %v641
    %v643 = vand.u32 %v92, 4294901760
    %v644 = vsub.f32 %v92, %v643
    %645 = vmatprep.subr.mxu0 %v644
    %v646 = vand.u32 %v91, 4294901760
    %v647 = vsub.f32 %v91, %v646
    %648 = vmatpush1.msra.mxu0 %v647
    %v649 = vand.u32 %v95, 4294901760
    %v650 = vsub.f32 %v95, %v649
    %651 = vmatprep.subr.mxu0 %v650
    %v652 = vand.u32 %v94, 4294901760
    %v653 = vsub.f32 %v94, %v652
    %654 = vmatpush1.msra.mxu0 %v653
    %v655 = vand.u32 %v98, 4294901760
    %v656 = vsub.f32 %v98, %v655
    %657 = vmatprep.subr.mxu0 %v656
    %v658 = vand.u32 %v97, 4294901760
    %v659 = vsub.f32 %v97, %v658
    %660 = vmatpush1.msra.mxu0 %v659
    %v661 = vand.u32 %v101, 4294901760
    %v662 = vsub.f32 %v101, %v661
    %663 = vmatprep.subr.mxu0 %v662
    %v664 = vand.u32 %v100, 4294901760
    %v665 = vsub.f32 %v100, %v664
    %666 = vmatpush1.msra.mxu0 %v665
    %v667 = vand.u32 %v104, 4294901760
    %v668 = vsub.f32 %v104, %v667
    %669 = vmatprep.subr.mxu0 %v668
    %v670 = vand.u32 %v103, 4294901760
    %v671 = vsub.f32 %v103, %v670
    %672 = vmatpush1.msra.mxu0 %v671
    %v673 = vand.u32 %v107, 4294901760
    %v674 = vsub.f32 %v107, %v673
    %675 = vmatprep.subr.mxu0 %v674
    %v676 = vand.u32 %v106, 4294901760
    %v677 = vsub.f32 %v106, %v676
    %678 = vmatpush1.msra.mxu0 %v677
    %v679 = vand.u32 %v110, 4294901760
    %v680 = vsub.f32 %v110, %v679
    %681 = vmatprep.subr.mxu0 %v680
    %v682 = vand.u32 %v109, 4294901760
    %v683 = vsub.f32 %v109, %v682
    %684 = vmatpush1.msra.mxu0 %v683
    %v685 = vand.u32 %v113, 4294901760
    %v686 = vsub.f32 %v113, %v685
    %687 = vmatprep.subr.mxu0 %v686
    %v688 = vand.u32 %v112, 4294901760
    %v689 = vsub.f32 %v112, %v688
    %690 = vmatpush1.msra.mxu0 %v689
    %v691 = vand.u32 %v116, 4294901760
    %v692 = vsub.f32 %v116, %v691
    %693 = vmatprep.subr.mxu0 %v692
    %v694 = vand.u32 %v115, 4294901760
    %v695 = vsub.f32 %v115, %v694
    %696 = vmatpush1.msra.mxu0 %v695
    %697 = vmatprep.subr.mxu0 0.0
    %698 = vmatpush1.msra.mxu0 0.0
    %699 = vmatprep.subr.mxu0 0.0
    %700 = vmatpush1.msra.mxu0 0.0
    %701 = vmatprep.subr.mxu0 0.0
    %702 = vmatpush1.msra.mxu0 0.0
    %703 = vmatprep.subr.mxu0 0.0
    %704 = vmatpush1.msra.mxu0 0.0
    %705 = vmatprep.subr.mxu0 0.0
    %706 = vmatpush1.msra.mxu0 0.0
    %707 = vmatprep.subr.mxu0 0.0
    %708 = vmatpush1.msra.mxu0 0.0
    %709 = vmatprep.subr.mxu0 0.0
    %710 = vmatpush1.msra.mxu0 0.0
    %711 = vmatprep.subr.mxu0 0.0
    %712 = vmatpush1.msra.mxu0 0.0
    %713 = vmatprep.subr.mxu0 0.0
    %714 = vmatpush1.msra.mxu0 0.0
    %715 = vmatprep.subr.mxu0 0.0
    %716 = vmatpush1.msra.mxu0 0.0
    %717 = vmatprep.subr.mxu0 0.0
    %718 = vmatpush1.msra.mxu0 0.0
    %719 = vmatprep.subr.mxu0 0.0
    %720 = vmatpush1.msra.mxu0 0.0
    %721 = vmatprep.subr.mxu0 0.0
    %722 = vmatpush1.msra.mxu0 0.0
    %723 = vmatprep.subr.mxu0 0.0
    %724 = vmatpush1.msra.mxu0 0.0
    %725 = vmatprep.subr.mxu0 0.0
    %726 = vmatpush1.msra.mxu0 0.0
    %727 = vmatprep.subr.mxu0 0.0
    %728 = vmatpush1.msra.mxu0 0.0
    %729 = vmatprep.mubr.f32.mxu0 0.0
    %v730 = vand.u32 %v62, 4294901760
    %v731 = vsub.f32 %v62, %v730
    %732 = vmatmul.mubr.f32.gmra.mrb[0].mxu0 %v731
    %v733 = vpop.f32.mrb[0].mxu0
    %v734 = vadd.f32 %v548, %v733
    %v735 = vpop.f32.mrb[0].mxu0
    %v736 = vadd.f32 %v550, %v735
    %737 = vmatprep.mubr.f32.mxu0 0.0
    %v738 = vand.u32 %v63, 4294901760
    %v739 = vsub.f32 %v63, %v738
    %740 = vmatmul.mubr.f32.gmra.mrb[0].mxu0 %v739
    %v741 = vpop.f32.mrb[0].mxu0
    %v742 = vadd.f32 %v555, %v741
    %v743 = vpop.f32.mrb[0].mxu0
    %v744 = vadd.f32 %v557, %v743
    %745 = vmatprep.mubr.f32.mxu0 0.0
    %v746 = vand.u32 %v64, 4294901760
    %v747 = vsub.f32 %v64, %v746
    %748 = vmatmul.mubr.f32.gmra.mrb[0].mxu0 %v747
    %v749 = vpop.f32.mrb[0].mxu0
    %v750 = vadd.f32 %v562, %v749
    %v751 = vpop.f32.mrb[0].mxu0
    %v752 = vadd.f32 %v564, %v751
    %753 = vmatprep.mubr.f32.mxu0 0.0
    %v754 = vand.u32 %v65, 4294901760
    %v755 = vsub.f32 %v65, %v754
    %756 = vmatmul.mubr.f32.gmra.mrb[0].mxu0 %v755
    %v757 = vpop.f32.mrb[0].mxu0
    %v758 = vadd.f32 %v569, %v757
    %v759 = vpop.f32.mrb[0].mxu0
    %v760 = vadd.f32 %v571, %v759
    %761 = vmatprep.mubr.f32.mxu0 0.0
    %v762 = vand.u32 %v66, 4294901760
    %v763 = vsub.f32 %v66, %v762
    %764 = vmatmul.mubr.f32.gmra.mrb[0].mxu0 %v763
    %v765 = vpop.f32.mrb[0].mxu0
    %v766 = vadd.f32 %v576, %v765
    %v767 = vpop.f32.mrb[0].mxu0
    %v768 = vadd.f32 %v578, %v767
    %769 = vmatprep.mubr.f32.mxu0 0.0
    %v770 = vand.u32 %v67, 4294901760
    %v771 = vsub.f32 %v67, %v770
    %772 = vmatmul.mubr.f32.gmra.mrb[0].mxu0 %v771
    %v773 = vpop.f32.mrb[0].mxu0
    %v774 = vadd.f32 %v583, %v773
    %v775 = vpop.f32.mrb[0].mxu0
    %v776 = vadd.f32 %v585, %v775
    %777 = vmatprep.mubr.f32.mxu0 0.0
    %v778 = vand.u32 %v68, 4294901760
    %v779 = vsub.f32 %v68, %v778
    %780 = vmatmul.mubr.f32.gmra.mrb[0].mxu0 %v779
    %v781 = vpop.f32.mrb[0].mxu0
    %v782 = vadd.f32 %v590, %v781
    %v783 = vpop.f32.mrb[0].mxu0
    %v784 = vadd.f32 %v592, %v783
    %785 = vmatprep.mubr.f32.mxu0 0.0
    %v786 = vand.u32 %v69, 4294901760
    %v787 = vsub.f32 %v69, %v786
    %788 = vmatmul.mubr.f32.gmra.mrb[0].mxu0 %v787
    %v789 = vpop.f32.mrb[0].mxu0
    %v790 = vadd.f32 %v597, %v789
    %v791 = vpop.f32.mrb[0].mxu0
    %v792 = vadd.f32 %v599, %v791
    %793 = vdwg.mxu0
    %v794 = vand.u32 %v71, 4294901760
    %795 = vmatprep.subr.mxu0 %v794
    %v796 = vand.u32 %v70, 4294901760
    %797 = vmatpush1.msra.mxu0 %v796
    %v798 = vand.u32 %v74, 4294901760
    %799 = vmatprep.subr.mxu0 %v798
    %v800 = vand.u32 %v73, 4294901760
    %801 = vmatpush1.msra.mxu0 %v800
    %v802 = vand.u32 %v77, 4294901760
    %803 = vmatprep.subr.mxu0 %v802
    %v804 = vand.u32 %v76, 4294901760
    %805 = vmatpush1.msra.mxu0 %v804
    %v806 = vand.u32 %v80, 4294901760
    %807 = vmatprep.subr.mxu0 %v806
    %v808 = vand.u32 %v79, 4294901760
    %809 = vmatpush1.msra.mxu0 %v808
    %v810 = vand.u32 %v83, 4294901760
    %811 = vmatprep.subr.mxu0 %v810
    %v812 = vand.u32 %v82, 4294901760
    %813 = vmatpush1.msra.mxu0 %v812
    %v814 = vand.u32 %v86, 4294901760
    %815 = vmatprep.subr.mxu0 %v814
    %v816 = vand.u32 %v85, 4294901760
    %817 = vmatpush1.msra.mxu0 %v816
    %v818 = vand.u32 %v89, 4294901760
    %819 = vmatprep.subr.mxu0 %v818
    %v820 = vand.u32 %v88, 4294901760
    %821 = vmatpush1.msra.mxu0 %v820
    %v822 = vand.u32 %v92, 4294901760
    %823 = vmatprep.subr.mxu0 %v822
    %v824 = vand.u32 %v91, 4294901760
    %825 = vmatpush1.msra.mxu0 %v824
    %v826 = vand.u32 %v95, 4294901760
    %827 = vmatprep.subr.mxu0 %v826
    %v828 = vand.u32 %v94, 4294901760
    %829 = vmatpush1.msra.mxu0 %v828
    %v830 = vand.u32 %v98, 4294901760
    %831 = vmatprep.subr.mxu0 %v830
    %v832 = vand.u32 %v97, 4294901760
    %833 = vmatpush1.msra.mxu0 %v832
    %v834 = vand.u32 %v101, 4294901760
    %835 = vmatprep.subr.mxu0 %v834
    %v836 = vand.u32 %v100, 4294901760
    %837 = vmatpush1.msra.mxu0 %v836
    %v838 = vand.u32 %v104, 4294901760
    %839 = vmatprep.subr.mxu0 %v838
    %v840 = vand.u32 %v103, 4294901760
    %841 = vmatpush1.msra.mxu0 %v840
    %v842 = vand.u32 %v107, 4294901760
    %843 = vmatprep.subr.mxu0 %v842
    %v844 = vand.u32 %v106, 4294901760
    %845 = vmatpush1.msra.mxu0 %v844
    %v846 = vand.u32 %v110, 4294901760
    %847 = vmatprep.subr.mxu0 %v846
    %v848 = vand.u32 %v109, 4294901760
    %849 = vmatpush1.msra.mxu0 %v848
    %v850 = vand.u32 %v113, 4294901760
    %851 = vmatprep.subr.mxu0 %v850
    %v852 = vand.u32 %v112, 4294901760
    %853 = vmatpush1.msra.mxu0 %v852
    %v854 = vand.u32 %v116, 4294901760
    %855 = vmatprep.subr.mxu0 %v854
    %v856 = vand.u32 %v115, 4294901760
    %857 = vmatpush1.msra.mxu0 %v856
    %858 = vmatprep.subr.mxu0 0.0
    %859 = vmatpush1.msra.mxu0 0.0
    %860 = vmatprep.subr.mxu0 0.0
    %861 = vmatpush1.msra.mxu0 0.0
    %862 = vmatprep.subr.mxu0 0.0
    %863 = vmatpush1.msra.mxu0 0.0
    %864 = vmatprep.subr.mxu0 0.0
    %865 = vmatpush1.msra.mxu0 0.0
    %866 = vmatprep.subr.mxu0 0.0
    %867 = vmatpush1.msra.mxu0 0.0
    %868 = vmatprep.subr.mxu0 0.0
    %869 = vmatpush1.msra.mxu0 0.0
    %870 = vmatprep.subr.mxu0 0.0
    %871 = vmatpush1.msra.mxu0 0.0
    %872 = vmatprep.subr.mxu0 0.0
    %873 = vmatpush1.msra.mxu0 0.0
    %874 = vmatprep.subr.mxu0 0.0
    %875 = vmatpush1.msra.mxu0 0.0
    %876 = vmatprep.subr.mxu0 0.0
    %877 = vmatpush1.msra.mxu0 0.0
    %878 = vmatprep.subr.mxu0 0.0
    %879 = vmatpush1.msra.mxu0 0.0
    %880 = vmatprep.subr.mxu0 0.0
    %881 = vmatpush1.msra.mxu0 0.0
    %882 = vmatprep.subr.mxu0 0.0
    %883 = vmatpush1.msra.mxu0 0.0
    %884 = vmatprep.subr.mxu0 0.0
    %885 = vmatpush1.msra.mxu0 0.0
    %886 = vmatprep.subr.mxu0 0.0
    %887 = vmatpush1.msra.mxu0 0.0
    %888 = vmatprep.subr.mxu0 0.0
    %889 = vmatpush1.msra.mxu0 0.0
    %890 = vmatprep.mubr.f32.mxu0 0.0
    %v891 = vand.u32 %v62, 4294901760
    %v892 = vsub.f32 %v62, %v891
    %v893 = vand.u32 %v892, 4294901760
    %894 = vmatmul.mubr.f32.gmra.mrb[0].mxu0 %v893
    %v895 = vpop.f32.mrb[0].mxu0
    %v896 = vadd.f32 %v734, %v895
    %v897 = vpop.f32.mrb[0].mxu0
    %v898 = vadd.f32 %v736, %v897
    %899 = vmatprep.mubr.f32.mxu0 0.0
    %v900 = vand.u32 %v63, 4294901760
    %v901 = vsub.f32 %v63, %v900
    %v902 = vand.u32 %v901, 4294901760
    %903 = vmatmul.mubr.f32.gmra.mrb[0].mxu0 %v902
    %v904 = vpop.f32.mrb[0].mxu0
    %v905 = vadd.f32 %v742, %v904
    %v906 = vpop.f32.mrb[0].mxu0
    %v907 = vadd.f32 %v744, %v906
    %908 = vmatprep.mubr.f32.mxu0 0.0
    %v909 = vand.u32 %v64, 4294901760
    %v910 = vsub.f32 %v64, %v909
    %v911 = vand.u32 %v910, 4294901760
    %912 = vmatmul.mubr.f32.gmra.mrb[0].mxu0 %v911
    %v913 = vpop.f32.mrb[0].mxu0
    %v914 = vadd.f32 %v750, %v913
    %v915 = vpop.f32.mrb[0].mxu0
    %v916 = vadd.f32 %v752, %v915
    %917 = vmatprep.mubr.f32.mxu0 0.0
    %v918 = vand.u32 %v65, 4294901760
    %v919 = vsub.f32 %v65, %v918
    %v920 = vand.u32 %v919, 4294901760
    %921 = vmatmul.mubr.f32.gmra.mrb[0].mxu0 %v920
    %v922 = vpop.f32.mrb[0].mxu0
    %v923 = vadd.f32 %v758, %v922
    %v924 = vpop.f32.mrb[0].mxu0
    %v925 = vadd.f32 %v760, %v924
    %926 = vmatprep.mubr.f32.mxu0 0.0
    %v927 = vand.u32 %v66, 4294901760
    %v928 = vsub.f32 %v66, %v927
    %v929 = vand.u32 %v928, 4294901760
    %930 = vmatmul.mubr.f32.gmra.mrb[0].mxu0 %v929
    %v931 = vpop.f32.mrb[0].mxu0
    %v932 = vadd.f32 %v766, %v931
    %v933 = vpop.f32.mrb[0].mxu0
    %v934 = vadd.f32 %v768, %v933
    %935 = vmatprep.mubr.f32.mxu0 0.0
    %v936 = vand.u32 %v67, 4294901760
    %v937 = vsub.f32 %v67, %v936
    %v938 = vand.u32 %v937, 4294901760
    %939 = vmatmul.mubr.f32.gmra.mrb[0].mxu0 %v938
    %v940 = vpop.f32.mrb[0].mxu0
    %v941 = vadd.f32 %v774, %v940
    %v942 = vpop.f32.mrb[0].mxu0
    %v943 = vadd.f32 %v776, %v942
    %944 = vmatprep.mubr.f32.mxu0 0.0
    %v945 = vand.u32 %v68, 4294901760
    %v946 = vsub.f32 %v68, %v945
    %v947 = vand.u32 %v946, 4294901760
    %948 = vmatmul.mubr.f32.gmra.mrb[0].mxu0 %v947
    %v949 = vpop.f32.mrb[0].mxu0
    %v950 = vadd.f32 %v782, %v949
    %v951 = vpop.f32.mrb[0].mxu0
    %v952 = vadd.f32 %v784, %v951
    %953 = vmatprep.mubr.f32.mxu0 0.0
    %v954 = vand.u32 %v69, 4294901760
    %v955 = vsub.f32 %v69, %v954
    %v956 = vand.u32 %v955, 4294901760
    %957 = vmatmul.mubr.f32.gmra.mrb[0].mxu0 %v956
    %v958 = vpop.f32.mrb[0].mxu0
    %v959 = vadd.f32 %v790, %v958
    %v960 = vpop.f32.mrb[0].mxu0
    %v961 = vadd.f32 %v792, %v960
    %962 = vdwg.mxu0
    %v963 = vand.u32 %v71, 4294901760
    %v964 = vsub.f32 %v71, %v963
    %v965 = vand.u32 %v964, 4294901760
    %966 = vmatprep.subr.mxu0 %v965
    %v967 = vand.u32 %v70, 4294901760
    %v968 = vsub.f32 %v70, %v967
    %v969 = vand.u32 %v968, 4294901760
    %970 = vmatpush1.msra.mxu0 %v969
    %v971 = vand.u32 %v74, 4294901760
    %v972 = vsub.f32 %v74, %v971
    %v973 = vand.u32 %v972, 4294901760
    %974 = vmatprep.subr.mxu0 %v973
    %v975 = vand.u32 %v73, 4294901760
    %v976 = vsub.f32 %v73, %v975
    %v977 = vand.u32 %v976, 4294901760
    %978 = vmatpush1.msra.mxu0 %v977
    %v979 = vand.u32 %v77, 4294901760
    %v980 = vsub.f32 %v77, %v979
    %v981 = vand.u32 %v980, 4294901760
    %982 = vmatprep.subr.mxu0 %v981
    %v983 = vand.u32 %v76, 4294901760
    %v984 = vsub.f32 %v76, %v983
    %v985 = vand.u32 %v984, 4294901760
    %986 = vmatpush1.msra.mxu0 %v985
    %v987 = vand.u32 %v80, 4294901760
    %v988 = vsub.f32 %v80, %v987
    %v989 = vand.u32 %v988, 4294901760
    %990 = vmatprep.subr.mxu0 %v989
    %v991 = vand.u32 %v79, 4294901760
    %v992 = vsub.f32 %v79, %v991
    %v993 = vand.u32 %v992, 4294901760
    %994 = vmatpush1.msra.mxu0 %v993
    %v995 = vand.u32 %v83, 4294901760
    %v996 = vsub.f32 %v83, %v995
    %v997 = vand.u32 %v996, 4294901760
    %998 = vmatprep.subr.mxu0 %v997
    %v999 = vand.u32 %v82, 4294901760
    %v1000 = vsub.f32 %v82, %v999
    %v1001 = vand.u32 %v1000, 4294901760
    %1002 = vmatpush1.msra.mxu0 %v1001
    %v1003 = vand.u32 %v86, 4294901760
    %v1004 = vsub.f32 %v86, %v1003
    %v1005 = vand.u32 %v1004, 4294901760
    %1006 = vmatprep.subr.mxu0 %v1005
    %v1007 = vand.u32 %v85, 4294901760
    %v1008 = vsub.f32 %v85, %v1007
    %v1009 = vand.u32 %v1008, 4294901760
    %1010 = vmatpush1.msra.mxu0 %v1009
    %v1011 = vand.u32 %v89, 4294901760
    %v1012 = vsub.f32 %v89, %v1011
    %v1013 = vand.u32 %v1012, 4294901760
    %1014 = vmatprep.subr.mxu0 %v1013
    %v1015 = vand.u32 %v88, 4294901760
    %v1016 = vsub.f32 %v88, %v1015
    %v1017 = vand.u32 %v1016, 4294901760
    %1018 = vmatpush1.msra.mxu0 %v1017
    %v1019 = vand.u32 %v92, 4294901760
    %v1020 = vsub.f32 %v92, %v1019
    %v1021 = vand.u32 %v1020, 4294901760
    %1022 = vmatprep.subr.mxu0 %v1021
    %v1023 = vand.u32 %v91, 4294901760
    %v1024 = vsub.f32 %v91, %v1023
    %v1025 = vand.u32 %v1024, 4294901760
    %1026 = vmatpush1.msra.mxu0 %v1025
    %v1027 = vand.u32 %v95, 4294901760
    %v1028 = vsub.f32 %v95, %v1027
    %v1029 = vand.u32 %v1028, 4294901760
    %1030 = vmatprep.subr.mxu0 %v1029
    %v1031 = vand.u32 %v94, 4294901760
    %v1032 = vsub.f32 %v94, %v1031
    %v1033 = vand.u32 %v1032, 4294901760
    %1034 = vmatpush1.msra.mxu0 %v1033
    %v1035 = vand.u32 %v98, 4294901760
    %v1036 = vsub.f32 %v98, %v1035
    %v1037 = vand.u32 %v1036, 4294901760
    %1038 = vmatprep.subr.mxu0 %v1037
    %v1039 = vand.u32 %v97, 4294901760
    %v1040 = vsub.f32 %v97, %v1039
    %v1041 = vand.u32 %v1040, 4294901760
    %1042 = vmatpush1.msra.mxu0 %v1041
    %v1043 = vand.u32 %v101, 4294901760
    %v1044 = vsub.f32 %v101, %v1043
    %v1045 = vand.u32 %v1044, 4294901760
    %1046 = vmatprep.subr.mxu0 %v1045
    %v1047 = vand.u32 %v100, 4294901760
    %v1048 = vsub.f32 %v100, %v1047
    %v1049 = vand.u32 %v1048, 4294901760
    %1050 = vmatpush1.msra.mxu0 %v1049
    %v1051 = vand.u32 %v104, 4294901760
    %v1052 = vsub.f32 %v104, %v1051
    %v1053 = vand.u32 %v1052, 4294901760
    %1054 = vmatprep.subr.mxu0 %v1053
    %v1055 = vand.u32 %v103, 4294901760
    %v1056 = vsub.f32 %v103, %v1055
    %v1057 = vand.u32 %v1056, 4294901760
    %1058 = vmatpush1.msra.mxu0 %v1057
    %v1059 = vand.u32 %v107, 4294901760
    %v1060 = vsub.f32 %v107, %v1059
    %v1061 = vand.u32 %v1060, 4294901760
    %1062 = vmatprep.subr.mxu0 %v1061
    %v1063 = vand.u32 %v106, 4294901760
    %v1064 = vsub.f32 %v106, %v1063
    %v1065 = vand.u32 %v1064, 4294901760
    %1066 = vmatpush1.msra.mxu0 %v1065
    %v1067 = vand.u32 %v110, 4294901760
    %v1068 = vsub.f32 %v110, %v1067
    %v1069 = vand.u32 %v1068, 4294901760
    %1070 = vmatprep.subr.mxu0 %v1069
    %v1071 = vand.u32 %v109, 4294901760
    %v1072 = vsub.f32 %v109, %v1071
    %v1073 = vand.u32 %v1072, 4294901760
    %1074 = vmatpush1.msra.mxu0 %v1073
    %v1075 = vand.u32 %v113, 4294901760
    %v1076 = vsub.f32 %v113, %v1075
    %v1077 = vand.u32 %v1076, 4294901760
    %1078 = vmatprep.subr.mxu0 %v1077
    %v1079 = vand.u32 %v112, 4294901760
    %v1080 = vsub.f32 %v112, %v1079
    %v1081 = vand.u32 %v1080, 4294901760
    %1082 = vmatpush1.msra.mxu0 %v1081
    %v1083 = vand.u32 %v116, 4294901760
    %v1084 = vsub.f32 %v116, %v1083
    %v1085 = vand.u32 %v1084, 4294901760
    %1086 = vmatprep.subr.mxu0 %v1085
    %v1087 = vand.u32 %v115, 4294901760
    %v1088 = vsub.f32 %v115, %v1087
    %v1089 = vand.u32 %v1088, 4294901760
    %1090 = vmatpush1.msra.mxu0 %v1089
    %1091 = vmatprep.subr.mxu0 0.0
    %1092 = vmatpush1.msra.mxu0 0.0
    %1093 = vmatprep.subr.mxu0 0.0
    %1094 = vmatpush1.msra.mxu0 0.0
    %1095 = vmatprep.subr.mxu0 0.0
    %1096 = vmatpush1.msra.mxu0 0.0
    %1097 = vmatprep.subr.mxu0 0.0
    %1098 = vmatpush1.msra.mxu0 0.0
    %1099 = vmatprep.subr.mxu0 0.0
    %1100 = vmatpush1.msra.mxu0 0.0
    %1101 = vmatprep.subr.mxu0 0.0
    %1102 = vmatpush1.msra.mxu0 0.0
    %1103 = vmatprep.subr.mxu0 0.0
    %1104 = vmatpush1.msra.mxu0 0.0
    %1105 = vmatprep.subr.mxu0 0.0
    %1106 = vmatpush1.msra.mxu0 0.0
    %1107 = vmatprep.subr.mxu0 0.0
    %1108 = vmatpush1.msra.mxu0 0.0
    %1109 = vmatprep.subr.mxu0 0.0
    %1110 = vmatpush1.msra.mxu0 0.0
    %1111 = vmatprep.subr.mxu0 0.0
    %1112 = vmatpush1.msra.mxu0 0.0
    %1113 = vmatprep.subr.mxu0 0.0
    %1114 = vmatpush1.msra.mxu0 0.0
    %1115 = vmatprep.subr.mxu0 0.0
    %1116 = vmatpush1.msra.mxu0 0.0
    %1117 = vmatprep.subr.mxu0 0.0
    %1118 = vmatpush1.msra.mxu0 0.0
    %1119 = vmatprep.subr.mxu0 0.0
    %1120 = vmatpush1.msra.mxu0 0.0
    %1121 = vmatprep.subr.mxu0 0.0
    %1122 = vmatpush1.msra.mxu0 0.0
    %1123 = vmatprep.mubr.f32.mxu0 0.0
    %v1124 = vand.u32 %v62, 4294901760
    %1125 = vmatmul.mubr.f32.gmra.mrb[0].mxu0 %v1124
    %v1126 = vpop.f32.mrb[0].mxu0
    %v1127 = vadd.f32 %v896, %v1126
    %v1128 = vpop.f32.mrb[0].mxu0
    %v1129 = vadd.f32 %v898, %v1128
    %1130 = vmatprep.mubr.f32.mxu0 0.0
    %v1131 = vand.u32 %v63, 4294901760
    %1132 = vmatmul.mubr.f32.gmra.mrb[0].mxu0 %v1131
    %v1133 = vpop.f32.mrb[0].mxu0
    %v1134 = vadd.f32 %v905, %v1133
    %v1135 = vpop.f32.mrb[0].mxu0
    %v1136 = vadd.f32 %v907, %v1135
    %1137 = vmatprep.mubr.f32.mxu0 0.0
    %v1138 = vand.u32 %v64, 4294901760
    %1139 = vmatmul.mubr.f32.gmra.mrb[0].mxu0 %v1138
    %v1140 = vpop.f32.mrb[0].mxu0
    %v1141 = vadd.f32 %v914, %v1140
    %v1142 = vpop.f32.mrb[0].mxu0
    %v1143 = vadd.f32 %v916, %v1142
    %1144 = vmatprep.mubr.f32.mxu0 0.0
    %v1145 = vand.u32 %v65, 4294901760
    %1146 = vmatmul.mubr.f32.gmra.mrb[0].mxu0 %v1145
    %v1147 = vpop.f32.mrb[0].mxu0
    %v1148 = vadd.f32 %v923, %v1147
    %v1149 = vpop.f32.mrb[0].mxu0
    %v1150 = vadd.f32 %v925, %v1149
    %1151 = vmatprep.mubr.f32.mxu0 0.0
    %v1152 = vand.u32 %v66, 4294901760
    %1153 = vmatmul.mubr.f32.gmra.mrb[0].mxu0 %v1152
    %v1154 = vpop.f32.mrb[0].mxu0
    %v1155 = vadd.f32 %v932, %v1154
    %v1156 = vpop.f32.mrb[0].mxu0
    %v1157 = vadd.f32 %v934, %v1156
    %1158 = vmatprep.mubr.f32.mxu0 0.0
    %v1159 = vand.u32 %v67, 4294901760
    %1160 = vmatmul.mubr.f32.gmra.mrb[0].mxu0 %v1159
    %v1161 = vpop.f32.mrb[0].mxu0
    %v1162 = vadd.f32 %v941, %v1161
    %v1163 = vpop.f32.mrb[0].mxu0
    %v1164 = vadd.f32 %v943, %v1163
    %1165 = vmatprep.mubr.f32.mxu0 0.0
    %v1166 = vand.u32 %v68, 4294901760
    %1167 = vmatmul.mubr.f32.gmra.mrb[0].mxu0 %v1166
    %v1168 = vpop.f32.mrb[0].mxu0
    %v1169 = vadd.f32 %v950, %v1168
    %v1170 = vpop.f32.mrb[0].mxu0
    %v1171 = vadd.f32 %v952, %v1170
    %1172 = vmatprep.mubr.f32.mxu0 0.0
    %v1173 = vand.u32 %v69, 4294901760
    %1174 = vmatmul.mubr.f32.gmra.mrb[0].mxu0 %v1173
    %v1175 = vpop.f32.mrb[0].mxu0
    %v1176 = vadd.f32 %v959, %v1175
    %v1177 = vpop.f32.mrb[0].mxu0
    %v1178 = vadd.f32 %v961, %v1177
    %1179 = vdwg.mxu0
    %v1180 = vand.u32 %v71, 4294901760
    %1181 = vmatprep.subr.mxu0 %v1180
    %v1182 = vand.u32 %v70, 4294901760
    %1183 = vmatpush1.msra.mxu0 %v1182
    %v1184 = vand.u32 %v74, 4294901760
    %1185 = vmatprep.subr.mxu0 %v1184
    %v1186 = vand.u32 %v73, 4294901760
    %1187 = vmatpush1.msra.mxu0 %v1186
    %v1188 = vand.u32 %v77, 4294901760
    %1189 = vmatprep.subr.mxu0 %v1188
    %v1190 = vand.u32 %v76, 4294901760
    %1191 = vmatpush1.msra.mxu0 %v1190
    %v1192 = vand.u32 %v80, 4294901760
    %1193 = vmatprep.subr.mxu0 %v1192
    %v1194 = vand.u32 %v79, 4294901760
    %1195 = vmatpush1.msra.mxu0 %v1194
    %v1196 = vand.u32 %v83, 4294901760
    %1197 = vmatprep.subr.mxu0 %v1196
    %v1198 = vand.u32 %v82, 4294901760
    %1199 = vmatpush1.msra.mxu0 %v1198
    %v1200 = vand.u32 %v86, 4294901760
    %1201 = vmatprep.subr.mxu0 %v1200
    %v1202 = vand.u32 %v85, 4294901760
    %1203 = vmatpush1.msra.mxu0 %v1202
    %v1204 = vand.u32 %v89, 4294901760
    %1205 = vmatprep.subr.mxu0 %v1204
    %v1206 = vand.u32 %v88, 4294901760
    %1207 = vmatpush1.msra.mxu0 %v1206
    %v1208 = vand.u32 %v92, 4294901760
    %1209 = vmatprep.subr.mxu0 %v1208
    %v1210 = vand.u32 %v91, 4294901760
    %1211 = vmatpush1.msra.mxu0 %v1210
    %v1212 = vand.u32 %v95, 4294901760
    %1213 = vmatprep.subr.mxu0 %v1212
    %v1214 = vand.u32 %v94, 4294901760
    %1215 = vmatpush1.msra.mxu0 %v1214
    %v1216 = vand.u32 %v98, 4294901760
    %1217 = vmatprep.subr.mxu0 %v1216
    %v1218 = vand.u32 %v97, 4294901760
    %1219 = vmatpush1.msra.mxu0 %v1218
    %v1220 = vand.u32 %v101, 4294901760
    %1221 = vmatprep.subr.mxu0 %v1220
    %v1222 = vand.u32 %v100, 4294901760
    %1223 = vmatpush1.msra.mxu0 %v1222
    %v1224 = vand.u32 %v104, 4294901760
    %1225 = vmatprep.subr.mxu0 %v1224
    %v1226 = vand.u32 %v103, 4294901760
    %1227 = vmatpush1.msra.mxu0 %v1226
    %v1228 = vand.u32 %v107, 4294901760
    %1229 = vmatprep.subr.mxu0 %v1228
    %v1230 = vand.u32 %v106, 4294901760
    %1231 = vmatpush1.msra.mxu0 %v1230
    %v1232 = vand.u32 %v110, 4294901760
    %1233 = vmatprep.subr.mxu0 %v1232
    %v1234 = vand.u32 %v109, 4294901760
    %1235 = vmatpush1.msra.mxu0 %v1234
    %v1236 = vand.u32 %v113, 4294901760
    %1237 = vmatprep.subr.mxu0 %v1236
    %v1238 = vand.u32 %v112, 4294901760
    %1239 = vmatpush1.msra.mxu0 %v1238
    %v1240 = vand.u32 %v116, 4294901760
    %1241 = vmatprep.subr.mxu0 %v1240
    %v1242 = vand.u32 %v115, 4294901760
    %1243 = vmatpush1.msra.mxu0 %v1242
    %1244 = vmatprep.subr.mxu0 0.0
    %1245 = vmatpush1.msra.mxu0 0.0
    %1246 = vmatprep.subr.mxu0 0.0
    %1247 = vmatpush1.msra.mxu0 0.0
    %1248 = vmatprep.subr.mxu0 0.0
    %1249 = vmatpush1.msra.mxu0 0.0
    %1250 = vmatprep.subr.mxu0 0.0
    %1251 = vmatpush1.msra.mxu0 0.0
    %1252 = vmatprep.subr.mxu0 0.0
    %1253 = vmatpush1.msra.mxu0 0.0
    %1254 = vmatprep.subr.mxu0 0.0
    %1255 = vmatpush1.msra.mxu0 0.0
    %1256 = vmatprep.subr.mxu0 0.0
    %1257 = vmatpush1.msra.mxu0 0.0
    %1258 = vmatprep.subr.mxu0 0.0
    %1259 = vmatpush1.msra.mxu0 0.0
    %1260 = vmatprep.subr.mxu0 0.0
    %1261 = vmatpush1.msra.mxu0 0.0
    %1262 = vmatprep.subr.mxu0 0.0
    %1263 = vmatpush1.msra.mxu0 0.0
    %1264 = vmatprep.subr.mxu0 0.0
    %1265 = vmatpush1.msra.mxu0 0.0
    %1266 = vmatprep.subr.mxu0 0.0
    %1267 = vmatpush1.msra.mxu0 0.0
    %1268 = vmatprep.subr.mxu0 0.0
    %1269 = vmatpush1.msra.mxu0 0.0
    %1270 = vmatprep.subr.mxu0 0.0
    %1271 = vmatpush1.msra.mxu0 0.0
    %1272 = vmatprep.subr.mxu0 0.0
    %1273 = vmatpush1.msra.mxu0 0.0
    %1274 = vmatprep.subr.mxu0 0.0
    %1275 = vmatpush1.msra.mxu0 0.0
    %1276 = vmatprep.mubr.f32.mxu0 0.0
    %v1277 = vand.u32 %v62, 4294901760
    %1278 = vmatmul.mubr.f32.gmra.mrb[0].mxu0 %v1277
    %v1279 = vpop.f32.mrb[0].mxu0
    %v1280 = vadd.f32 %v1127, %v1279
    %v1281 = vpop.f32.mrb[0].mxu0
    %v1282 = vadd.f32 %v1129, %v1281
    %1283 = vmatprep.mubr.f32.mxu0 0.0
    %v1284 = vand.u32 %v63, 4294901760
    %1285 = vmatmul.mubr.f32.gmra.mrb[0].mxu0 %v1284
    %v1286 = vpop.f32.mrb[0].mxu0
    %v1287 = vadd.f32 %v1134, %v1286
    %v1288 = vpop.f32.mrb[0].mxu0
    %v1289 = vadd.f32 %v1136, %v1288
    %1290 = vmatprep.mubr.f32.mxu0 0.0
    %v1291 = vand.u32 %v64, 4294901760
    %1292 = vmatmul.mubr.f32.gmra.mrb[0].mxu0 %v1291
    %v1293 = vpop.f32.mrb[0].mxu0
    %v1294 = vadd.f32 %v1141, %v1293
    %v1295 = vpop.f32.mrb[0].mxu0
    %v1296 = vadd.f32 %v1143, %v1295
    %1297 = vmatprep.mubr.f32.mxu0 0.0
    %v1298 = vand.u32 %v65, 4294901760
    %1299 = vmatmul.mubr.f32.gmra.mrb[0].mxu0 %v1298
    %v1300 = vpop.f32.mrb[0].mxu0
    %v1301 = vadd.f32 %v1148, %v1300
    %v1302 = vpop.f32.mrb[0].mxu0
    %v1303 = vadd.f32 %v1150, %v1302
    %1304 = vmatprep.mubr.f32.mxu0 0.0
    %v1305 = vand.u32 %v66, 4294901760
    %1306 = vmatmul.mubr.f32.gmra.mrb[0].mxu0 %v1305
    %v1307 = vpop.f32.mrb[0].mxu0
    %v1308 = vadd.f32 %v1155, %v1307
    %v1309 = vpop.f32.mrb[0].mxu0
    %v1310 = vadd.f32 %v1157, %v1309
    %1311 = vmatprep.mubr.f32.mxu0 0.0
    %v1312 = vand.u32 %v67, 4294901760
    %1313 = vmatmul.mubr.f32.gmra.mrb[0].mxu0 %v1312
    %v1314 = vpop.f32.mrb[0].mxu0
    %v1315 = vadd.f32 %v1162, %v1314
    %v1316 = vpop.f32.mrb[0].mxu0
    %v1317 = vadd.f32 %v1164, %v1316
    %1318 = vmatprep.mubr.f32.mxu0 0.0
    %v1319 = vand.u32 %v68, 4294901760
    %1320 = vmatmul.mubr.f32.gmra.mrb[0].mxu0 %v1319
    %v1321 = vpop.f32.mrb[0].mxu0
    %v1322 = vadd.f32 %v1169, %v1321
    %v1323 = vpop.f32.mrb[0].mxu0
    %v1324 = vadd.f32 %v1171, %v1323
    %1325 = vmatprep.mubr.f32.mxu0 0.0
    %v1326 = vand.u32 %v69, 4294901760
    %1327 = vmatmul.mubr.f32.gmra.mrb[0].mxu0 %v1326
    %v1328 = vpop.f32.mrb[0].mxu0
    %v1329 = vadd.f32 %v1176, %v1328
    %v1330 = vpop.f32.mrb[0].mxu0
    %v1331 = vadd.f32 %v1178, %v1330
    %1332 = vdwg.mxu0
    %1333 = vmatprep.subr.mxu0 0.0
    %v1334 = vand.u32 %v72, 4294901760
    %1335 = vmatpush1.msra.mxu0 %v1334
    %1336 = vmatprep.subr.mxu0 0.0
    %v1337 = vand.u32 %v75, 4294901760
    %1338 = vmatpush1.msra.mxu0 %v1337
    %1339 = vmatprep.subr.mxu0 0.0
    %v1340 = vand.u32 %v78, 4294901760
    %1341 = vmatpush1.msra.mxu0 %v1340
    %1342 = vmatprep.subr.mxu0 0.0
    %v1343 = vand.u32 %v81, 4294901760
    %1344 = vmatpush1.msra.mxu0 %v1343
    %1345 = vmatprep.subr.mxu0 0.0
    %v1346 = vand.u32 %v84, 4294901760
    %1347 = vmatpush1.msra.mxu0 %v1346
    %1348 = vmatprep.subr.mxu0 0.0
    %v1349 = vand.u32 %v87, 4294901760
    %1350 = vmatpush1.msra.mxu0 %v1349
    %1351 = vmatprep.subr.mxu0 0.0
    %v1352 = vand.u32 %v90, 4294901760
    %1353 = vmatpush1.msra.mxu0 %v1352
    %1354 = vmatprep.subr.mxu0 0.0
    %v1355 = vand.u32 %v93, 4294901760
    %1356 = vmatpush1.msra.mxu0 %v1355
    %1357 = vmatprep.subr.mxu0 0.0
    %v1358 = vand.u32 %v96, 4294901760
    %1359 = vmatpush1.msra.mxu0 %v1358
    %1360 = vmatprep.subr.mxu0 0.0
    %v1361 = vand.u32 %v99, 4294901760
    %1362 = vmatpush1.msra.mxu0 %v1361
    %1363 = vmatprep.subr.mxu0 0.0
    %v1364 = vand.u32 %v102, 4294901760
    %1365 = vmatpush1.msra.mxu0 %v1364
    %1366 = vmatprep.subr.mxu0 0.0
    %v1367 = vand.u32 %v105, 4294901760
    %1368 = vmatpush1.msra.mxu0 %v1367
    %1369 = vmatprep.subr.mxu0 0.0
    %v1370 = vand.u32 %v108, 4294901760
    %1371 = vmatpush1.msra.mxu0 %v1370
    %1372 = vmatprep.subr.mxu0 0.0
    %v1373 = vand.u32 %v111, 4294901760
    %1374 = vmatpush1.msra.mxu0 %v1373
    %1375 = vmatprep.subr.mxu0 0.0
    %v1376 = vand.u32 %v114, 4294901760
    %1377 = vmatpush1.msra.mxu0 %v1376
    %1378 = vmatprep.subr.mxu0 0.0
    %v1379 = vand.u32 %v117, 4294901760
    %1380 = vmatpush1.msra.mxu0 %v1379
    %1381 = vmatprep.subr.mxu0 0.0
    %1382 = vmatpush1.msra.mxu0 0.0
    %1383 = vmatprep.subr.mxu0 0.0
    %1384 = vmatpush1.msra.mxu0 0.0
    %1385 = vmatprep.subr.mxu0 0.0
    %1386 = vmatpush1.msra.mxu0 0.0
    %1387 = vmatprep.subr.mxu0 0.0
    %1388 = vmatpush1.msra.mxu0 0.0
    %1389 = vmatprep.subr.mxu0 0.0
    %1390 = vmatpush1.msra.mxu0 0.0
    %1391 = vmatprep.subr.mxu0 0.0
    %1392 = vmatpush1.msra.mxu0 0.0
    %1393 = vmatprep.subr.mxu0 0.0
    %1394 = vmatpush1.msra.mxu0 0.0
    %1395 = vmatprep.subr.mxu0 0.0
    %1396 = vmatpush1.msra.mxu0 0.0
    %1397 = vmatprep.subr.mxu0 0.0
    %1398 = vmatpush1.msra.mxu0 0.0
    %1399 = vmatprep.subr.mxu0 0.0
    %1400 = vmatpush1.msra.mxu0 0.0
    %1401 = vmatprep.subr.mxu0 0.0
    %1402 = vmatpush1.msra.mxu0 0.0
    %1403 = vmatprep.subr.mxu0 0.0
    %1404 = vmatpush1.msra.mxu0 0.0
    %1405 = vmatprep.subr.mxu0 0.0
    %1406 = vmatpush1.msra.mxu0 0.0
    %1407 = vmatprep.subr.mxu0 0.0
    %1408 = vmatpush1.msra.mxu0 0.0
    %1409 = vmatprep.subr.mxu0 0.0
    %1410 = vmatpush1.msra.mxu0 0.0
    %1411 = vmatprep.subr.mxu0 0.0
    %1412 = vmatpush1.msra.mxu0 0.0
    %1413 = vmatprep.mubr.f32.mxu0 0.0
    %v1414 = vand.u32 %v62, 4294901760
    %v1415 = vsub.f32 %v62, %v1414
    %v1416 = vand.u32 %v1415, 4294901760
    %v1417 = vsub.f32 %v1415, %v1416
    %v1418 = vand.u32 %v1417, 4294901760
    %1419 = vmatmul.mubr.f32.gmra.mrb[0].mxu0 %v1418
    %v1420 = vpop.f32.mrb[0].mxu0
    %v1421 = vadd.f32 %v131, %v1420
    %v1422 = vpop.f32.mrb[0].mxu0
    %1423 = vmatprep.mubr.f32.mxu0 0.0
    %v1424 = vand.u32 %v63, 4294901760
    %v1425 = vsub.f32 %v63, %v1424
    %v1426 = vand.u32 %v1425, 4294901760
    %v1427 = vsub.f32 %v1425, %v1426
    %v1428 = vand.u32 %v1427, 4294901760
    %1429 = vmatmul.mubr.f32.gmra.mrb[0].mxu0 %v1428
    %v1430 = vpop.f32.mrb[0].mxu0
    %v1431 = vadd.f32 %v131, %v1430
    %v1432 = vpop.f32.mrb[0].mxu0
    %1433 = vmatprep.mubr.f32.mxu0 0.0
    %v1434 = vand.u32 %v64, 4294901760
    %v1435 = vsub.f32 %v64, %v1434
    %v1436 = vand.u32 %v1435, 4294901760
    %v1437 = vsub.f32 %v1435, %v1436
    %v1438 = vand.u32 %v1437, 4294901760
    %1439 = vmatmul.mubr.f32.gmra.mrb[0].mxu0 %v1438
    %v1440 = vpop.f32.mrb[0].mxu0
    %v1441 = vadd.f32 %v131, %v1440
    %v1442 = vpop.f32.mrb[0].mxu0
    %1443 = vmatprep.mubr.f32.mxu0 0.0
    %v1444 = vand.u32 %v65, 4294901760
    %v1445 = vsub.f32 %v65, %v1444
    %v1446 = vand.u32 %v1445, 4294901760
    %v1447 = vsub.f32 %v1445, %v1446
    %v1448 = vand.u32 %v1447, 4294901760
    %1449 = vmatmul.mubr.f32.gmra.mrb[0].mxu0 %v1448
    %v1450 = vpop.f32.mrb[0].mxu0
    %v1451 = vadd.f32 %v131, %v1450
    %v1452 = vpop.f32.mrb[0].mxu0
    %1453 = vmatprep.mubr.f32.mxu0 0.0
    %v1454 = vand.u32 %v66, 4294901760
    %v1455 = vsub.f32 %v66, %v1454
    %v1456 = vand.u32 %v1455, 4294901760
    %v1457 = vsub.f32 %v1455, %v1456
    %v1458 = vand.u32 %v1457, 4294901760
    %1459 = vmatmul.mubr.f32.gmra.mrb[0].mxu0 %v1458
    %v1460 = vpop.f32.mrb[0].mxu0
    %v1461 = vadd.f32 %v131, %v1460
    %v1462 = vpop.f32.mrb[0].mxu0
    %1463 = vmatprep.mubr.f32.mxu0 0.0
    %v1464 = vand.u32 %v67, 4294901760
    %v1465 = vsub.f32 %v67, %v1464
    %v1466 = vand.u32 %v1465, 4294901760
    %v1467 = vsub.f32 %v1465, %v1466
    %v1468 = vand.u32 %v1467, 4294901760
    %1469 = vmatmul.mubr.f32.gmra.mrb[0].mxu0 %v1468
    %v1470 = vpop.f32.mrb[0].mxu0
    %v1471 = vadd.f32 %v131, %v1470
    %v1472 = vpop.f32.mrb[0].mxu0
    %1473 = vmatprep.mubr.f32.mxu0 0.0
    %v1474 = vand.u32 %v68, 4294901760
    %v1475 = vsub.f32 %v68, %v1474
    %v1476 = vand.u32 %v1475, 4294901760
    %v1477 = vsub.f32 %v1475, %v1476
    %v1478 = vand.u32 %v1477, 4294901760
    %1479 = vmatmul.mubr.f32.gmra.mrb[0].mxu0 %v1478
    %v1480 = vpop.f32.mrb[0].mxu0
    %v1481 = vadd.f32 %v131, %v1480
    %v1482 = vpop.f32.mrb[0].mxu0
    %1483 = vmatprep.mubr.f32.mxu0 0.0
    %v1484 = vand.u32 %v69, 4294901760
    %v1485 = vsub.f32 %v69, %v1484
    %v1486 = vand.u32 %v1485, 4294901760
    %v1487 = vsub.f32 %v1485, %v1486
    %v1488 = vand.u32 %v1487, 4294901760
    %1489 = vmatmul.mubr.f32.gmra.mrb[0].mxu0 %v1488
    %v1490 = vpop.f32.mrb[0].mxu0
    %v1491 = vadd.f32 %v131, %v1490
    %v1492 = vpop.f32.mrb[0].mxu0
    %1493 = vdwg.mxu0
    %1494 = vmatprep.subr.mxu0 0.0
    %v1495 = vand.u32 %v72, 4294901760
    %v1496 = vsub.f32 %v72, %v1495
    %v1497 = vand.u32 %v1496, 4294901760
    %v1498 = vsub.f32 %v1496, %v1497
    %v1499 = vand.u32 %v1498, 4294901760
    %1500 = vmatpush1.msra.mxu0 %v1499
    %1501 = vmatprep.subr.mxu0 0.0
    %v1502 = vand.u32 %v75, 4294901760
    %v1503 = vsub.f32 %v75, %v1502
    %v1504 = vand.u32 %v1503, 4294901760
    %v1505 = vsub.f32 %v1503, %v1504
    %v1506 = vand.u32 %v1505, 4294901760
    %1507 = vmatpush1.msra.mxu0 %v1506
    %1508 = vmatprep.subr.mxu0 0.0
    %v1509 = vand.u32 %v78, 4294901760
    %v1510 = vsub.f32 %v78, %v1509
    %v1511 = vand.u32 %v1510, 4294901760
    %v1512 = vsub.f32 %v1510, %v1511
    %v1513 = vand.u32 %v1512, 4294901760
    %1514 = vmatpush1.msra.mxu0 %v1513
    %1515 = vmatprep.subr.mxu0 0.0
    %v1516 = vand.u32 %v81, 4294901760
    %v1517 = vsub.f32 %v81, %v1516
    %v1518 = vand.u32 %v1517, 4294901760
    %v1519 = vsub.f32 %v1517, %v1518
    %v1520 = vand.u32 %v1519, 4294901760
    %1521 = vmatpush1.msra.mxu0 %v1520
    %1522 = vmatprep.subr.mxu0 0.0
    %v1523 = vand.u32 %v84, 4294901760
    %v1524 = vsub.f32 %v84, %v1523
    %v1525 = vand.u32 %v1524, 4294901760
    %v1526 = vsub.f32 %v1524, %v1525
    %v1527 = vand.u32 %v1526, 4294901760
    %1528 = vmatpush1.msra.mxu0 %v1527
    %1529 = vmatprep.subr.mxu0 0.0
    %v1530 = vand.u32 %v87, 4294901760
    %v1531 = vsub.f32 %v87, %v1530
    %v1532 = vand.u32 %v1531, 4294901760
    %v1533 = vsub.f32 %v1531, %v1532
    %v1534 = vand.u32 %v1533, 4294901760
    %1535 = vmatpush1.msra.mxu0 %v1534
    %1536 = vmatprep.subr.mxu0 0.0
    %v1537 = vand.u32 %v90, 4294901760
    %v1538 = vsub.f32 %v90, %v1537
    %v1539 = vand.u32 %v1538, 4294901760
    %v1540 = vsub.f32 %v1538, %v1539
    %v1541 = vand.u32 %v1540, 4294901760
    %1542 = vmatpush1.msra.mxu0 %v1541
    %1543 = vmatprep.subr.mxu0 0.0
    %v1544 = vand.u32 %v93, 4294901760
    %v1545 = vsub.f32 %v93, %v1544
    %v1546 = vand.u32 %v1545, 4294901760
    %v1547 = vsub.f32 %v1545, %v1546
    %v1548 = vand.u32 %v1547, 4294901760
    %1549 = vmatpush1.msra.mxu0 %v1548
    %1550 = vmatprep.subr.mxu0 0.0
    %v1551 = vand.u32 %v96, 4294901760
    %v1552 = vsub.f32 %v96, %v1551
    %v1553 = vand.u32 %v1552, 4294901760
    %v1554 = vsub.f32 %v1552, %v1553
    %v1555 = vand.u32 %v1554, 4294901760
    %1556 = vmatpush1.msra.mxu0 %v1555
    %1557 = vmatprep.subr.mxu0 0.0
    %v1558 = vand.u32 %v99, 4294901760
    %v1559 = vsub.f32 %v99, %v1558
    %v1560 = vand.u32 %v1559, 4294901760
    %v1561 = vsub.f32 %v1559, %v1560
    %v1562 = vand.u32 %v1561, 4294901760
    %1563 = vmatpush1.msra.mxu0 %v1562
    %1564 = vmatprep.subr.mxu0 0.0
    %v1565 = vand.u32 %v102, 4294901760
    %v1566 = vsub.f32 %v102, %v1565
    %v1567 = vand.u32 %v1566, 4294901760
    %v1568 = vsub.f32 %v1566, %v1567
    %v1569 = vand.u32 %v1568, 4294901760
    %1570 = vmatpush1.msra.mxu0 %v1569
    %1571 = vmatprep.subr.mxu0 0.0
    %v1572 = vand.u32 %v105, 4294901760
    %v1573 = vsub.f32 %v105, %v1572
    %v1574 = vand.u32 %v1573, 4294901760
    %v1575 = vsub.f32 %v1573, %v1574
    %v1576 = vand.u32 %v1575, 4294901760
    %1577 = vmatpush1.msra.mxu0 %v1576
    %1578 = vmatprep.subr.mxu0 0.0
    %v1579 = vand.u32 %v108, 4294901760
    %v1580 = vsub.f32 %v108, %v1579
    %v1581 = vand.u32 %v1580, 4294901760
    %v1582 = vsub.f32 %v1580, %v1581
    %v1583 = vand.u32 %v1582, 4294901760
    %1584 = vmatpush1.msra.mxu0 %v1583
    %1585 = vmatprep.subr.mxu0 0.0
    %v1586 = vand.u32 %v111, 4294901760
    %v1587 = vsub.f32 %v111, %v1586
    %v1588 = vand.u32 %v1587, 4294901760
    %v1589 = vsub.f32 %v1587, %v1588
    %v1590 = vand.u32 %v1589, 4294901760
    %1591 = vmatpush1.msra.mxu0 %v1590
    %1592 = vmatprep.subr.mxu0 0.0
    %v1593 = vand.u32 %v114, 4294901760
    %v1594 = vsub.f32 %v114, %v1593
    %v1595 = vand.u32 %v1594, 4294901760
    %v1596 = vsub.f32 %v1594, %v1595
    %v1597 = vand.u32 %v1596, 4294901760
    %1598 = vmatpush1.msra.mxu0 %v1597
    %1599 = vmatprep.subr.mxu0 0.0
    %v1600 = vand.u32 %v117, 4294901760
    %v1601 = vsub.f32 %v117, %v1600
    %v1602 = vand.u32 %v1601, 4294901760
    %v1603 = vsub.f32 %v1601, %v1602
    %v1604 = vand.u32 %v1603, 4294901760
    %1605 = vmatpush1.msra.mxu0 %v1604
    %1606 = vmatprep.subr.mxu0 0.0
    %1607 = vmatpush1.msra.mxu0 0.0
    %1608 = vmatprep.subr.mxu0 0.0
    %1609 = vmatpush1.msra.mxu0 0.0
    %1610 = vmatprep.subr.mxu0 0.0
    %1611 = vmatpush1.msra.mxu0 0.0
    %1612 = vmatprep.subr.mxu0 0.0
    %1613 = vmatpush1.msra.mxu0 0.0
    %1614 = vmatprep.subr.mxu0 0.0
    %1615 = vmatpush1.msra.mxu0 0.0
    %1616 = vmatprep.subr.mxu0 0.0
    %1617 = vmatpush1.msra.mxu0 0.0
    %1618 = vmatprep.subr.mxu0 0.0
    %1619 = vmatpush1.msra.mxu0 0.0
    %1620 = vmatprep.subr.mxu0 0.0
    %1621 = vmatpush1.msra.mxu0 0.0
    %1622 = vmatprep.subr.mxu0 0.0
    %1623 = vmatpush1.msra.mxu0 0.0
    %1624 = vmatprep.subr.mxu0 0.0
    %1625 = vmatpush1.msra.mxu0 0.0
    %1626 = vmatprep.subr.mxu0 0.0
    %1627 = vmatpush1.msra.mxu0 0.0
    %1628 = vmatprep.subr.mxu0 0.0
    %1629 = vmatpush1.msra.mxu0 0.0
    %1630 = vmatprep.subr.mxu0 0.0
    %1631 = vmatpush1.msra.mxu0 0.0
    %1632 = vmatprep.subr.mxu0 0.0
    %1633 = vmatpush1.msra.mxu0 0.0
    %1634 = vmatprep.subr.mxu0 0.0
    %1635 = vmatpush1.msra.mxu0 0.0
    %1636 = vmatprep.subr.mxu0 0.0
    %1637 = vmatpush1.msra.mxu0 0.0
    %1638 = vmatprep.mubr.f32.mxu0 0.0
    %v1639 = vand.u32 %v62, 4294901760
    %1640 = vmatmul.mubr.f32.gmra.mrb[0].mxu0 %v1639
    %v1641 = vpop.f32.mrb[0].mxu0
    %v1642 = vadd.f32 %v1421, %v1641
    %v1643 = vpop.f32.mrb[0].mxu0
    %1644 = vmatprep.mubr.f32.mxu0 0.0
    %v1645 = vand.u32 %v63, 4294901760
    %1646 = vmatmul.mubr.f32.gmra.mrb[0].mxu0 %v1645
    %v1647 = vpop.f32.mrb[0].mxu0
    %v1648 = vadd.f32 %v1431, %v1647
    %v1649 = vpop.f32.mrb[0].mxu0
    %1650 = vmatprep.mubr.f32.mxu0 0.0
    %v1651 = vand.u32 %v64, 4294901760
    %1652 = vmatmul.mubr.f32.gmra.mrb[0].mxu0 %v1651
    %v1653 = vpop.f32.mrb[0].mxu0
    %v1654 = vadd.f32 %v1441, %v1653
    %v1655 = vpop.f32.mrb[0].mxu0
    %1656 = vmatprep.mubr.f32.mxu0 0.0
    %v1657 = vand.u32 %v65, 4294901760
    %1658 = vmatmul.mubr.f32.gmra.mrb[0].mxu0 %v1657
    %v1659 = vpop.f32.mrb[0].mxu0
    %v1660 = vadd.f32 %v1451, %v1659
    %v1661 = vpop.f32.mrb[0].mxu0
    %1662 = vmatprep.mubr.f32.mxu0 0.0
    %v1663 = vand.u32 %v66, 4294901760
    %1664 = vmatmul.mubr.f32.gmra.mrb[0].mxu0 %v1663
    %v1665 = vpop.f32.mrb[0].mxu0
    %v1666 = vadd.f32 %v1461, %v1665
    %v1667 = vpop.f32.mrb[0].mxu0
    %1668 = vmatprep.mubr.f32.mxu0 0.0
    %v1669 = vand.u32 %v67, 4294901760
    %1670 = vmatmul.mubr.f32.gmra.mrb[0].mxu0 %v1669
    %v1671 = vpop.f32.mrb[0].mxu0
    %v1672 = vadd.f32 %v1471, %v1671
    %v1673 = vpop.f32.mrb[0].mxu0
    %1674 = vmatprep.mubr.f32.mxu0 0.0
    %v1675 = vand.u32 %v68, 4294901760
    %1676 = vmatmul.mubr.f32.gmra.mrb[0].mxu0 %v1675
    %v1677 = vpop.f32.mrb[0].mxu0
    %v1678 = vadd.f32 %v1481, %v1677
    %v1679 = vpop.f32.mrb[0].mxu0
    %1680 = vmatprep.mubr.f32.mxu0 0.0
    %v1681 = vand.u32 %v69, 4294901760
    %1682 = vmatmul.mubr.f32.gmra.mrb[0].mxu0 %v1681
    %v1683 = vpop.f32.mrb[0].mxu0
    %v1684 = vadd.f32 %v1491, %v1683
    %v1685 = vpop.f32.mrb[0].mxu0
    %1686 = vdwg.mxu0
    %1687 = vmatprep.subr.mxu0 0.0
    %v1688 = vand.u32 %v72, 4294901760
    %v1689 = vsub.f32 %v72, %v1688
    %1690 = vmatpush1.msra.mxu0 %v1689
    %1691 = vmatprep.subr.mxu0 0.0
    %v1692 = vand.u32 %v75, 4294901760
    %v1693 = vsub.f32 %v75, %v1692
    %1694 = vmatpush1.msra.mxu0 %v1693
    %1695 = vmatprep.subr.mxu0 0.0
    %v1696 = vand.u32 %v78, 4294901760
    %v1697 = vsub.f32 %v78, %v1696
    %1698 = vmatpush1.msra.mxu0 %v1697
    %1699 = vmatprep.subr.mxu0 0.0
    %v1700 = vand.u32 %v81, 4294901760
    %v1701 = vsub.f32 %v81, %v1700
    %1702 = vmatpush1.msra.mxu0 %v1701
    %1703 = vmatprep.subr.mxu0 0.0
    %v1704 = vand.u32 %v84, 4294901760
    %v1705 = vsub.f32 %v84, %v1704
    %1706 = vmatpush1.msra.mxu0 %v1705
    %1707 = vmatprep.subr.mxu0 0.0
    %v1708 = vand.u32 %v87, 4294901760
    %v1709 = vsub.f32 %v87, %v1708
    %1710 = vmatpush1.msra.mxu0 %v1709
    %1711 = vmatprep.subr.mxu0 0.0
    %v1712 = vand.u32 %v90, 4294901760
    %v1713 = vsub.f32 %v90, %v1712
    %1714 = vmatpush1.msra.mxu0 %v1713
    %1715 = vmatprep.subr.mxu0 0.0
    %v1716 = vand.u32 %v93, 4294901760
    %v1717 = vsub.f32 %v93, %v1716
    %1718 = vmatpush1.msra.mxu0 %v1717
    %1719 = vmatprep.subr.mxu0 0.0
    %v1720 = vand.u32 %v96, 4294901760
    %v1721 = vsub.f32 %v96, %v1720
    %1722 = vmatpush1.msra.mxu0 %v1721
    %1723 = vmatprep.subr.mxu0 0.0
    %v1724 = vand.u32 %v99, 4294901760
    %v1725 = vsub.f32 %v99, %v1724
    %1726 = vmatpush1.msra.mxu0 %v1725
    %1727 = vmatprep.subr.mxu0 0.0
    %v1728 = vand.u32 %v102, 4294901760
    %v1729 = vsub.f32 %v102, %v1728
    %1730 = vmatpush1.msra.mxu0 %v1729
    %1731 = vmatprep.subr.mxu0 0.0
    %v1732 = vand.u32 %v105, 4294901760
    %v1733 = vsub.f32 %v105, %v1732
    %1734 = vmatpush1.msra.mxu0 %v1733
    %1735 = vmatprep.subr.mxu0 0.0
    %v1736 = vand.u32 %v108, 4294901760
    %v1737 = vsub.f32 %v108, %v1736
    %1738 = vmatpush1.msra.mxu0 %v1737
    %1739 = vmatprep.subr.mxu0 0.0
    %v1740 = vand.u32 %v111, 4294901760
    %v1741 = vsub.f32 %v111, %v1740
    %1742 = vmatpush1.msra.mxu0 %v1741
    %1743 = vmatprep.subr.mxu0 0.0
    %v1744 = vand.u32 %v114, 4294901760
    %v1745 = vsub.f32 %v114, %v1744
    %1746 = vmatpush1.msra.mxu0 %v1745
    %1747 = vmatprep.subr.mxu0 0.0
    %v1748 = vand.u32 %v117, 4294901760
    %v1749 = vsub.f32 %v117, %v1748
    %1750 = vmatpush1.msra.mxu0 %v1749
    %1751 = vmatprep.subr.mxu0 0.0
    %1752 = vmatpush1.msra.mxu0 0.0
    %1753 = vmatprep.subr.mxu0 0.0
    %1754 = vmatpush1.msra.mxu0 0.0
    %1755 = vmatprep.subr.mxu0 0.0
    %1756 = vmatpush1.msra.mxu0 0.0
    %1757 = vmatprep.subr.mxu0 0.0
    %1758 = vmatpush1.msra.mxu0 0.0
    %1759 = vmatprep.subr.mxu0 0.0
    %1760 = vmatpush1.msra.mxu0 0.0
    %1761 = vmatprep.subr.mxu0 0.0
    %1762 = vmatpush1.msra.mxu0 0.0
    %1763 = vmatprep.subr.mxu0 0.0
    %1764 = vmatpush1.msra.mxu0 0.0
    %1765 = vmatprep.subr.mxu0 0.0
    %1766 = vmatpush1.msra.mxu0 0.0
    %1767 = vmatprep.subr.mxu0 0.0
    %1768 = vmatpush1.msra.mxu0 0.0
    %1769 = vmatprep.subr.mxu0 0.0
    %1770 = vmatpush1.msra.mxu0 0.0
    %1771 = vmatprep.subr.mxu0 0.0
    %1772 = vmatpush1.msra.mxu0 0.0
    %1773 = vmatprep.subr.mxu0 0.0
    %1774 = vmatpush1.msra.mxu0 0.0
    %1775 = vmatprep.subr.mxu0 0.0
    %1776 = vmatpush1.msra.mxu0 0.0
    %1777 = vmatprep.subr.mxu0 0.0
    %1778 = vmatpush1.msra.mxu0 0.0
    %1779 = vmatprep.subr.mxu0 0.0
    %1780 = vmatpush1.msra.mxu0 0.0
    %1781 = vmatprep.subr.mxu0 0.0
    %1782 = vmatpush1.msra.mxu0 0.0
    %1783 = vmatprep.mubr.f32.mxu0 0.0
    %v1784 = vand.u32 %v62, 4294901760
    %v1785 = vsub.f32 %v62, %v1784
    %1786 = vmatmul.mubr.f32.gmra.mrb[0].mxu0 %v1785
    %v1787 = vpop.f32.mrb[0].mxu0
    %v1788 = vadd.f32 %v1642, %v1787
    %v1789 = vpop.f32.mrb[0].mxu0
    %1790 = vmatprep.mubr.f32.mxu0 0.0
    %v1791 = vand.u32 %v63, 4294901760
    %v1792 = vsub.f32 %v63, %v1791
    %1793 = vmatmul.mubr.f32.gmra.mrb[0].mxu0 %v1792
    %v1794 = vpop.f32.mrb[0].mxu0
    %v1795 = vadd.f32 %v1648, %v1794
    %v1796 = vpop.f32.mrb[0].mxu0
    %1797 = vmatprep.mubr.f32.mxu0 0.0
    %v1798 = vand.u32 %v64, 4294901760
    %v1799 = vsub.f32 %v64, %v1798
    %1800 = vmatmul.mubr.f32.gmra.mrb[0].mxu0 %v1799
    %v1801 = vpop.f32.mrb[0].mxu0
    %v1802 = vadd.f32 %v1654, %v1801
    %v1803 = vpop.f32.mrb[0].mxu0
    %1804 = vmatprep.mubr.f32.mxu0 0.0
    %v1805 = vand.u32 %v65, 4294901760
    %v1806 = vsub.f32 %v65, %v1805
    %1807 = vmatmul.mubr.f32.gmra.mrb[0].mxu0 %v1806
    %v1808 = vpop.f32.mrb[0].mxu0
    %v1809 = vadd.f32 %v1660, %v1808
    %v1810 = vpop.f32.mrb[0].mxu0
    %1811 = vmatprep.mubr.f32.mxu0 0.0
    %v1812 = vand.u32 %v66, 4294901760
    %v1813 = vsub.f32 %v66, %v1812
    %1814 = vmatmul.mubr.f32.gmra.mrb[0].mxu0 %v1813
    %v1815 = vpop.f32.mrb[0].mxu0
    %v1816 = vadd.f32 %v1666, %v1815
    %v1817 = vpop.f32.mrb[0].mxu0
    %1818 = vmatprep.mubr.f32.mxu0 0.0
    %v1819 = vand.u32 %v67, 4294901760
    %v1820 = vsub.f32 %v67, %v1819
    %1821 = vmatmul.mubr.f32.gmra.mrb[0].mxu0 %v1820
    %v1822 = vpop.f32.mrb[0].mxu0
    %v1823 = vadd.f32 %v1672, %v1822
    %v1824 = vpop.f32.mrb[0].mxu0
    %1825 = vmatprep.mubr.f32.mxu0 0.0
    %v1826 = vand.u32 %v68, 4294901760
    %v1827 = vsub.f32 %v68, %v1826
    %1828 = vmatmul.mubr.f32.gmra.mrb[0].mxu0 %v1827
    %v1829 = vpop.f32.mrb[0].mxu0
    %v1830 = vadd.f32 %v1678, %v1829
    %v1831 = vpop.f32.mrb[0].mxu0
    %1832 = vmatprep.mubr.f32.mxu0 0.0
    %v1833 = vand.u32 %v69, 4294901760
    %v1834 = vsub.f32 %v69, %v1833
    %1835 = vmatmul.mubr.f32.gmra.mrb[0].mxu0 %v1834
    %v1836 = vpop.f32.mrb[0].mxu0
    %v1837 = vadd.f32 %v1684, %v1836
    %v1838 = vpop.f32.mrb[0].mxu0
    %1839 = vdwg.mxu0
    %1840 = vmatprep.subr.mxu0 0.0
    %v1841 = vand.u32 %v72, 4294901760
    %1842 = vmatpush1.msra.mxu0 %v1841
    %1843 = vmatprep.subr.mxu0 0.0
    %v1844 = vand.u32 %v75, 4294901760
    %1845 = vmatpush1.msra.mxu0 %v1844
    %1846 = vmatprep.subr.mxu0 0.0
    %v1847 = vand.u32 %v78, 4294901760
    %1848 = vmatpush1.msra.mxu0 %v1847
    %1849 = vmatprep.subr.mxu0 0.0
    %v1850 = vand.u32 %v81, 4294901760
    %1851 = vmatpush1.msra.mxu0 %v1850
    %1852 = vmatprep.subr.mxu0 0.0
    %v1853 = vand.u32 %v84, 4294901760
    %1854 = vmatpush1.msra.mxu0 %v1853
    %1855 = vmatprep.subr.mxu0 0.0
    %v1856 = vand.u32 %v87, 4294901760
    %1857 = vmatpush1.msra.mxu0 %v1856
    %1858 = vmatprep.subr.mxu0 0.0
    %v1859 = vand.u32 %v90, 4294901760
    %1860 = vmatpush1.msra.mxu0 %v1859
    %1861 = vmatprep.subr.mxu0 0.0
    %v1862 = vand.u32 %v93, 4294901760
    %1863 = vmatpush1.msra.mxu0 %v1862
    %1864 = vmatprep.subr.mxu0 0.0
    %v1865 = vand.u32 %v96, 4294901760
    %1866 = vmatpush1.msra.mxu0 %v1865
    %1867 = vmatprep.subr.mxu0 0.0
    %v1868 = vand.u32 %v99, 4294901760
    %1869 = vmatpush1.msra.mxu0 %v1868
    %1870 = vmatprep.subr.mxu0 0.0
    %v1871 = vand.u32 %v102, 4294901760
    %1872 = vmatpush1.msra.mxu0 %v1871
    %1873 = vmatprep.subr.mxu0 0.0
    %v1874 = vand.u32 %v105, 4294901760
    %1875 = vmatpush1.msra.mxu0 %v1874
    %1876 = vmatprep.subr.mxu0 0.0
    %v1877 = vand.u32 %v108, 4294901760
    %1878 = vmatpush1.msra.mxu0 %v1877
    %1879 = vmatprep.subr.mxu0 0.0
    %v1880 = vand.u32 %v111, 4294901760
    %1881 = vmatpush1.msra.mxu0 %v1880
    %1882 = vmatprep.subr.mxu0 0.0
    %v1883 = vand.u32 %v114, 4294901760
    %1884 = vmatpush1.msra.mxu0 %v1883
    %1885 = vmatprep.subr.mxu0 0.0
    %v1886 = vand.u32 %v117, 4294901760
    %1887 = vmatpush1.msra.mxu0 %v1886
    %1888 = vmatprep.subr.mxu0 0.0
    %1889 = vmatpush1.msra.mxu0 0.0
    %1890 = vmatprep.subr.mxu0 0.0
    %1891 = vmatpush1.msra.mxu0 0.0
    %1892 = vmatprep.subr.mxu0 0.0
    %1893 = vmatpush1.msra.mxu0 0.0
    %1894 = vmatprep.subr.mxu0 0.0
    %1895 = vmatpush1.msra.mxu0 0.0
    %1896 = vmatprep.subr.mxu0 0.0
    %1897 = vmatpush1.msra.mxu0 0.0
    %1898 = vmatprep.subr.mxu0 0.0
    %1899 = vmatpush1.msra.mxu0 0.0
    %1900 = vmatprep.subr.mxu0 0.0
    %1901 = vmatpush1.msra.mxu0 0.0
    %1902 = vmatprep.subr.mxu0 0.0
    %1903 = vmatpush1.msra.mxu0 0.0
    %1904 = vmatprep.subr.mxu0 0.0
    %1905 = vmatpush1.msra.mxu0 0.0
    %1906 = vmatprep.subr.mxu0 0.0
    %1907 = vmatpush1.msra.mxu0 0.0
    %1908 = vmatprep.subr.mxu0 0.0
    %1909 = vmatpush1.msra.mxu0 0.0
    %1910 = vmatprep.subr.mxu0 0.0
    %1911 = vmatpush1.msra.mxu0 0.0
    %1912 = vmatprep.subr.mxu0 0.0
    %1913 = vmatpush1.msra.mxu0 0.0
    %1914 = vmatprep.subr.mxu0 0.0
    %1915 = vmatpush1.msra.mxu0 0.0
    %1916 = vmatprep.subr.mxu0 0.0
    %1917 = vmatpush1.msra.mxu0 0.0
    %1918 = vmatprep.subr.mxu0 0.0
    %1919 = vmatpush1.msra.mxu0 0.0
    %1920 = vmatprep.mubr.f32.mxu0 0.0
    %v1921 = vand.u32 %v62, 4294901760
    %v1922 = vsub.f32 %v62, %v1921
    %v1923 = vand.u32 %v1922, 4294901760
    %1924 = vmatmul.mubr.f32.gmra.mrb[0].mxu0 %v1923
    %v1925 = vpop.f32.mrb[0].mxu0
    %v1926 = vadd.f32 %v1788, %v1925
    %v1927 = vpop.f32.mrb[0].mxu0
    %1928 = vmatprep.mubr.f32.mxu0 0.0
    %v1929 = vand.u32 %v63, 4294901760
    %v1930 = vsub.f32 %v63, %v1929
    %v1931 = vand.u32 %v1930, 4294901760
    %1932 = vmatmul.mubr.f32.gmra.mrb[0].mxu0 %v1931
    %v1933 = vpop.f32.mrb[0].mxu0
    %v1934 = vadd.f32 %v1795, %v1933
    %v1935 = vpop.f32.mrb[0].mxu0
    %1936 = vmatprep.mubr.f32.mxu0 0.0
    %v1937 = vand.u32 %v64, 4294901760
    %v1938 = vsub.f32 %v64, %v1937
    %v1939 = vand.u32 %v1938, 4294901760
    %1940 = vmatmul.mubr.f32.gmra.mrb[0].mxu0 %v1939
    %v1941 = vpop.f32.mrb[0].mxu0
    %v1942 = vadd.f32 %v1802, %v1941
    %v1943 = vpop.f32.mrb[0].mxu0
    %1944 = vmatprep.mubr.f32.mxu0 0.0
    %v1945 = vand.u32 %v65, 4294901760
    %v1946 = vsub.f32 %v65, %v1945
    %v1947 = vand.u32 %v1946, 4294901760
    %1948 = vmatmul.mubr.f32.gmra.mrb[0].mxu0 %v1947
    %v1949 = vpop.f32.mrb[0].mxu0
    %v1950 = vadd.f32 %v1809, %v1949
    %v1951 = vpop.f32.mrb[0].mxu0
    %1952 = vmatprep.mubr.f32.mxu0 0.0
    %v1953 = vand.u32 %v66, 4294901760
    %v1954 = vsub.f32 %v66, %v1953
    %v1955 = vand.u32 %v1954, 4294901760
    %1956 = vmatmul.mubr.f32.gmra.mrb[0].mxu0 %v1955
    %v1957 = vpop.f32.mrb[0].mxu0
    %v1958 = vadd.f32 %v1816, %v1957
    %v1959 = vpop.f32.mrb[0].mxu0
    %1960 = vmatprep.mubr.f32.mxu0 0.0
    %v1961 = vand.u32 %v67, 4294901760
    %v1962 = vsub.f32 %v67, %v1961
    %v1963 = vand.u32 %v1962, 4294901760
    %1964 = vmatmul.mubr.f32.gmra.mrb[0].mxu0 %v1963
    %v1965 = vpop.f32.mrb[0].mxu0
    %v1966 = vadd.f32 %v1823, %v1965
    %v1967 = vpop.f32.mrb[0].mxu0
    %1968 = vmatprep.mubr.f32.mxu0 0.0
    %v1969 = vand.u32 %v68, 4294901760
    %v1970 = vsub.f32 %v68, %v1969
    %v1971 = vand.u32 %v1970, 4294901760
    %1972 = vmatmul.mubr.f32.gmra.mrb[0].mxu0 %v1971
    %v1973 = vpop.f32.mrb[0].mxu0
    %v1974 = vadd.f32 %v1830, %v1973
    %v1975 = vpop.f32.mrb[0].mxu0
    %1976 = vmatprep.mubr.f32.mxu0 0.0
    %v1977 = vand.u32 %v69, 4294901760
    %v1978 = vsub.f32 %v69, %v1977
    %v1979 = vand.u32 %v1978, 4294901760
    %1980 = vmatmul.mubr.f32.gmra.mrb[0].mxu0 %v1979
    %v1981 = vpop.f32.mrb[0].mxu0
    %v1982 = vadd.f32 %v1837, %v1981
    %v1983 = vpop.f32.mrb[0].mxu0
    %1984 = vdwg.mxu0
    %1985 = vmatprep.subr.mxu0 0.0
    %v1986 = vand.u32 %v72, 4294901760
    %v1987 = vsub.f32 %v72, %v1986
    %v1988 = vand.u32 %v1987, 4294901760
    %1989 = vmatpush1.msra.mxu0 %v1988
    %1990 = vmatprep.subr.mxu0 0.0
    %v1991 = vand.u32 %v75, 4294901760
    %v1992 = vsub.f32 %v75, %v1991
    %v1993 = vand.u32 %v1992, 4294901760
    %1994 = vmatpush1.msra.mxu0 %v1993
    %1995 = vmatprep.subr.mxu0 0.0
    %v1996 = vand.u32 %v78, 4294901760
    %v1997 = vsub.f32 %v78, %v1996
    %v1998 = vand.u32 %v1997, 4294901760
    %1999 = vmatpush1.msra.mxu0 %v1998
    %2000 = vmatprep.subr.mxu0 0.0
    %v2001 = vand.u32 %v81, 4294901760
    %v2002 = vsub.f32 %v81, %v2001
    %v2003 = vand.u32 %v2002, 4294901760
    %2004 = vmatpush1.msra.mxu0 %v2003
    %2005 = vmatprep.subr.mxu0 0.0
    %v2006 = vand.u32 %v84, 4294901760
    %v2007 = vsub.f32 %v84, %v2006
    %v2008 = vand.u32 %v2007, 4294901760
    %2009 = vmatpush1.msra.mxu0 %v2008
    %2010 = vmatprep.subr.mxu0 0.0
    %v2011 = vand.u32 %v87, 4294901760
    %v2012 = vsub.f32 %v87, %v2011
    %v2013 = vand.u32 %v2012, 4294901760
    %2014 = vmatpush1.msra.mxu0 %v2013
    %2015 = vmatprep.subr.mxu0 0.0
    %v2016 = vand.u32 %v90, 4294901760
    %v2017 = vsub.f32 %v90, %v2016
    %v2018 = vand.u32 %v2017, 4294901760
    %2019 = vmatpush1.msra.mxu0 %v2018
    %2020 = vmatprep.subr.mxu0 0.0
    %v2021 = vand.u32 %v93, 4294901760
    %v2022 = vsub.f32 %v93, %v2021
    %v2023 = vand.u32 %v2022, 4294901760
    %2024 = vmatpush1.msra.mxu0 %v2023
    %2025 = vmatprep.subr.mxu0 0.0
    %v2026 = vand.u32 %v96, 4294901760
    %v2027 = vsub.f32 %v96, %v2026
    %v2028 = vand.u32 %v2027, 4294901760
    %2029 = vmatpush1.msra.mxu0 %v2028
    %2030 = vmatprep.subr.mxu0 0.0
    %v2031 = vand.u32 %v99, 4294901760
    %v2032 = vsub.f32 %v99, %v2031
    %v2033 = vand.u32 %v2032, 4294901760
    %2034 = vmatpush1.msra.mxu0 %v2033
    %2035 = vmatprep.subr.mxu0 0.0
    %v2036 = vand.u32 %v102, 4294901760
    %v2037 = vsub.f32 %v102, %v2036
    %v2038 = vand.u32 %v2037, 4294901760
    %2039 = vmatpush1.msra.mxu0 %v2038
    %2040 = vmatprep.subr.mxu0 0.0
    %v2041 = vand.u32 %v105, 4294901760
    %v2042 = vsub.f32 %v105, %v2041
    %v2043 = vand.u32 %v2042, 4294901760
    %2044 = vmatpush1.msra.mxu0 %v2043
    %2045 = vmatprep.subr.mxu0 0.0
    %v2046 = vand.u32 %v108, 4294901760
    %v2047 = vsub.f32 %v108, %v2046
    %v2048 = vand.u32 %v2047, 4294901760
    %2049 = vmatpush1.msra.mxu0 %v2048
    %2050 = vmatprep.subr.mxu0 0.0
    %v2051 = vand.u32 %v111, 4294901760
    %v2052 = vsub.f32 %v111, %v2051
    %v2053 = vand.u32 %v2052, 4294901760
    %2054 = vmatpush1.msra.mxu0 %v2053
    %2055 = vmatprep.subr.mxu0 0.0
    %v2056 = vand.u32 %v114, 4294901760
    %v2057 = vsub.f32 %v114, %v2056
    %v2058 = vand.u32 %v2057, 4294901760
    %2059 = vmatpush1.msra.mxu0 %v2058
    %2060 = vmatprep.subr.mxu0 0.0
    %v2061 = vand.u32 %v117, 4294901760
    %v2062 = vsub.f32 %v117, %v2061
    %v2063 = vand.u32 %v2062, 4294901760
    %2064 = vmatpush1.msra.mxu0 %v2063
    %2065 = vmatprep.subr.mxu0 0.0
    %2066 = vmatpush1.msra.mxu0 0.0
    %2067 = vmatprep.subr.mxu0 0.0
    %2068 = vmatpush1.msra.mxu0 0.0
    %2069 = vmatprep.subr.mxu0 0.0
    %2070 = vmatpush1.msra.mxu0 0.0
    %2071 = vmatprep.subr.mxu0 0.0
    %2072 = vmatpush1.msra.mxu0 0.0
    %2073 = vmatprep.subr.mxu0 0.0
    %2074 = vmatpush1.msra.mxu0 0.0
    %2075 = vmatprep.subr.mxu0 0.0
    %2076 = vmatpush1.msra.mxu0 0.0
    %2077 = vmatprep.subr.mxu0 0.0
    %2078 = vmatpush1.msra.mxu0 0.0
    %2079 = vmatprep.subr.mxu0 0.0
    %2080 = vmatpush1.msra.mxu0 0.0
    %2081 = vmatprep.subr.mxu0 0.0
    %2082 = vmatpush1.msra.mxu0 0.0
    %2083 = vmatprep.subr.mxu0 0.0
    %2084 = vmatpush1.msra.mxu0 0.0
    %2085 = vmatprep.subr.mxu0 0.0
    %2086 = vmatpush1.msra.mxu0 0.0
    %2087 = vmatprep.subr.mxu0 0.0
    %2088 = vmatpush1.msra.mxu0 0.0
    %2089 = vmatprep.subr.mxu0 0.0
    %2090 = vmatpush1.msra.mxu0 0.0
    %2091 = vmatprep.subr.mxu0 0.0
    %2092 = vmatpush1.msra.mxu0 0.0
    %2093 = vmatprep.subr.mxu0 0.0
    %2094 = vmatpush1.msra.mxu0 0.0
    %2095 = vmatprep.subr.mxu0 0.0
    %2096 = vmatpush1.msra.mxu0 0.0
    %2097 = vmatprep.mubr.f32.mxu0 0.0
    %v2098 = vand.u32 %v62, 4294901760
    %2099 = vmatmul.mubr.f32.gmra.mrb[0].mxu0 %v2098
    %v2100 = vpop.f32.mrb[0].mxu0
    %v2101 = vadd.f32 %v1926, %v2100
    %v2102 = vpop.f32.mrb[0].mxu0
    %2103 = vmatprep.mubr.f32.mxu0 0.0
    %v2104 = vand.u32 %v63, 4294901760
    %2105 = vmatmul.mubr.f32.gmra.mrb[0].mxu0 %v2104
    %v2106 = vpop.f32.mrb[0].mxu0
    %v2107 = vadd.f32 %v1934, %v2106
    %v2108 = vpop.f32.mrb[0].mxu0
    %2109 = vmatprep.mubr.f32.mxu0 0.0
    %v2110 = vand.u32 %v64, 4294901760
    %2111 = vmatmul.mubr.f32.gmra.mrb[0].mxu0 %v2110
    %v2112 = vpop.f32.mrb[0].mxu0
    %v2113 = vadd.f32 %v1942, %v2112
    %v2114 = vpop.f32.mrb[0].mxu0
    %2115 = vmatprep.mubr.f32.mxu0 0.0
    %v2116 = vand.u32 %v65, 4294901760
    %2117 = vmatmul.mubr.f32.gmra.mrb[0].mxu0 %v2116
    %v2118 = vpop.f32.mrb[0].mxu0
    %v2119 = vadd.f32 %v1950, %v2118
    %v2120 = vpop.f32.mrb[0].mxu0
    %2121 = vmatprep.mubr.f32.mxu0 0.0
    %v2122 = vand.u32 %v66, 4294901760
    %2123 = vmatmul.mubr.f32.gmra.mrb[0].mxu0 %v2122
    %v2124 = vpop.f32.mrb[0].mxu0
    %v2125 = vadd.f32 %v1958, %v2124
    %v2126 = vpop.f32.mrb[0].mxu0
    %2127 = vmatprep.mubr.f32.mxu0 0.0
    %v2128 = vand.u32 %v67, 4294901760
    %2129 = vmatmul.mubr.f32.gmra.mrb[0].mxu0 %v2128
    %v2130 = vpop.f32.mrb[0].mxu0
    %v2131 = vadd.f32 %v1966, %v2130
    %v2132 = vpop.f32.mrb[0].mxu0
    %2133 = vmatprep.mubr.f32.mxu0 0.0
    %v2134 = vand.u32 %v68, 4294901760
    %2135 = vmatmul.mubr.f32.gmra.mrb[0].mxu0 %v2134
    %v2136 = vpop.f32.mrb[0].mxu0
    %v2137 = vadd.f32 %v1974, %v2136
    %v2138 = vpop.f32.mrb[0].mxu0
    %2139 = vmatprep.mubr.f32.mxu0 0.0
    %v2140 = vand.u32 %v69, 4294901760
    %2141 = vmatmul.mubr.f32.gmra.mrb[0].mxu0 %v2140
    %v2142 = vpop.f32.mrb[0].mxu0
    %v2143 = vadd.f32 %v1982, %v2142
    %v2144 = vpop.f32.mrb[0].mxu0
    %2145 = vdwg.mxu0
    %2146 = vmatprep.subr.mxu0 0.0
    %v2147 = vand.u32 %v72, 4294901760
    %2148 = vmatpush1.msra.mxu0 %v2147
    %2149 = vmatprep.subr.mxu0 0.0
    %v2150 = vand.u32 %v75, 4294901760
    %2151 = vmatpush1.msra.mxu0 %v2150
    %2152 = vmatprep.subr.mxu0 0.0
    %v2153 = vand.u32 %v78, 4294901760
    %2154 = vmatpush1.msra.mxu0 %v2153
    %2155 = vmatprep.subr.mxu0 0.0
    %v2156 = vand.u32 %v81, 4294901760
    %2157 = vmatpush1.msra.mxu0 %v2156
    %2158 = vmatprep.subr.mxu0 0.0
    %v2159 = vand.u32 %v84, 4294901760
    %2160 = vmatpush1.msra.mxu0 %v2159
    %2161 = vmatprep.subr.mxu0 0.0
    %v2162 = vand.u32 %v87, 4294901760
    %2163 = vmatpush1.msra.mxu0 %v2162
    %2164 = vmatprep.subr.mxu0 0.0
    %v2165 = vand.u32 %v90, 4294901760
    %2166 = vmatpush1.msra.mxu0 %v2165
    %2167 = vmatprep.subr.mxu0 0.0
    %v2168 = vand.u32 %v93, 4294901760
    %2169 = vmatpush1.msra.mxu0 %v2168
    %2170 = vmatprep.subr.mxu0 0.0
    %v2171 = vand.u32 %v96, 4294901760
    %2172 = vmatpush1.msra.mxu0 %v2171
    %2173 = vmatprep.subr.mxu0 0.0
    %v2174 = vand.u32 %v99, 4294901760
    %2175 = vmatpush1.msra.mxu0 %v2174
    %2176 = vmatprep.subr.mxu0 0.0
    %v2177 = vand.u32 %v102, 4294901760
    %2178 = vmatpush1.msra.mxu0 %v2177
    %2179 = vmatprep.subr.mxu0 0.0
    %v2180 = vand.u32 %v105, 4294901760
    %2181 = vmatpush1.msra.mxu0 %v2180
    %2182 = vmatprep.subr.mxu0 0.0
    %v2183 = vand.u32 %v108, 4294901760
    %2184 = vmatpush1.msra.mxu0 %v2183
    %2185 = vmatprep.subr.mxu0 0.0
    %v2186 = vand.u32 %v111, 4294901760
    %2187 = vmatpush1.msra.mxu0 %v2186
    %2188 = vmatprep.subr.mxu0 0.0
    %v2189 = vand.u32 %v114, 4294901760
    %2190 = vmatpush1.msra.mxu0 %v2189
    %2191 = vmatprep.subr.mxu0 0.0
    %v2192 = vand.u32 %v117, 4294901760
    %2193 = vmatpush1.msra.mxu0 %v2192
    %2194 = vmatprep.subr.mxu0 0.0
    %2195 = vmatpush1.msra.mxu0 0.0
    %2196 = vmatprep.subr.mxu0 0.0
    %2197 = vmatpush1.msra.mxu0 0.0
    %2198 = vmatprep.subr.mxu0 0.0
    %2199 = vmatpush1.msra.mxu0 0.0
    %2200 = vmatprep.subr.mxu0 0.0
    %2201 = vmatpush1.msra.mxu0 0.0
    %2202 = vmatprep.subr.mxu0 0.0
    %2203 = vmatpush1.msra.mxu0 0.0
    %2204 = vmatprep.subr.mxu0 0.0
    %2205 = vmatpush1.msra.mxu0 0.0
    %2206 = vmatprep.subr.mxu0 0.0
    %2207 = vmatpush1.msra.mxu0 0.0
    %2208 = vmatprep.subr.mxu0 0.0
    %2209 = vmatpush1.msra.mxu0 0.0
    %2210 = vmatprep.subr.mxu0 0.0
    %2211 = vmatpush1.msra.mxu0 0.0
    %2212 = vmatprep.subr.mxu0 0.0
    %2213 = vmatpush1.msra.mxu0 0.0
    %2214 = vmatprep.subr.mxu0 0.0
    %2215 = vmatpush1.msra.mxu0 0.0
    %2216 = vmatprep.subr.mxu0 0.0
    %2217 = vmatpush1.msra.mxu0 0.0
    %2218 = vmatprep.subr.mxu0 0.0
    %2219 = vmatpush1.msra.mxu0 0.0
    %2220 = vmatprep.subr.mxu0 0.0
    %2221 = vmatpush1.msra.mxu0 0.0
    %2222 = vmatprep.subr.mxu0 0.0
    %2223 = vmatpush1.msra.mxu0 0.0
    %2224 = vmatprep.subr.mxu0 0.0
    %2225 = vmatpush1.msra.mxu0 0.0
    %2226 = vmatprep.mubr.f32.mxu0 0.0
    %v2227 = vand.u32 %v62, 4294901760
    %2228 = vmatmul.mubr.f32.gmra.mrb[0].mxu0 %v2227
    %v2229 = vpop.f32.mrb[0].mxu0
    %v2230 = vadd.f32 %v2101, %v2229
    %v2231 = vpop.f32.mrb[0].mxu0
    %2232 = vmatprep.mubr.f32.mxu0 0.0
    %v2233 = vand.u32 %v63, 4294901760
    %2234 = vmatmul.mubr.f32.gmra.mrb[0].mxu0 %v2233
    %v2235 = vpop.f32.mrb[0].mxu0
    %v2236 = vadd.f32 %v2107, %v2235
    %v2237 = vpop.f32.mrb[0].mxu0
    %2238 = vmatprep.mubr.f32.mxu0 0.0
    %v2239 = vand.u32 %v64, 4294901760
    %2240 = vmatmul.mubr.f32.gmra.mrb[0].mxu0 %v2239
    %v2241 = vpop.f32.mrb[0].mxu0
    %v2242 = vadd.f32 %v2113, %v2241
    %v2243 = vpop.f32.mrb[0].mxu0
    %2244 = vmatprep.mubr.f32.mxu0 0.0
    %v2245 = vand.u32 %v65, 4294901760
    %2246 = vmatmul.mubr.f32.gmra.mrb[0].mxu0 %v2245
    %v2247 = vpop.f32.mrb[0].mxu0
    %v2248 = vadd.f32 %v2119, %v2247
    %v2249 = vpop.f32.mrb[0].mxu0
    %2250 = vmatprep.mubr.f32.mxu0 0.0
    %v2251 = vand.u32 %v66, 4294901760
    %2252 = vmatmul.mubr.f32.gmra.mrb[0].mxu0 %v2251
    %v2253 = vpop.f32.mrb[0].mxu0
    %v2254 = vadd.f32 %v2125, %v2253
    %v2255 = vpop.f32.mrb[0].mxu0
    %2256 = vmatprep.mubr.f32.mxu0 0.0
    %v2257 = vand.u32 %v67, 4294901760
    %2258 = vmatmul.mubr.f32.gmra.mrb[0].mxu0 %v2257
    %v2259 = vpop.f32.mrb[0].mxu0
    %v2260 = vadd.f32 %v2131, %v2259
    %v2261 = vpop.f32.mrb[0].mxu0
    %2262 = vmatprep.mubr.f32.mxu0 0.0
    %v2263 = vand.u32 %v68, 4294901760
    %2264 = vmatmul.mubr.f32.gmra.mrb[0].mxu0 %v2263
    %v2265 = vpop.f32.mrb[0].mxu0
    %v2266 = vadd.f32 %v2137, %v2265
    %v2267 = vpop.f32.mrb[0].mxu0
    %2268 = vmatprep.mubr.f32.mxu0 0.0
    %v2269 = vand.u32 %v69, 4294901760
    %2270 = vmatmul.mubr.f32.gmra.mrb[0].mxu0 %v2269
    %v2271 = vpop.f32.mrb[0].mxu0
    %v2272 = vadd.f32 %v2143, %v2271
    %v2273 = vpop.f32.mrb[0].mxu0
    %2274 = vdwg.mxu0
    %v2275 = vmax.f32 %v1280, 0.0
    %v2276 = vmax.f32 %v1282, 0.0
    %v2277 = vmax.f32 %v2230, 0.0
    %v2278 = vmax.f32 %v1287, 0.0
    %v2279 = vmax.f32 %v1289, 0.0
    %v2280 = vmax.f32 %v2236, 0.0
    %v2281 = vmax.f32 %v1294, 0.0
    %v2282 = vmax.f32 %v1296, 0.0
    %v2283 = vmax.f32 %v2242, 0.0
    %v2284 = vmax.f32 %v1301, 0.0
    %v2285 = vmax.f32 %v1303, 0.0
    %v2286 = vmax.f32 %v2248, 0.0
    %v2287 = vmax.f32 %v1308, 0.0
    %v2288 = vmax.f32 %v1310, 0.0
    %v2289 = vmax.f32 %v2254, 0.0
    %v2290 = vmax.f32 %v1315, 0.0
    %v2291 = vmax.f32 %v1317, 0.0
    %v2292 = vmax.f32 %v2260, 0.0
    %v2293 = vmax.f32 %v1322, 0.0
    %v2294 = vmax.f32 %v1324, 0.0
    %v2295 = vmax.f32 %v2266, 0.0
    %v2296 = vmax.f32 %v1329, 0.0
    %v2297 = vmax.f32 %v1331, 0.0
    %v2298 = vmax.f32 %v2272, 0.0
    %2299 = vst [vmem:[#allocation2] sm:$0xff] %v2275
    %2300 = vst [vmem:[#allocation2 + $0x8] sm:$0xff] %v2276
    %2301 = vst [vmem:[#allocation2 + $0x10] sm:$0xff] %v2277
    %2302 = vst [vmem:[#allocation2 + $0x18] sm:$0xff] %v2278
    %2303 = vst [vmem:[#allocation2 + $0x20] sm:$0xff] %v2279
    %2304 = vst [vmem:[#allocation2 + $0x28] sm:$0xff] %v2280
    %2305 = vst [vmem:[#allocation2 + $0x30] sm:$0xff] %v2281
    %2306 = vst [vmem:[#allocation2 + $0x38] sm:$0xff] %v2282
    %2307 = vst [vmem:[#allocation2 + $0x40] sm:$0xff] %v2283
    %2308 = vst [vmem:[#allocation2 + $0x48] sm:$0xff] %v2284
    %2309 = vst [vmem:[#allocation2 + $0x50] sm:$0xff] %v2285
    %2310 = vst [vmem:[#allocation2 + $0x58] sm:$0xff] %v2286
    %2311 = vst [vmem:[#allocation2 + $0x60] sm:$0xff] %v2287
    %2312 = vst [vmem:[#allocation2 + $0x68] sm:$0xff] %v2288
    %2313 = vst [vmem:[#allocation2 + $0x70] sm:$0xff] %v2289
    %2314 = vst [vmem:[#allocation2 + $0x78] sm:$0xff] %v2290
    %2315 = vst [vmem:[#allocation2 + $0x80] sm:$0xff] %v2291
    %2316 = vst [vmem:[#allocation2 + $0x88] sm:$0xff] %v2292
    %2317 = vst [vmem:[#allocation2 + $0x90] sm:$0xff] %v2293
    %2318 = vst [vmem:[#allocation2 + $0x98] sm:$0xff] %v2294
    %2319 = vst [vmem:[#allocation2 + $0xa0] sm:$0xff] %v2295
    %2320 = vst [vmem:[#allocation2 + $0xa8] sm:$0xff] %v2296
    %2321 = vst [vmem:[#allocation2 + $0xb0] sm:$0xff] %v2297
    %2322 = vst [vmem:[#allocation2 + $0xb8] sm:$0xff] %v2298
    %v2323 = vld [vmem:[#allocation2] sm:$0xff]
    %v2324 = vld [vmem:[#allocation2 + $0x8] sm:$0xff]
    %v2325 = vld [vmem:[#allocation2 + $0x10] sm:$0xff]
    %v2326 = vld [vmem:[#allocation2 + $0x18] sm:$0xff]
    %v2327 = vld [vmem:[#allocation2 + $0x20] sm:$0xff]
    %v2328 = vld [vmem:[#allocation2 + $0x28] sm:$0xff]
    %v2329 = vld [vmem:[#allocation2 + $0x30] sm:$0xff]
    %v2330 = vld [vmem:[#allocation2 + $0x38] sm:$0xff]
    %v2331 = vld [vmem:[#allocation2 + $0x40] sm:$0xff]
    %v2332 = vld [vmem:[#allocation2 + $0x48] sm:$0xff]
    %v2333 = vld [vmem:[#allocation2 + $0x50] sm:$0xff]
    %v2334 = vld [vmem:[#allocation2 + $0x58] sm:$0xff]
    %v2335 = vld [vmem:[#allocation2 + $0x60] sm:$0xff]
    %v2336 = vld [vmem:[#allocation2 + $0x68] sm:$0xff]
    %v2337 = vld [vmem:[#allocation2 + $0x70] sm:$0xff]
    %v2338 = vld [vmem:[#allocation2 + $0x78] sm:$0xff]
    %v2339 = vld [vmem:[#allocation2 + $0x80] sm:$0xff]
    %v2340 = vld [vmem:[#allocation2 + $0x88] sm:$0xff]
    %v2341 = vld [vmem:[#allocation2 + $0x90] sm:$0xff]
    %v2342 = vld [vmem:[#allocation2 + $0x98] sm:$0xff]
    %v2343 = vld [vmem:[#allocation2 + $0xa0] sm:$0xff]
    %v2344 = vld [vmem:[#allocation2 + $0xa8] sm:$0xff]
    %v2345 = vld [vmem:[#allocation2 + $0xb0] sm:$0xff]
    %v2346 = vld [vmem:[#allocation2 + $0xb8] sm:$0xff]
    %v2347 = vld [vmem:[#allocation8] sm:$0xff]
    %v2348 = vld [vmem:[#allocation8 + $0x8] sm:$0xff]
    %v2349 = vld [vmem:[#allocation8 + $0x10] sm:$0xff]
    %v2350 = vld [vmem:[#allocation8 + $0x18] sm:$0xff]
    %v2351 = vld [vmem:[#allocation8 + $0x20] sm:$0xff]
    %v2352 = vld [vmem:[#allocation8 + $0x28] sm:$0xff]
    %v2353 = vld [vmem:[#allocation8 + $0x30] sm:$0xff]
    %v2354 = vld [vmem:[#allocation8 + $0x38] sm:$0xff]
    %v2355 = vld [vmem:[#allocation8 + $0x40] sm:$0xff]
    %v2356 = vld [vmem:[#allocation8 + $0x48] sm:$0xff]
    %v2357 = vld [vmem:[#allocation8 + $0x50] sm:$0xff]
    %v2358 = vld [vmem:[#allocation8 + $0x58] sm:$0xff]
    %v2359 = vld [vmem:[#allocation8 + $0x60] sm:$0xff]
    %v2360 = vld [vmem:[#allocation8 + $0x68] sm:$0xff]
    %v2361 = vld [vmem:[#allocation8 + $0x70] sm:$0xff]
    %v2362 = vld [vmem:[#allocation8 + $0x78] sm:$0xff]
    %v2363 = vld [vmem:[#allocation8 + $0x80] sm:$0xff]
    %v2364 = vld [vmem:[#allocation8 + $0x88] sm:$0xff]
    %v2365 = vld [vmem:[#allocation8 + $0x90] sm:$0xff]
    %v2366 = vld [vmem:[#allocation8 + $0x98] sm:$0xff]
    %v2367 = vld [vmem:[#allocation8 + $0xa0] sm:$0xff]
    %v2368 = vld [vmem:[#allocation8 + $0xa8] sm:$0xff]
    %v2369 = vld [vmem:[#allocation8 + $0xb0] sm:$0xff]
    %v2370 = vld [vmem:[#allocation8 + $0xb8] sm:$0xff]
    %v2371 = vld [vmem:[#allocation8 + $0xc0] sm:$0xff]
    %v2372 = vld [vmem:[#allocation8 + $0xc8] sm:$0xff]
    %v2373 = vld [vmem:[#allocation8 + $0xd0] sm:$0xff]
    %v2374 = vld [vmem:[#allocation8 + $0xd8] sm:$0xff]
    %v2375 = vld [vmem:[#allocation8 + $0xe0] sm:$0xff]
    %v2376 = vld [vmem:[#allocation8 + $0xe8] sm:$0xff]
    %v2377 = vld [vmem:[#allocation8 + $0xf0] sm:$0xff]
    %v2378 = vld [vmem:[#allocation8 + $0xf8] sm:$0xff]
    %v2379 = vld [vmem:[#allocation8 + $0x100] sm:$0xff]
    %v2380 = vld [vmem:[#allocation8 + $0x108] sm:$0xff]
    %v2381 = vld [vmem:[#allocation8 + $0x110] sm:$0xff]
    %v2382 = vld [vmem:[#allocation8 + $0x118] sm:$0xff]
    %v2383 = vld [vmem:[#allocation8 + $0x120] sm:$0xff]
    %v2384 = vld [vmem:[#allocation8 + $0x128] sm:$0xff]
    %v2385 = vld [vmem:[#allocation8 + $0x130] sm:$0xff]
    %v2386 = vld [vmem:[#allocation8 + $0x138] sm:$0xff]
    %v2387 = vld [vmem:[#allocation8 + $0x140] sm:$0xff]
    %v2388 = vld [vmem:[#allocation8 + $0x148] sm:$0xff]
    %v2389 = vld [vmem:[#allocation8 + $0x150] sm:$0xff]
    %v2390 = vld [vmem:[#allocation8 + $0x158] sm:$0xff]
    %v2391 = vld [vmem:[#allocation8 + $0x160] sm:$0xff]
    %v2392 = vld [vmem:[#allocation8 + $0x168] sm:$0xff]
    %v2393 = vld [vmem:[#allocation8 + $0x170] sm:$0xff]
    %v2394 = vld [vmem:[#allocation8 + $0x178] sm:$0xff]
    %v2395 = vld [vmem:[%s4] sm:$0x1]
    %v2397 = vlaneseq
    %v2398 = vshrl.u32 %v2397, 7
    %v2399 = vsub.s32 0, %v2398
    %v2400 = vrot.slane %v2395, %v2399
    %2402 = vmatprep.subr.mxu0 0.0
    %v2403 = vand.u32 %v2347, 4294901760
    %2404 = vmatpush1.msra.mxu0 %v2403
    %2405 = vmatprep.subr.mxu0 0.0
    %v2406 = vand.u32 %v2348, 4294901760
    %2407 = vmatpush1.msra.mxu0 %v2406
    %2408 = vmatprep.subr.mxu0 0.0
    %v2409 = vand.u32 %v2349, 4294901760
    %2410 = vmatpush1.msra.mxu0 %v2409
    %2411 = vmatprep.subr.mxu0 0.0
    %v2412 = vand.u32 %v2350, 4294901760
    %2413 = vmatpush1.msra.mxu0 %v2412
    %2414 = vmatprep.subr.mxu0 0.0
    %v2415 = vand.u32 %v2351, 4294901760
    %2416 = vmatpush1.msra.mxu0 %v2415
    %2417 = vmatprep.subr.mxu0 0.0
    %v2418 = vand.u32 %v2352, 4294901760
    %2419 = vmatpush1.msra.mxu0 %v2418
    %2420 = vmatprep.subr.mxu0 0.0
    %v2421 = vand.u32 %v2353, 4294901760
    %2422 = vmatpush1.msra.mxu0 %v2421
    %2423 = vmatprep.subr.mxu0 0.0
    %v2424 = vand.u32 %v2354, 4294901760
    %2425 = vmatpush1.msra.mxu0 %v2424
    %2426 = vmatprep.subr.mxu0 0.0
    %v2427 = vand.u32 %v2355, 4294901760
    %2428 = vmatpush1.msra.mxu0 %v2427
    %2429 = vmatprep.subr.mxu0 0.0
    %v2430 = vand.u32 %v2356, 4294901760
    %2431 = vmatpush1.msra.mxu0 %v2430
    %2432 = vmatprep.subr.mxu0 0.0
    %v2433 = vand.u32 %v2357, 4294901760
    %2434 = vmatpush1.msra.mxu0 %v2433
    %2435 = vmatprep.subr.mxu0 0.0
    %v2436 = vand.u32 %v2358, 4294901760
    %2437 = vmatpush1.msra.mxu0 %v2436
    %2438 = vmatprep.subr.mxu0 0.0
    %v2439 = vand.u32 %v2359, 4294901760
    %2440 = vmatpush1.msra.mxu0 %v2439
    %2441 = vmatprep.subr.mxu0 0.0
    %v2442 = vand.u32 %v2360, 4294901760
    %2443 = vmatpush1.msra.mxu0 %v2442
    %2444 = vmatprep.subr.mxu0 0.0
    %v2445 = vand.u32 %v2361, 4294901760
    %2446 = vmatpush1.msra.mxu0 %v2445
    %2447 = vmatprep.subr.mxu0 0.0
    %v2448 = vand.u32 %v2362, 4294901760
    %2449 = vmatpush1.msra.mxu0 %v2448
    %2450 = vmatprep.subr.mxu0 0.0
    %v2451 = vand.u32 %v2363, 4294901760
    %2452 = vmatpush1.msra.mxu0 %v2451
    %2453 = vmatprep.subr.mxu0 0.0
    %v2454 = vand.u32 %v2364, 4294901760
    %2455 = vmatpush1.msra.mxu0 %v2454
    %2456 = vmatprep.subr.mxu0 0.0
    %v2457 = vand.u32 %v2365, 4294901760
    %2458 = vmatpush1.msra.mxu0 %v2457
    %2459 = vmatprep.subr.mxu0 0.0
    %v2460 = vand.u32 %v2366, 4294901760
    %2461 = vmatpush1.msra.mxu0 %v2460
    %2462 = vmatprep.subr.mxu0 0.0
    %v2463 = vand.u32 %v2367, 4294901760
    %2464 = vmatpush1.msra.mxu0 %v2463
    %2465 = vmatprep.subr.mxu0 0.0
    %v2466 = vand.u32 %v2368, 4294901760
    %2467 = vmatpush1.msra.mxu0 %v2466
    %2468 = vmatprep.subr.mxu0 0.0
    %v2469 = vand.u32 %v2369, 4294901760
    %2470 = vmatpush1.msra.mxu0 %v2469
    %2471 = vmatprep.subr.mxu0 0.0
    %v2472 = vand.u32 %v2370, 4294901760
    %2473 = vmatpush1.msra.mxu0 %v2472
    %2474 = vmatprep.subr.mxu0 0.0
    %v2475 = vand.u32 %v2371, 4294901760
    %2476 = vmatpush1.msra.mxu0 %v2475
    %2477 = vmatprep.subr.mxu0 0.0
    %v2478 = vand.u32 %v2372, 4294901760
    %2479 = vmatpush1.msra.mxu0 %v2478
    %2480 = vmatprep.subr.mxu0 0.0
    %v2481 = vand.u32 %v2373, 4294901760
    %2482 = vmatpush1.msra.mxu0 %v2481
    %2483 = vmatprep.subr.mxu0 0.0
    %v2484 = vand.u32 %v2374, 4294901760
    %2485 = vmatpush1.msra.mxu0 %v2484
    %2486 = vmatprep.subr.mxu0 0.0
    %v2487 = vand.u32 %v2375, 4294901760
    %2488 = vmatpush1.msra.mxu0 %v2487
    %2489 = vmatprep.subr.mxu0 0.0
    %v2490 = vand.u32 %v2376, 4294901760
    %2491 = vmatpush1.msra.mxu0 %v2490
    %2492 = vmatprep.subr.mxu0 0.0
    %v2493 = vand.u32 %v2377, 4294901760
    %2494 = vmatpush1.msra.mxu0 %v2493
    %2495 = vmatprep.subr.mxu0 0.0
    %v2496 = vand.u32 %v2378, 4294901760
    %2497 = vmatpush1.msra.mxu0 %v2496
    %v2498 = vand.u32 %v2324, 4294901760
    %v2499 = vsub.f32 %v2324, %v2498
    %v2500 = vand.u32 %v2499, 4294901760
    %v2501 = vsub.f32 %v2499, %v2500
    %v2502 = vand.u32 %v2501, 4294901760
    %2503 = vmatprep.mubr.f32.mxu0 %v2502
    %v2504 = vand.u32 %v2323, 4294901760
    %v2505 = vsub.f32 %v2323, %v2504
    %v2506 = vand.u32 %v2505, 4294901760
    %v2507 = vsub.f32 %v2505, %v2506
    %v2508 = vand.u32 %v2507, 4294901760
    %2509 = vmatmul.mubr.f32.gmra.mrb[0].mxu0 %v2508
    %v2510 = vpop.f32.mrb[0].mxu0
    %v2511 = vadd.f32 %v2400, %v2510
    %v2512 = vpop.f32.mrb[0].mxu0
    %v2513 = vand.u32 %v2327, 4294901760
    %v2514 = vsub.f32 %v2327, %v2513
    %v2515 = vand.u32 %v2514, 4294901760
    %v2516 = vsub.f32 %v2514, %v2515
    %v2517 = vand.u32 %v2516, 4294901760
    %2518 = vmatprep.mubr.f32.mxu0 %v2517
    %v2519 = vand.u32 %v2326, 4294901760
    %v2520 = vsub.f32 %v2326, %v2519
    %v2521 = vand.u32 %v2520, 4294901760
    %v2522 = vsub.f32 %v2520, %v2521
    %v2523 = vand.u32 %v2522, 4294901760
    %2524 = vmatmul.mubr.f32.gmra.mrb[0].mxu0 %v2523
    %v2525 = vpop.f32.mrb[0].mxu0
    %v2526 = vadd.f32 %v2400, %v2525
    %v2527 = vpop.f32.mrb[0].mxu0
    %v2528 = vand.u32 %v2330, 4294901760
    %v2529 = vsub.f32 %v2330, %v2528
    %v2530 = vand.u32 %v2529, 4294901760
    %v2531 = vsub.f32 %v2529, %v2530
    %v2532 = vand.u32 %v2531, 4294901760
    %2533 = vmatprep.mubr.f32.mxu0 %v2532
    %v2534 = vand.u32 %v2329, 4294901760
    %v2535 = vsub.f32 %v2329, %v2534
    %v2536 = vand.u32 %v2535, 4294901760
    %v2537 = vsub.f32 %v2535, %v2536
    %v2538 = vand.u32 %v2537, 4294901760
    %2539 = vmatmul.mubr.f32.gmra.mrb[0].mxu0 %v2538
    %v2540 = vpop.f32.mrb[0].mxu0
    %v2541 = vadd.f32 %v2400, %v2540
    %v2542 = vpop.f32.mrb[0].mxu0
    %v2543 = vand.u32 %v2333, 4294901760
    %v2544 = vsub.f32 %v2333, %v2543
    %v2545 = vand.u32 %v2544, 4294901760
    %v2546 = vsub.f32 %v2544, %v2545
    %v2547 = vand.u32 %v2546, 4294901760
    %2548 = vmatprep.mubr.f32.mxu0 %v2547
    %v2549 = vand.u32 %v2332, 4294901760
    %v2550 = vsub.f32 %v2332, %v2549
    %v2551 = vand.u32 %v2550, 4294901760
    %v2552 = vsub.f32 %v2550, %v2551
    %v2553 = vand.u32 %v2552, 4294901760
    %2554 = vmatmul.mubr.f32.gmra.mrb[0].mxu0 %v2553
    %v2555 = vpop.f32.mrb[0].mxu0
    %v2556 = vadd.f32 %v2400, %v2555
    %v2557 = vpop.f32.mrb[0].mxu0
    %v2558 = vand.u32 %v2336, 4294901760
    %v2559 = vsub.f32 %v2336, %v2558
    %v2560 = vand.u32 %v2559, 4294901760
    %v2561 = vsub.f32 %v2559, %v2560
    %v2562 = vand.u32 %v2561, 4294901760
    %2563 = vmatprep.mubr.f32.mxu0 %v2562
    %v2564 = vand.u32 %v2335, 4294901760
    %v2565 = vsub.f32 %v2335, %v2564
    %v2566 = vand.u32 %v2565, 4294901760
    %v2567 = vsub.f32 %v2565, %v2566
    %v2568 = vand.u32 %v2567, 4294901760
    %2569 = vmatmul.mubr.f32.gmra.mrb[0].mxu0 %v2568
    %v2570 = vpop.f32.mrb[0].mxu0
    %v2571 = vadd.f32 %v2400, %v2570
    %v2572 = vpop.f32.mrb[0].mxu0
    %v2573 = vand.u32 %v2339, 4294901760
    %v2574 = vsub.f32 %v2339, %v2573
    %v2575 = vand.u32 %v2574, 4294901760
    %v2576 = vsub.f32 %v2574, %v2575
    %v2577 = vand.u32 %v2576, 4294901760
    %2578 = vmatprep.mubr.f32.mxu0 %v2577
    %v2579 = vand.u32 %v2338, 4294901760
    %v2580 = vsub.f32 %v2338, %v2579
    %v2581 = vand.u32 %v2580, 4294901760
    %v2582 = vsub.f32 %v2580, %v2581
    %v2583 = vand.u32 %v2582, 4294901760
    %2584 = vmatmul.mubr.f32.gmra.mrb[0].mxu0 %v2583
    %v2585 = vpop.f32.mrb[0].mxu0
    %v2586 = vadd.f32 %v2400, %v2585
    %v2587 = vpop.f32.mrb[0].mxu0
    %v2588 = vand.u32 %v2342, 4294901760
    %v2589 = vsub.f32 %v2342, %v2588
    %v2590 = vand.u32 %v2589, 4294901760
    %v2591 = vsub.f32 %v2589, %v2590
    %v2592 = vand.u32 %v2591, 4294901760
    %2593 = vmatprep.mubr.f32.mxu0 %v2592
    %v2594 = vand.u32 %v2341, 4294901760
    %v2595 = vsub.f32 %v2341, %v2594
    %v2596 = vand.u32 %v2595, 4294901760
    %v2597 = vsub.f32 %v2595, %v2596
    %v2598 = vand.u32 %v2597, 4294901760
    %2599 = vmatmul.mubr.f32.gmra.mrb[0].mxu0 %v2598
    %v2600 = vpop.f32.mrb[0].mxu0
    %v2601 = vadd.f32 %v2400, %v2600
    %v2602 = vpop.f32.mrb[0].mxu0
    %v2603 = vand.u32 %v2345, 4294901760
    %v2604 = vsub.f32 %v2345, %v2603
    %v2605 = vand.u32 %v2604, 4294901760
    %v2606 = vsub.f32 %v2604, %v2605
    %v2607 = vand.u32 %v2606, 4294901760
    %2608 = vmatprep.mubr.f32.mxu0 %v2607
    %v2609 = vand.u32 %v2344, 4294901760
    %v2610 = vsub.f32 %v2344, %v2609
    %v2611 = vand.u32 %v2610, 4294901760
    %v2612 = vsub.f32 %v2610, %v2611
    %v2613 = vand.u32 %v2612, 4294901760
    %2614 = vmatmul.mubr.f32.gmra.mrb[0].mxu0 %v2613
    %v2615 = vpop.f32.mrb[0].mxu0
    %v2616 = vadd.f32 %v2400, %v2615
    %v2617 = vpop.f32.mrb[0].mxu0
    %2618 = vdwg.mxu0
    %2619 = vmatprep.subr.mxu0 0.0
    %v2620 = vand.u32 %v2347, 4294901760
    %v2621 = vsub.f32 %v2347, %v2620
    %v2622 = vand.u32 %v2621, 4294901760
    %v2623 = vsub.f32 %v2621, %v2622
    %v2624 = vand.u32 %v2623, 4294901760
    %2625 = vmatpush1.msra.mxu0 %v2624
    %2626 = vmatprep.subr.mxu0 0.0
    %v2627 = vand.u32 %v2348, 4294901760
    %v2628 = vsub.f32 %v2348, %v2627
    %v2629 = vand.u32 %v2628, 4294901760
    %v2630 = vsub.f32 %v2628, %v2629
    %v2631 = vand.u32 %v2630, 4294901760
    %2632 = vmatpush1.msra.mxu0 %v2631
    %2633 = vmatprep.subr.mxu0 0.0
    %v2634 = vand.u32 %v2349, 4294901760
    %v2635 = vsub.f32 %v2349, %v2634
    %v2636 = vand.u32 %v2635, 4294901760
    %v2637 = vsub.f32 %v2635, %v2636
    %v2638 = vand.u32 %v2637, 4294901760
    %2639 = vmatpush1.msra.mxu0 %v2638
    %2640 = vmatprep.subr.mxu0 0.0
    %v2641 = vand.u32 %v2350, 4294901760
    %v2642 = vsub.f32 %v2350, %v2641
    %v2643 = vand.u32 %v2642, 4294901760
    %v2644 = vsub.f32 %v2642, %v2643
    %v2645 = vand.u32 %v2644, 4294901760
    %2646 = vmatpush1.msra.mxu0 %v2645
    %2647 = vmatprep.subr.mxu0 0.0
    %v2648 = vand.u32 %v2351, 4294901760
    %v2649 = vsub.f32 %v2351, %v2648
    %v2650 = vand.u32 %v2649, 4294901760
    %v2651 = vsub.f32 %v2649, %v2650
    %v2652 = vand.u32 %v2651, 4294901760
    %2653 = vmatpush1.msra.mxu0 %v2652
    %2654 = vmatprep.subr.mxu0 0.0
    %v2655 = vand.u32 %v2352, 4294901760
    %v2656 = vsub.f32 %v2352, %v2655
    %v2657 = vand.u32 %v2656, 4294901760
    %v2658 = vsub.f32 %v2656, %v2657
    %v2659 = vand.u32 %v2658, 4294901760
    %2660 = vmatpush1.msra.mxu0 %v2659
    %2661 = vmatprep.subr.mxu0 0.0
    %v2662 = vand.u32 %v2353, 4294901760
    %v2663 = vsub.f32 %v2353, %v2662
    %v2664 = vand.u32 %v2663, 4294901760
    %v2665 = vsub.f32 %v2663, %v2664
    %v2666 = vand.u32 %v2665, 4294901760
    %2667 = vmatpush1.msra.mxu0 %v2666
    %2668 = vmatprep.subr.mxu0 0.0
    %v2669 = vand.u32 %v2354, 4294901760
    %v2670 = vsub.f32 %v2354, %v2669
    %v2671 = vand.u32 %v2670, 4294901760
    %v2672 = vsub.f32 %v2670, %v2671
    %v2673 = vand.u32 %v2672, 4294901760
    %2674 = vmatpush1.msra.mxu0 %v2673
    %2675 = vmatprep.subr.mxu0 0.0
    %v2676 = vand.u32 %v2355, 4294901760
    %v2677 = vsub.f32 %v2355, %v2676
    %v2678 = vand.u32 %v2677, 4294901760
    %v2679 = vsub.f32 %v2677, %v2678
    %v2680 = vand.u32 %v2679, 4294901760
    %2681 = vmatpush1.msra.mxu0 %v2680
    %2682 = vmatprep.subr.mxu0 0.0
    %v2683 = vand.u32 %v2356, 4294901760
    %v2684 = vsub.f32 %v2356, %v2683
    %v2685 = vand.u32 %v2684, 4294901760
    %v2686 = vsub.f32 %v2684, %v2685
    %v2687 = vand.u32 %v2686, 4294901760
    %2688 = vmatpush1.msra.mxu0 %v2687
    %2689 = vmatprep.subr.mxu0 0.0
    %v2690 = vand.u32 %v2357, 4294901760
    %v2691 = vsub.f32 %v2357, %v2690
    %v2692 = vand.u32 %v2691, 4294901760
    %v2693 = vsub.f32 %v2691, %v2692
    %v2694 = vand.u32 %v2693, 4294901760
    %2695 = vmatpush1.msra.mxu0 %v2694
    %2696 = vmatprep.subr.mxu0 0.0
    %v2697 = vand.u32 %v2358, 4294901760
    %v2698 = vsub.f32 %v2358, %v2697
    %v2699 = vand.u32 %v2698, 4294901760
    %v2700 = vsub.f32 %v2698, %v2699
    %v2701 = vand.u32 %v2700, 4294901760
    %2702 = vmatpush1.msra.mxu0 %v2701
    %2703 = vmatprep.subr.mxu0 0.0
    %v2704 = vand.u32 %v2359, 4294901760
    %v2705 = vsub.f32 %v2359, %v2704
    %v2706 = vand.u32 %v2705, 4294901760
    %v2707 = vsub.f32 %v2705, %v2706
    %v2708 = vand.u32 %v2707, 4294901760
    %2709 = vmatpush1.msra.mxu0 %v2708
    %2710 = vmatprep.subr.mxu0 0.0
    %v2711 = vand.u32 %v2360, 4294901760
    %v2712 = vsub.f32 %v2360, %v2711
    %v2713 = vand.u32 %v2712, 4294901760
    %v2714 = vsub.f32 %v2712, %v2713
    %v2715 = vand.u32 %v2714, 4294901760
    %2716 = vmatpush1.msra.mxu0 %v2715
    %2717 = vmatprep.subr.mxu0 0.0
    %v2718 = vand.u32 %v2361, 4294901760
    %v2719 = vsub.f32 %v2361, %v2718
    %v2720 = vand.u32 %v2719, 4294901760
    %v2721 = vsub.f32 %v2719, %v2720
    %v2722 = vand.u32 %v2721, 4294901760
    %2723 = vmatpush1.msra.mxu0 %v2722
    %2724 = vmatprep.subr.mxu0 0.0
    %v2725 = vand.u32 %v2362, 4294901760
    %v2726 = vsub.f32 %v2362, %v2725
    %v2727 = vand.u32 %v2726, 4294901760
    %v2728 = vsub.f32 %v2726, %v2727
    %v2729 = vand.u32 %v2728, 4294901760
    %2730 = vmatpush1.msra.mxu0 %v2729
    %2731 = vmatprep.subr.mxu0 0.0
    %v2732 = vand.u32 %v2363, 4294901760
    %v2733 = vsub.f32 %v2363, %v2732
    %v2734 = vand.u32 %v2733, 4294901760
    %v2735 = vsub.f32 %v2733, %v2734
    %v2736 = vand.u32 %v2735, 4294901760
    %2737 = vmatpush1.msra.mxu0 %v2736
    %2738 = vmatprep.subr.mxu0 0.0
    %v2739 = vand.u32 %v2364, 4294901760
    %v2740 = vsub.f32 %v2364, %v2739
    %v2741 = vand.u32 %v2740, 4294901760
    %v2742 = vsub.f32 %v2740, %v2741
    %v2743 = vand.u32 %v2742, 4294901760
    %2744 = vmatpush1.msra.mxu0 %v2743
    %2745 = vmatprep.subr.mxu0 0.0
    %v2746 = vand.u32 %v2365, 4294901760
    %v2747 = vsub.f32 %v2365, %v2746
    %v2748 = vand.u32 %v2747, 4294901760
    %v2749 = vsub.f32 %v2747, %v2748
    %v2750 = vand.u32 %v2749, 4294901760
    %2751 = vmatpush1.msra.mxu0 %v2750
    %2752 = vmatprep.subr.mxu0 0.0
    %v2753 = vand.u32 %v2366, 4294901760
    %v2754 = vsub.f32 %v2366, %v2753
    %v2755 = vand.u32 %v2754, 4294901760
    %v2756 = vsub.f32 %v2754, %v2755
    %v2757 = vand.u32 %v2756, 4294901760
    %2758 = vmatpush1.msra.mxu0 %v2757
    %2759 = vmatprep.subr.mxu0 0.0
    %v2760 = vand.u32 %v2367, 4294901760
    %v2761 = vsub.f32 %v2367, %v2760
    %v2762 = vand.u32 %v2761, 4294901760
    %v2763 = vsub.f32 %v2761, %v2762
    %v2764 = vand.u32 %v2763, 4294901760
    %2765 = vmatpush1.msra.mxu0 %v2764
    %2766 = vmatprep.subr.mxu0 0.0
    %v2767 = vand.u32 %v2368, 4294901760
    %v2768 = vsub.f32 %v2368, %v2767
    %v2769 = vand.u32 %v2768, 4294901760
    %v2770 = vsub.f32 %v2768, %v2769
    %v2771 = vand.u32 %v2770, 4294901760
    %2772 = vmatpush1.msra.mxu0 %v2771
    %2773 = vmatprep.subr.mxu0 0.0
    %v2774 = vand.u32 %v2369, 4294901760
    %v2775 = vsub.f32 %v2369, %v2774
    %v2776 = vand.u32 %v2775, 4294901760
    %v2777 = vsub.f32 %v2775, %v2776
    %v2778 = vand.u32 %v2777, 4294901760
    %2779 = vmatpush1.msra.mxu0 %v2778
    %2780 = vmatprep.subr.mxu0 0.0
    %v2781 = vand.u32 %v2370, 4294901760
    %v2782 = vsub.f32 %v2370, %v2781
    %v2783 = vand.u32 %v2782, 4294901760
    %v2784 = vsub.f32 %v2782, %v2783
    %v2785 = vand.u32 %v2784, 4294901760
    %2786 = vmatpush1.msra.mxu0 %v2785
    %2787 = vmatprep.subr.mxu0 0.0
    %v2788 = vand.u32 %v2371, 4294901760
    %v2789 = vsub.f32 %v2371, %v2788
    %v2790 = vand.u32 %v2789, 4294901760
    %v2791 = vsub.f32 %v2789, %v2790
    %v2792 = vand.u32 %v2791, 4294901760
    %2793 = vmatpush1.msra.mxu0 %v2792
    %2794 = vmatprep.subr.mxu0 0.0
    %v2795 = vand.u32 %v2372, 4294901760
    %v2796 = vsub.f32 %v2372, %v2795
    %v2797 = vand.u32 %v2796, 4294901760
    %v2798 = vsub.f32 %v2796, %v2797
    %v2799 = vand.u32 %v2798, 4294901760
    %2800 = vmatpush1.msra.mxu0 %v2799
    %2801 = vmatprep.subr.mxu0 0.0
    %v2802 = vand.u32 %v2373, 4294901760
    %v2803 = vsub.f32 %v2373, %v2802
    %v2804 = vand.u32 %v2803, 4294901760
    %v2805 = vsub.f32 %v2803, %v2804
    %v2806 = vand.u32 %v2805, 4294901760
    %2807 = vmatpush1.msra.mxu0 %v2806
    %2808 = vmatprep.subr.mxu0 0.0
    %v2809 = vand.u32 %v2374, 4294901760
    %v2810 = vsub.f32 %v2374, %v2809
    %v2811 = vand.u32 %v2810, 4294901760
    %v2812 = vsub.f32 %v2810, %v2811
    %v2813 = vand.u32 %v2812, 4294901760
    %2814 = vmatpush1.msra.mxu0 %v2813
    %2815 = vmatprep.subr.mxu0 0.0
    %v2816 = vand.u32 %v2375, 4294901760
    %v2817 = vsub.f32 %v2375, %v2816
    %v2818 = vand.u32 %v2817, 4294901760
    %v2819 = vsub.f32 %v2817, %v2818
    %v2820 = vand.u32 %v2819, 4294901760
    %2821 = vmatpush1.msra.mxu0 %v2820
    %2822 = vmatprep.subr.mxu0 0.0
    %v2823 = vand.u32 %v2376, 4294901760
    %v2824 = vsub.f32 %v2376, %v2823
    %v2825 = vand.u32 %v2824, 4294901760
    %v2826 = vsub.f32 %v2824, %v2825
    %v2827 = vand.u32 %v2826, 4294901760
    %2828 = vmatpush1.msra.mxu0 %v2827
    %2829 = vmatprep.subr.mxu0 0.0
    %v2830 = vand.u32 %v2377, 4294901760
    %v2831 = vsub.f32 %v2377, %v2830
    %v2832 = vand.u32 %v2831, 4294901760
    %v2833 = vsub.f32 %v2831, %v2832
    %v2834 = vand.u32 %v2833, 4294901760
    %2835 = vmatpush1.msra.mxu0 %v2834
    %2836 = vmatprep.subr.mxu0 0.0
    %v2837 = vand.u32 %v2378, 4294901760
    %v2838 = vsub.f32 %v2378, %v2837
    %v2839 = vand.u32 %v2838, 4294901760
    %v2840 = vsub.f32 %v2838, %v2839
    %v2841 = vand.u32 %v2840, 4294901760
    %2842 = vmatpush1.msra.mxu0 %v2841
    %v2843 = vand.u32 %v2324, 4294901760
    %2844 = vmatprep.mubr.f32.mxu0 %v2843
    %v2845 = vand.u32 %v2323, 4294901760
    %2846 = vmatmul.mubr.f32.gmra.mrb[0].mxu0 %v2845
    %v2847 = vpop.f32.mrb[0].mxu0
    %v2848 = vadd.f32 %v2511, %v2847
    %v2849 = vpop.f32.mrb[0].mxu0
    %v2850 = vand.u32 %v2327, 4294901760
    %2851 = vmatprep.mubr.f32.mxu0 %v2850
    %v2852 = vand.u32 %v2326, 4294901760
    %2853 = vmatmul.mubr.f32.gmra.mrb[0].mxu0 %v2852
    %v2854 = vpop.f32.mrb[0].mxu0
    %v2855 = vadd.f32 %v2526, %v2854
    %v2856 = vpop.f32.mrb[0].mxu0
    %v2857 = vand.u32 %v2330, 4294901760
    %2858 = vmatprep.mubr.f32.mxu0 %v2857
    %v2859 = vand.u32 %v2329, 4294901760
    %2860 = vmatmul.mubr.f32.gmra.mrb[0].mxu0 %v2859
    %v2861 = vpop.f32.mrb[0].mxu0
    %v2862 = vadd.f32 %v2541, %v2861
    %v2863 = vpop.f32.mrb[0].mxu0
    %v2864 = vand.u32 %v2333, 4294901760
    %2865 = vmatprep.mubr.f32.mxu0 %v2864
    %v2866 = vand.u32 %v2332, 4294901760
    %2867 = vmatmul.mubr.f32.gmra.mrb[0].mxu0 %v2866
    %v2868 = vpop.f32.mrb[0].mxu0
    %v2869 = vadd.f32 %v2556, %v2868
    %v2870 = vpop.f32.mrb[0].mxu0
    %v2871 = vand.u32 %v2336, 4294901760
    %2872 = vmatprep.mubr.f32.mxu0 %v2871
    %v2873 = vand.u32 %v2335, 4294901760
    %2874 = vmatmul.mubr.f32.gmra.mrb[0].mxu0 %v2873
    %v2875 = vpop.f32.mrb[0].mxu0
    %v2876 = vadd.f32 %v2571, %v2875
    %v2877 = vpop.f32.mrb[0].mxu0
    %v2878 = vand.u32 %v2339, 4294901760
    %2879 = vmatprep.mubr.f32.mxu0 %v2878
    %v2880 = vand.u32 %v2338, 4294901760
    %2881 = vmatmul.mubr.f32.gmra.mrb[0].mxu0 %v2880
    %v2882 = vpop.f32.mrb[0].mxu0
    %v2883 = vadd.f32 %v2586, %v2882
    %v2884 = vpop.f32.mrb[0].mxu0
    %v2885 = vand.u32 %v2342, 4294901760
    %2886 = vmatprep.mubr.f32.mxu0 %v2885
    %v2887 = vand.u32 %v2341, 4294901760
    %2888 = vmatmul.mubr.f32.gmra.mrb[0].mxu0 %v2887
    %v2889 = vpop.f32.mrb[0].mxu0
    %v2890 = vadd.f32 %v2601, %v2889
    %v2891 = vpop.f32.mrb[0].mxu0
    %v2892 = vand.u32 %v2345, 4294901760
    %2893 = vmatprep.mubr.f32.mxu0 %v2892
    %v2894 = vand.u32 %v2344, 4294901760
    %2895 = vmatmul.mubr.f32.gmra.mrb[0].mxu0 %v2894
    %v2896 = vpop.f32.mrb[0].mxu0
    %v2897 = vadd.f32 %v2616, %v2896
    %v2898 = vpop.f32.mrb[0].mxu0
    %2899 = vdwg.mxu0
    %2900 = vmatprep.subr.mxu0 0.0
    %v2901 = vand.u32 %v2347, 4294901760
    %v2902 = vsub.f32 %v2347, %v2901
    %2903 = vmatpush1.msra.mxu0 %v2902
    %2904 = vmatprep.subr.mxu0 0.0
    %v2905 = vand.u32 %v2348, 4294901760
    %v2906 = vsub.f32 %v2348, %v2905
    %2907 = vmatpush1.msra.mxu0 %v2906
    %2908 = vmatprep.subr.mxu0 0.0
    %v2909 = vand.u32 %v2349, 4294901760
    %v2910 = vsub.f32 %v2349, %v2909
    %2911 = vmatpush1.msra.mxu0 %v2910
    %2912 = vmatprep.subr.mxu0 0.0
    %v2913 = vand.u32 %v2350, 4294901760
    %v2914 = vsub.f32 %v2350, %v2913
    %2915 = vmatpush1.msra.mxu0 %v2914
    %2916 = vmatprep.subr.mxu0 0.0
    %v2917 = vand.u32 %v2351, 4294901760
    %v2918 = vsub.f32 %v2351, %v2917
    %2919 = vmatpush1.msra.mxu0 %v2918
    %2920 = vmatprep.subr.mxu0 0.0
    %v2921 = vand.u32 %v2352, 4294901760
    %v2922 = vsub.f32 %v2352, %v2921
    %2923 = vmatpush1.msra.mxu0 %v2922
    %2924 = vmatprep.subr.mxu0 0.0
    %v2925 = vand.u32 %v2353, 4294901760
    %v2926 = vsub.f32 %v2353, %v2925
    %2927 = vmatpush1.msra.mxu0 %v2926
    %2928 = vmatprep.subr.mxu0 0.0
    %v2929 = vand.u32 %v2354, 4294901760
    %v2930 = vsub.f32 %v2354, %v2929
    %2931 = vmatpush1.msra.mxu0 %v2930
    %2932 = vmatprep.subr.mxu0 0.0
    %v2933 = vand.u32 %v2355, 4294901760
    %v2934 = vsub.f32 %v2355, %v2933
    %2935 = vmatpush1.msra.mxu0 %v2934
    %2936 = vmatprep.subr.mxu0 0.0
    %v2937 = vand.u32 %v2356, 4294901760
    %v2938 = vsub.f32 %v2356, %v2937
    %2939 = vmatpush1.msra.mxu0 %v2938
    %2940 = vmatprep.subr.mxu0 0.0
    %v2941 = vand.u32 %v2357, 4294901760
    %v2942 = vsub.f32 %v2357, %v2941
    %2943 = vmatpush1.msra.mxu0 %v2942
    %2944 = vmatprep.subr.mxu0 0.0
    %v2945 = vand.u32 %v2358, 4294901760
    %v2946 = vsub.f32 %v2358, %v2945
    %2947 = vmatpush1.msra.mxu0 %v2946
    %2948 = vmatprep.subr.mxu0 0.0
    %v2949 = vand.u32 %v2359, 4294901760
    %v2950 = vsub.f32 %v2359, %v2949
    %2951 = vmatpush1.msra.mxu0 %v2950
    %2952 = vmatprep.subr.mxu0 0.0
    %v2953 = vand.u32 %v2360, 4294901760
    %v2954 = vsub.f32 %v2360, %v2953
    %2955 = vmatpush1.msra.mxu0 %v2954
    %2956 = vmatprep.subr.mxu0 0.0
    %v2957 = vand.u32 %v2361, 4294901760
    %v2958 = vsub.f32 %v2361, %v2957
    %2959 = vmatpush1.msra.mxu0 %v2958
    %2960 = vmatprep.subr.mxu0 0.0
    %v2961 = vand.u32 %v2362, 4294901760
    %v2962 = vsub.f32 %v2362, %v2961
    %2963 = vmatpush1.msra.mxu0 %v2962
    %2964 = vmatprep.subr.mxu0 0.0
    %v2965 = vand.u32 %v2363, 4294901760
    %v2966 = vsub.f32 %v2363, %v2965
    %2967 = vmatpush1.msra.mxu0 %v2966
    %2968 = vmatprep.subr.mxu0 0.0
    %v2969 = vand.u32 %v2364, 4294901760
    %v2970 = vsub.f32 %v2364, %v2969
    %2971 = vmatpush1.msra.mxu0 %v2970
    %2972 = vmatprep.subr.mxu0 0.0
    %v2973 = vand.u32 %v2365, 4294901760
    %v2974 = vsub.f32 %v2365, %v2973
    %2975 = vmatpush1.msra.mxu0 %v2974
    %2976 = vmatprep.subr.mxu0 0.0
    %v2977 = vand.u32 %v2366, 4294901760
    %v2978 = vsub.f32 %v2366, %v2977
    %2979 = vmatpush1.msra.mxu0 %v2978
    %2980 = vmatprep.subr.mxu0 0.0
    %v2981 = vand.u32 %v2367, 4294901760
    %v2982 = vsub.f32 %v2367, %v2981
    %2983 = vmatpush1.msra.mxu0 %v2982
    %2984 = vmatprep.subr.mxu0 0.0
    %v2985 = vand.u32 %v2368, 4294901760
    %v2986 = vsub.f32 %v2368, %v2985
    %2987 = vmatpush1.msra.mxu0 %v2986
    %2988 = vmatprep.subr.mxu0 0.0
    %v2989 = vand.u32 %v2369, 4294901760
    %v2990 = vsub.f32 %v2369, %v2989
    %2991 = vmatpush1.msra.mxu0 %v2990
    %2992 = vmatprep.subr.mxu0 0.0
    %v2993 = vand.u32 %v2370, 4294901760
    %v2994 = vsub.f32 %v2370, %v2993
    %2995 = vmatpush1.msra.mxu0 %v2994
    %2996 = vmatprep.subr.mxu0 0.0
    %v2997 = vand.u32 %v2371, 4294901760
    %v2998 = vsub.f32 %v2371, %v2997
    %2999 = vmatpush1.msra.mxu0 %v2998
    %3000 = vmatprep.subr.mxu0 0.0
    %v3001 = vand.u32 %v2372, 4294901760
    %v3002 = vsub.f32 %v2372, %v3001
    %3003 = vmatpush1.msra.mxu0 %v3002
    %3004 = vmatprep.subr.mxu0 0.0
    %v3005 = vand.u32 %v2373, 4294901760
    %v3006 = vsub.f32 %v2373, %v3005
    %3007 = vmatpush1.msra.mxu0 %v3006
    %3008 = vmatprep.subr.mxu0 0.0
    %v3009 = vand.u32 %v2374, 4294901760
    %v3010 = vsub.f32 %v2374, %v3009
    %3011 = vmatpush1.msra.mxu0 %v3010
    %3012 = vmatprep.subr.mxu0 0.0
    %v3013 = vand.u32 %v2375, 4294901760
    %v3014 = vsub.f32 %v2375, %v3013
    %3015 = vmatpush1.msra.mxu0 %v3014
    %3016 = vmatprep.subr.mxu0 0.0
    %v3017 = vand.u32 %v2376, 4294901760
    %v3018 = vsub.f32 %v2376, %v3017
    %3019 = vmatpush1.msra.mxu0 %v3018
    %3020 = vmatprep.subr.mxu0 0.0
    %v3021 = vand.u32 %v2377, 4294901760
    %v3022 = vsub.f32 %v2377, %v3021
    %3023 = vmatpush1.msra.mxu0 %v3022
    %3024 = vmatprep.subr.mxu0 0.0
    %v3025 = vand.u32 %v2378, 4294901760
    %v3026 = vsub.f32 %v2378, %v3025
    %3027 = vmatpush1.msra.mxu0 %v3026
    %v3028 = vand.u32 %v2324, 4294901760
    %v3029 = vsub.f32 %v2324, %v3028
    %3030 = vmatprep.mubr.f32.mxu0 %v3029
    %v3031 = vand.u32 %v2323, 4294901760
    %v3032 = vsub.f32 %v2323, %v3031
    %3033 = vmatmul.mubr.f32.gmra.mrb[0].mxu0 %v3032
    %v3034 = vpop.f32.mrb[0].mxu0
    %v3035 = vadd.f32 %v2848, %v3034
    %v3036 = vpop.f32.mrb[0].mxu0
    %v3037 = vand.u32 %v2327, 4294901760
    %v3038 = vsub.f32 %v2327, %v3037
    %3039 = vmatprep.mubr.f32.mxu0 %v3038
    %v3040 = vand.u32 %v2326, 4294901760
    %v3041 = vsub.f32 %v2326, %v3040
    %3042 = vmatmul.mubr.f32.gmra.mrb[0].mxu0 %v3041
    %v3043 = vpop.f32.mrb[0].mxu0
    %v3044 = vadd.f32 %v2855, %v3043
    %v3045 = vpop.f32.mrb[0].mxu0
    %v3046 = vand.u32 %v2330, 4294901760
    %v3047 = vsub.f32 %v2330, %v3046
    %3048 = vmatprep.mubr.f32.mxu0 %v3047
    %v3049 = vand.u32 %v2329, 4294901760
    %v3050 = vsub.f32 %v2329, %v3049
    %3051 = vmatmul.mubr.f32.gmra.mrb[0].mxu0 %v3050
    %v3052 = vpop.f32.mrb[0].mxu0
    %v3053 = vadd.f32 %v2862, %v3052
    %v3054 = vpop.f32.mrb[0].mxu0
    %v3055 = vand.u32 %v2333, 4294901760
    %v3056 = vsub.f32 %v2333, %v3055
    %3057 = vmatprep.mubr.f32.mxu0 %v3056
    %v3058 = vand.u32 %v2332, 4294901760
    %v3059 = vsub.f32 %v2332, %v3058
    %3060 = vmatmul.mubr.f32.gmra.mrb[0].mxu0 %v3059
    %v3061 = vpop.f32.mrb[0].mxu0
    %v3062 = vadd.f32 %v2869, %v3061
    %v3063 = vpop.f32.mrb[0].mxu0
    %v3064 = vand.u32 %v2336, 4294901760
    %v3065 = vsub.f32 %v2336, %v3064
    %3066 = vmatprep.mubr.f32.mxu0 %v3065
    %v3067 = vand.u32 %v2335, 4294901760
    %v3068 = vsub.f32 %v2335, %v3067
    %3069 = vmatmul.mubr.f32.gmra.mrb[0].mxu0 %v3068
    %v3070 = vpop.f32.mrb[0].mxu0
    %v3071 = vadd.f32 %v2876, %v3070
    %v3072 = vpop.f32.mrb[0].mxu0
    %v3073 = vand.u32 %v2339, 4294901760
    %v3074 = vsub.f32 %v2339, %v3073
    %3075 = vmatprep.mubr.f32.mxu0 %v3074
    %v3076 = vand.u32 %v2338, 4294901760
    %v3077 = vsub.f32 %v2338, %v3076
    %3078 = vmatmul.mubr.f32.gmra.mrb[0].mxu0 %v3077
    %v3079 = vpop.f32.mrb[0].mxu0
    %v3080 = vadd.f32 %v2883, %v3079
    %v3081 = vpop.f32.mrb[0].mxu0
    %v3082 = vand.u32 %v2342, 4294901760
    %v3083 = vsub.f32 %v2342, %v3082
    %3084 = vmatprep.mubr.f32.mxu0 %v3083
    %v3085 = vand.u32 %v2341, 4294901760
    %v3086 = vsub.f32 %v2341, %v3085
    %3087 = vmatmul.mubr.f32.gmra.mrb[0].mxu0 %v3086
    %v3088 = vpop.f32.mrb[0].mxu0
    %v3089 = vadd.f32 %v2890, %v3088
    %v3090 = vpop.f32.mrb[0].mxu0
    %v3091 = vand.u32 %v2345, 4294901760
    %v3092 = vsub.f32 %v2345, %v3091
    %3093 = vmatprep.mubr.f32.mxu0 %v3092
    %v3094 = vand.u32 %v2344, 4294901760
    %v3095 = vsub.f32 %v2344, %v3094
    %3096 = vmatmul.mubr.f32.gmra.mrb[0].mxu0 %v3095
    %v3097 = vpop.f32.mrb[0].mxu0
    %v3098 = vadd.f32 %v2897, %v3097
    %v3099 = vpop.f32.mrb[0].mxu0
    %3100 = vdwg.mxu0
    %3101 = vmatprep.subr.mxu0 0.0
    %v3102 = vand.u32 %v2347, 4294901760
    %3103 = vmatpush1.msra.mxu0 %v3102
    %3104 = vmatprep.subr.mxu0 0.0
    %v3105 = vand.u32 %v2348, 4294901760
    %3106 = vmatpush1.msra.mxu0 %v3105
    %3107 = vmatprep.subr.mxu0 0.0
    %v3108 = vand.u32 %v2349, 4294901760
    %3109 = vmatpush1.msra.mxu0 %v3108
    %3110 = vmatprep.subr.mxu0 0.0
    %v3111 = vand.u32 %v2350, 4294901760
    %3112 = vmatpush1.msra.mxu0 %v3111
    %3113 = vmatprep.subr.mxu0 0.0
    %v3114 = vand.u32 %v2351, 4294901760
    %3115 = vmatpush1.msra.mxu0 %v3114
    %3116 = vmatprep.subr.mxu0 0.0
    %v3117 = vand.u32 %v2352, 4294901760
    %3118 = vmatpush1.msra.mxu0 %v3117
    %3119 = vmatprep.subr.mxu0 0.0
    %v3120 = vand.u32 %v2353, 4294901760
    %3121 = vmatpush1.msra.mxu0 %v3120
    %3122 = vmatprep.subr.mxu0 0.0
    %v3123 = vand.u32 %v2354, 4294901760
    %3124 = vmatpush1.msra.mxu0 %v3123
    %3125 = vmatprep.subr.mxu0 0.0
    %v3126 = vand.u32 %v2355, 4294901760
    %3127 = vmatpush1.msra.mxu0 %v3126
    %3128 = vmatprep.subr.mxu0 0.0
    %v3129 = vand.u32 %v2356, 4294901760
    %3130 = vmatpush1.msra.mxu0 %v3129
    %3131 = vmatprep.subr.mxu0 0.0
    %v3132 = vand.u32 %v2357, 4294901760
    %3133 = vmatpush1.msra.mxu0 %v3132
    %3134 = vmatprep.subr.mxu0 0.0
    %v3135 = vand.u32 %v2358, 4294901760
    %3136 = vmatpush1.msra.mxu0 %v3135
    %3137 = vmatprep.subr.mxu0 0.0
    %v3138 = vand.u32 %v2359, 4294901760
    %3139 = vmatpush1.msra.mxu0 %v3138
    %3140 = vmatprep.subr.mxu0 0.0
    %v3141 = vand.u32 %v2360, 4294901760
    %3142 = vmatpush1.msra.mxu0 %v3141
    %3143 = vmatprep.subr.mxu0 0.0
    %v3144 = vand.u32 %v2361, 4294901760
    %3145 = vmatpush1.msra.mxu0 %v3144
    %3146 = vmatprep.subr.mxu0 0.0
    %v3147 = vand.u32 %v2362, 4294901760
    %3148 = vmatpush1.msra.mxu0 %v3147
    %3149 = vmatprep.subr.mxu0 0.0
    %v3150 = vand.u32 %v2363, 4294901760
    %3151 = vmatpush1.msra.mxu0 %v3150
    %3152 = vmatprep.subr.mxu0 0.0
    %v3153 = vand.u32 %v2364, 4294901760
    %3154 = vmatpush1.msra.mxu0 %v3153
    %3155 = vmatprep.subr.mxu0 0.0
    %v3156 = vand.u32 %v2365, 4294901760
    %3157 = vmatpush1.msra.mxu0 %v3156
    %3158 = vmatprep.subr.mxu0 0.0
    %v3159 = vand.u32 %v2366, 4294901760
    %3160 = vmatpush1.msra.mxu0 %v3159
    %3161 = vmatprep.subr.mxu0 0.0
    %v3162 = vand.u32 %v2367, 4294901760
    %3163 = vmatpush1.msra.mxu0 %v3162
    %3164 = vmatprep.subr.mxu0 0.0
    %v3165 = vand.u32 %v2368, 4294901760
    %3166 = vmatpush1.msra.mxu0 %v3165
    %3167 = vmatprep.subr.mxu0 0.0
    %v3168 = vand.u32 %v2369, 4294901760
    %3169 = vmatpush1.msra.mxu0 %v3168
    %3170 = vmatprep.subr.mxu0 0.0
    %v3171 = vand.u32 %v2370, 4294901760
    %3172 = vmatpush1.msra.mxu0 %v3171
    %3173 = vmatprep.subr.mxu0 0.0
    %v3174 = vand.u32 %v2371, 4294901760
    %3175 = vmatpush1.msra.mxu0 %v3174
    %3176 = vmatprep.subr.mxu0 0.0
    %v3177 = vand.u32 %v2372, 4294901760
    %3178 = vmatpush1.msra.mxu0 %v3177
    %3179 = vmatprep.subr.mxu0 0.0
    %v3180 = vand.u32 %v2373, 4294901760
    %3181 = vmatpush1.msra.mxu0 %v3180
    %3182 = vmatprep.subr.mxu0 0.0
    %v3183 = vand.u32 %v2374, 4294901760
    %3184 = vmatpush1.msra.mxu0 %v3183
    %3185 = vmatprep.subr.mxu0 0.0
    %v3186 = vand.u32 %v2375, 4294901760
    %3187 = vmatpush1.msra.mxu0 %v3186
    %3188 = vmatprep.subr.mxu0 0.0
    %v3189 = vand.u32 %v2376, 4294901760
    %3190 = vmatpush1.msra.mxu0 %v3189
    %3191 = vmatprep.subr.mxu0 0.0
    %v3192 = vand.u32 %v2377, 4294901760
    %3193 = vmatpush1.msra.mxu0 %v3192
    %3194 = vmatprep.subr.mxu0 0.0
    %v3195 = vand.u32 %v2378, 4294901760
    %3196 = vmatpush1.msra.mxu0 %v3195
    %v3197 = vand.u32 %v2324, 4294901760
    %v3198 = vsub.f32 %v2324, %v3197
    %v3199 = vand.u32 %v3198, 4294901760
    %3200 = vmatprep.mubr.f32.mxu0 %v3199
    %v3201 = vand.u32 %v2323, 4294901760
    %v3202 = vsub.f32 %v2323, %v3201
    %v3203 = vand.u32 %v3202, 4294901760
    %3204 = vmatmul.mubr.f32.gmra.mrb[0].mxu0 %v3203
    %v3205 = vpop.f32.mrb[0].mxu0
    %v3206 = vadd.f32 %v3035, %v3205
    %v3207 = vpop.f32.mrb[0].mxu0
    %v3208 = vand.u32 %v2327, 4294901760
    %v3209 = vsub.f32 %v2327, %v3208
    %v3210 = vand.u32 %v3209, 4294901760
    %3211 = vmatprep.mubr.f32.mxu0 %v3210
    %v3212 = vand.u32 %v2326, 4294901760
    %v3213 = vsub.f32 %v2326, %v3212
    %v3214 = vand.u32 %v3213, 4294901760
    %3215 = vmatmul.mubr.f32.gmra.mrb[0].mxu0 %v3214
    %v3216 = vpop.f32.mrb[0].mxu0
    %v3217 = vadd.f32 %v3044, %v3216
    %v3218 = vpop.f32.mrb[0].mxu0
    %v3219 = vand.u32 %v2330, 4294901760
    %v3220 = vsub.f32 %v2330, %v3219
    %v3221 = vand.u32 %v3220, 4294901760
    %3222 = vmatprep.mubr.f32.mxu0 %v3221
    %v3223 = vand.u32 %v2329, 4294901760
    %v3224 = vsub.f32 %v2329, %v3223
    %v3225 = vand.u32 %v3224, 4294901760
    %3226 = vmatmul.mubr.f32.gmra.mrb[0].mxu0 %v3225
    %v3227 = vpop.f32.mrb[0].mxu0
    %v3228 = vadd.f32 %v3053, %v3227
    %v3229 = vpop.f32.mrb[0].mxu0
    %v3230 = vand.u32 %v2333, 4294901760
    %v3231 = vsub.f32 %v2333, %v3230
    %v3232 = vand.u32 %v3231, 4294901760
    %3233 = vmatprep.mubr.f32.mxu0 %v3232
    %v3234 = vand.u32 %v2332, 4294901760
    %v3235 = vsub.f32 %v2332, %v3234
    %v3236 = vand.u32 %v3235, 4294901760
    %3237 = vmatmul.mubr.f32.gmra.mrb[0].mxu0 %v3236
    %v3238 = vpop.f32.mrb[0].mxu0
    %v3239 = vadd.f32 %v3062, %v3238
    %v3240 = vpop.f32.mrb[0].mxu0
    %v3241 = vand.u32 %v2336, 4294901760
    %v3242 = vsub.f32 %v2336, %v3241
    %v3243 = vand.u32 %v3242, 4294901760
    %3244 = vmatprep.mubr.f32.mxu0 %v3243
    %v3245 = vand.u32 %v2335, 4294901760
    %v3246 = vsub.f32 %v2335, %v3245
    %v3247 = vand.u32 %v3246, 4294901760
    %3248 = vmatmul.mubr.f32.gmra.mrb[0].mxu0 %v3247
    %v3249 = vpop.f32.mrb[0].mxu0
    %v3250 = vadd.f32 %v3071, %v3249
    %v3251 = vpop.f32.mrb[0].mxu0
    %v3252 = vand.u32 %v2339, 4294901760
    %v3253 = vsub.f32 %v2339, %v3252
    %v3254 = vand.u32 %v3253, 4294901760
    %3255 = vmatprep.mubr.f32.mxu0 %v3254
    %v3256 = vand.u32 %v2338, 4294901760
    %v3257 = vsub.f32 %v2338, %v3256
    %v3258 = vand.u32 %v3257, 4294901760
    %3259 = vmatmul.mubr.f32.gmra.mrb[0].mxu0 %v3258
    %v3260 = vpop.f32.mrb[0].mxu0
    %v3261 = vadd.f32 %v3080, %v3260
    %v3262 = vpop.f32.mrb[0].mxu0
    %v3263 = vand.u32 %v2342, 4294901760
    %v3264 = vsub.f32 %v2342, %v3263
    %v3265 = vand.u32 %v3264, 4294901760
    %3266 = vmatprep.mubr.f32.mxu0 %v3265
    %v3267 = vand.u32 %v2341, 4294901760
    %v3268 = vsub.f32 %v2341, %v3267
    %v3269 = vand.u32 %v3268, 4294901760
    %3270 = vmatmul.mubr.f32.gmra.mrb[0].mxu0 %v3269
    %v3271 = vpop.f32.mrb[0].mxu0
    %v3272 = vadd.f32 %v3089, %v3271
    %v3273 = vpop.f32.mrb[0].mxu0
    %v3274 = vand.u32 %v2345, 4294901760
    %v3275 = vsub.f32 %v2345, %v3274
    %v3276 = vand.u32 %v3275, 4294901760
    %3277 = vmatprep.mubr.f32.mxu0 %v3276
    %v3278 = vand.u32 %v2344, 4294901760
    %v3279 = vsub.f32 %v2344, %v3278
    %v3280 = vand.u32 %v3279, 4294901760
    %3281 = vmatmul.mubr.f32.gmra.mrb[0].mxu0 %v3280
    %v3282 = vpop.f32.mrb[0].mxu0
    %v3283 = vadd.f32 %v3098, %v3282
    %v3284 = vpop.f32.mrb[0].mxu0
    %3285 = vdwg.mxu0
    %3286 = vmatprep.subr.mxu0 0.0
    %v3287 = vand.u32 %v2347, 4294901760
    %v3288 = vsub.f32 %v2347, %v3287
    %v3289 = vand.u32 %v3288, 4294901760
    %3290 = vmatpush1.msra.mxu0 %v3289
    %3291 = vmatprep.subr.mxu0 0.0
    %v3292 = vand.u32 %v2348, 4294901760
    %v3293 = vsub.f32 %v2348, %v3292
    %v3294 = vand.u32 %v3293, 4294901760
    %3295 = vmatpush1.msra.mxu0 %v3294
    %3296 = vmatprep.subr.mxu0 0.0
    %v3297 = vand.u32 %v2349, 4294901760
    %v3298 = vsub.f32 %v2349, %v3297
    %v3299 = vand.u32 %v3298, 4294901760
    %3300 = vmatpush1.msra.mxu0 %v3299
    %3301 = vmatprep.subr.mxu0 0.0
    %v3302 = vand.u32 %v2350, 4294901760
    %v3303 = vsub.f32 %v2350, %v3302
    %v3304 = vand.u32 %v3303, 4294901760
    %3305 = vmatpush1.msra.mxu0 %v3304
    %3306 = vmatprep.subr.mxu0 0.0
    %v3307 = vand.u32 %v2351, 4294901760
    %v3308 = vsub.f32 %v2351, %v3307
    %v3309 = vand.u32 %v3308, 4294901760
    %3310 = vmatpush1.msra.mxu0 %v3309
    %3311 = vmatprep.subr.mxu0 0.0
    %v3312 = vand.u32 %v2352, 4294901760
    %v3313 = vsub.f32 %v2352, %v3312
    %v3314 = vand.u32 %v3313, 4294901760
    %3315 = vmatpush1.msra.mxu0 %v3314
    %3316 = vmatprep.subr.mxu0 0.0
    %v3317 = vand.u32 %v2353, 4294901760
    %v3318 = vsub.f32 %v2353, %v3317
    %v3319 = vand.u32 %v3318, 4294901760
    %3320 = vmatpush1.msra.mxu0 %v3319
    %3321 = vmatprep.subr.mxu0 0.0
    %v3322 = vand.u32 %v2354, 4294901760
    %v3323 = vsub.f32 %v2354, %v3322
    %v3324 = vand.u32 %v3323, 4294901760
    %3325 = vmatpush1.msra.mxu0 %v3324
    %3326 = vmatprep.subr.mxu0 0.0
    %v3327 = vand.u32 %v2355, 4294901760
    %v3328 = vsub.f32 %v2355, %v3327
    %v3329 = vand.u32 %v3328, 4294901760
    %3330 = vmatpush1.msra.mxu0 %v3329
    %3331 = vmatprep.subr.mxu0 0.0
    %v3332 = vand.u32 %v2356, 4294901760
    %v3333 = vsub.f32 %v2356, %v3332
    %v3334 = vand.u32 %v3333, 4294901760
    %3335 = vmatpush1.msra.mxu0 %v3334
    %3336 = vmatprep.subr.mxu0 0.0
    %v3337 = vand.u32 %v2357, 4294901760
    %v3338 = vsub.f32 %v2357, %v3337
    %v3339 = vand.u32 %v3338, 4294901760
    %3340 = vmatpush1.msra.mxu0 %v3339
    %3341 = vmatprep.subr.mxu0 0.0
    %v3342 = vand.u32 %v2358, 4294901760
    %v3343 = vsub.f32 %v2358, %v3342
    %v3344 = vand.u32 %v3343, 4294901760
    %3345 = vmatpush1.msra.mxu0 %v3344
    %3346 = vmatprep.subr.mxu0 0.0
    %v3347 = vand.u32 %v2359, 4294901760
    %v3348 = vsub.f32 %v2359, %v3347
    %v3349 = vand.u32 %v3348, 4294901760
    %3350 = vmatpush1.msra.mxu0 %v3349
    %3351 = vmatprep.subr.mxu0 0.0
    %v3352 = vand.u32 %v2360, 4294901760
    %v3353 = vsub.f32 %v2360, %v3352
    %v3354 = vand.u32 %v3353, 4294901760
    %3355 = vmatpush1.msra.mxu0 %v3354
    %3356 = vmatprep.subr.mxu0 0.0
    %v3357 = vand.u32 %v2361, 4294901760
    %v3358 = vsub.f32 %v2361, %v3357
    %v3359 = vand.u32 %v3358, 4294901760
    %3360 = vmatpush1.msra.mxu0 %v3359
    %3361 = vmatprep.subr.mxu0 0.0
    %v3362 = vand.u32 %v2362, 4294901760
    %v3363 = vsub.f32 %v2362, %v3362
    %v3364 = vand.u32 %v3363, 4294901760
    %3365 = vmatpush1.msra.mxu0 %v3364
    %3366 = vmatprep.subr.mxu0 0.0
    %v3367 = vand.u32 %v2363, 4294901760
    %v3368 = vsub.f32 %v2363, %v3367
    %v3369 = vand.u32 %v3368, 4294901760
    %3370 = vmatpush1.msra.mxu0 %v3369
    %3371 = vmatprep.subr.mxu0 0.0
    %v3372 = vand.u32 %v2364, 4294901760
    %v3373 = vsub.f32 %v2364, %v3372
    %v3374 = vand.u32 %v3373, 4294901760
    %3375 = vmatpush1.msra.mxu0 %v3374
    %3376 = vmatprep.subr.mxu0 0.0
    %v3377 = vand.u32 %v2365, 4294901760
    %v3378 = vsub.f32 %v2365, %v3377
    %v3379 = vand.u32 %v3378, 4294901760
    %3380 = vmatpush1.msra.mxu0 %v3379
    %3381 = vmatprep.subr.mxu0 0.0
    %v3382 = vand.u32 %v2366, 4294901760
    %v3383 = vsub.f32 %v2366, %v3382
    %v3384 = vand.u32 %v3383, 4294901760
    %3385 = vmatpush1.msra.mxu0 %v3384
    %3386 = vmatprep.subr.mxu0 0.0
    %v3387 = vand.u32 %v2367, 4294901760
    %v3388 = vsub.f32 %v2367, %v3387
    %v3389 = vand.u32 %v3388, 4294901760
    %3390 = vmatpush1.msra.mxu0 %v3389
    %3391 = vmatprep.subr.mxu0 0.0
    %v3392 = vand.u32 %v2368, 4294901760
    %v3393 = vsub.f32 %v2368, %v3392
    %v3394 = vand.u32 %v3393, 4294901760
    %3395 = vmatpush1.msra.mxu0 %v3394
    %3396 = vmatprep.subr.mxu0 0.0
    %v3397 = vand.u32 %v2369, 4294901760
    %v3398 = vsub.f32 %v2369, %v3397
    %v3399 = vand.u32 %v3398, 4294901760
    %3400 = vmatpush1.msra.mxu0 %v3399
    %3401 = vmatprep.subr.mxu0 0.0
    %v3402 = vand.u32 %v2370, 4294901760
    %v3403 = vsub.f32 %v2370, %v3402
    %v3404 = vand.u32 %v3403, 4294901760
    %3405 = vmatpush1.msra.mxu0 %v3404
    %3406 = vmatprep.subr.mxu0 0.0
    %v3407 = vand.u32 %v2371, 4294901760
    %v3408 = vsub.f32 %v2371, %v3407
    %v3409 = vand.u32 %v3408, 4294901760
    %3410 = vmatpush1.msra.mxu0 %v3409
    %3411 = vmatprep.subr.mxu0 0.0
    %v3412 = vand.u32 %v2372, 4294901760
    %v3413 = vsub.f32 %v2372, %v3412
    %v3414 = vand.u32 %v3413, 4294901760
    %3415 = vmatpush1.msra.mxu0 %v3414
    %3416 = vmatprep.subr.mxu0 0.0
    %v3417 = vand.u32 %v2373, 4294901760
    %v3418 = vsub.f32 %v2373, %v3417
    %v3419 = vand.u32 %v3418, 4294901760
    %3420 = vmatpush1.msra.mxu0 %v3419
    %3421 = vmatprep.subr.mxu0 0.0
    %v3422 = vand.u32 %v2374, 4294901760
    %v3423 = vsub.f32 %v2374, %v3422
    %v3424 = vand.u32 %v3423, 4294901760
    %3425 = vmatpush1.msra.mxu0 %v3424
    %3426 = vmatprep.subr.mxu0 0.0
    %v3427 = vand.u32 %v2375, 4294901760
    %v3428 = vsub.f32 %v2375, %v3427
    %v3429 = vand.u32 %v3428, 4294901760
    %3430 = vmatpush1.msra.mxu0 %v3429
    %3431 = vmatprep.subr.mxu0 0.0
    %v3432 = vand.u32 %v2376, 4294901760
    %v3433 = vsub.f32 %v2376, %v3432
    %v3434 = vand.u32 %v3433, 4294901760
    %3435 = vmatpush1.msra.mxu0 %v3434
    %3436 = vmatprep.subr.mxu0 0.0
    %v3437 = vand.u32 %v2377, 4294901760
    %v3438 = vsub.f32 %v2377, %v3437
    %v3439 = vand.u32 %v3438, 4294901760
    %3440 = vmatpush1.msra.mxu0 %v3439
    %3441 = vmatprep.subr.mxu0 0.0
    %v3442 = vand.u32 %v2378, 4294901760
    %v3443 = vsub.f32 %v2378, %v3442
    %v3444 = vand.u32 %v3443, 4294901760
    %3445 = vmatpush1.msra.mxu0 %v3444
    %v3446 = vand.u32 %v2324, 4294901760
    %3447 = vmatprep.mubr.f32.mxu0 %v3446
    %v3448 = vand.u32 %v2323, 4294901760
    %3449 = vmatmul.mubr.f32.gmra.mrb[0].mxu0 %v3448
    %v3450 = vpop.f32.mrb[0].mxu0
    %v3451 = vadd.f32 %v3206, %v3450
    %v3452 = vpop.f32.mrb[0].mxu0
    %v3453 = vand.u32 %v2327, 4294901760
    %3454 = vmatprep.mubr.f32.mxu0 %v3453
    %v3455 = vand.u32 %v2326, 4294901760
    %3456 = vmatmul.mubr.f32.gmra.mrb[0].mxu0 %v3455
    %v3457 = vpop.f32.mrb[0].mxu0
    %v3458 = vadd.f32 %v3217, %v3457
    %v3459 = vpop.f32.mrb[0].mxu0
    %v3460 = vand.u32 %v2330, 4294901760
    %3461 = vmatprep.mubr.f32.mxu0 %v3460
    %v3462 = vand.u32 %v2329, 4294901760
    %3463 = vmatmul.mubr.f32.gmra.mrb[0].mxu0 %v3462
    %v3464 = vpop.f32.mrb[0].mxu0
    %v3465 = vadd.f32 %v3228, %v3464
    %v3466 = vpop.f32.mrb[0].mxu0
    %v3467 = vand.u32 %v2333, 4294901760
    %3468 = vmatprep.mubr.f32.mxu0 %v3467
    %v3469 = vand.u32 %v2332, 4294901760
    %3470 = vmatmul.mubr.f32.gmra.mrb[0].mxu0 %v3469
    %v3471 = vpop.f32.mrb[0].mxu0
    %v3472 = vadd.f32 %v3239, %v3471
    %v3473 = vpop.f32.mrb[0].mxu0
    %v3474 = vand.u32 %v2336, 4294901760
    %3475 = vmatprep.mubr.f32.mxu0 %v3474
    %v3476 = vand.u32 %v2335, 4294901760
    %3477 = vmatmul.mubr.f32.gmra.mrb[0].mxu0 %v3476
    %v3478 = vpop.f32.mrb[0].mxu0
    %v3479 = vadd.f32 %v3250, %v3478
    %v3480 = vpop.f32.mrb[0].mxu0
    %v3481 = vand.u32 %v2339, 4294901760
    %3482 = vmatprep.mubr.f32.mxu0 %v3481
    %v3483 = vand.u32 %v2338, 4294901760
    %3484 = vmatmul.mubr.f32.gmra.mrb[0].mxu0 %v3483
    %v3485 = vpop.f32.mrb[0].mxu0
    %v3486 = vadd.f32 %v3261, %v3485
    %v3487 = vpop.f32.mrb[0].mxu0
    %v3488 = vand.u32 %v2342, 4294901760
    %3489 = vmatprep.mubr.f32.mxu0 %v3488
    %v3490 = vand.u32 %v2341, 4294901760
    %3491 = vmatmul.mubr.f32.gmra.mrb[0].mxu0 %v3490
    %v3492 = vpop.f32.mrb[0].mxu0
    %v3493 = vadd.f32 %v3272, %v3492
    %v3494 = vpop.f32.mrb[0].mxu0
    %v3495 = vand.u32 %v2345, 4294901760
    %3496 = vmatprep.mubr.f32.mxu0 %v3495
    %v3497 = vand.u32 %v2344, 4294901760
    %3498 = vmatmul.mubr.f32.gmra.mrb[0].mxu0 %v3497
    %v3499 = vpop.f32.mrb[0].mxu0
    %v3500 = vadd.f32 %v3283, %v3499
    %v3501 = vpop.f32.mrb[0].mxu0
    %3502 = vdwg.mxu0
    %3503 = vmatprep.subr.mxu0 0.0
    %v3504 = vand.u32 %v2347, 4294901760
    %3505 = vmatpush1.msra.mxu0 %v3504
    %3506 = vmatprep.subr.mxu0 0.0
    %v3507 = vand.u32 %v2348, 4294901760
    %3508 = vmatpush1.msra.mxu0 %v3507
    %3509 = vmatprep.subr.mxu0 0.0
    %v3510 = vand.u32 %v2349, 4294901760
    %3511 = vmatpush1.msra.mxu0 %v3510
    %3512 = vmatprep.subr.mxu0 0.0
    %v3513 = vand.u32 %v2350, 4294901760
    %3514 = vmatpush1.msra.mxu0 %v3513
    %3515 = vmatprep.subr.mxu0 0.0
    %v3516 = vand.u32 %v2351, 4294901760
    %3517 = vmatpush1.msra.mxu0 %v3516
    %3518 = vmatprep.subr.mxu0 0.0
    %v3519 = vand.u32 %v2352, 4294901760
    %3520 = vmatpush1.msra.mxu0 %v3519
    %3521 = vmatprep.subr.mxu0 0.0
    %v3522 = vand.u32 %v2353, 4294901760
    %3523 = vmatpush1.msra.mxu0 %v3522
    %3524 = vmatprep.subr.mxu0 0.0
    %v3525 = vand.u32 %v2354, 4294901760
    %3526 = vmatpush1.msra.mxu0 %v3525
    %3527 = vmatprep.subr.mxu0 0.0
    %v3528 = vand.u32 %v2355, 4294901760
    %3529 = vmatpush1.msra.mxu0 %v3528
    %3530 = vmatprep.subr.mxu0 0.0
    %v3531 = vand.u32 %v2356, 4294901760
    %3532 = vmatpush1.msra.mxu0 %v3531
    %3533 = vmatprep.subr.mxu0 0.0
    %v3534 = vand.u32 %v2357, 4294901760
    %3535 = vmatpush1.msra.mxu0 %v3534
    %3536 = vmatprep.subr.mxu0 0.0
    %v3537 = vand.u32 %v2358, 4294901760
    %3538 = vmatpush1.msra.mxu0 %v3537
    %3539 = vmatprep.subr.mxu0 0.0
    %v3540 = vand.u32 %v2359, 4294901760
    %3541 = vmatpush1.msra.mxu0 %v3540
    %3542 = vmatprep.subr.mxu0 0.0
    %v3543 = vand.u32 %v2360, 4294901760
    %3544 = vmatpush1.msra.mxu0 %v3543
    %3545 = vmatprep.subr.mxu0 0.0
    %v3546 = vand.u32 %v2361, 4294901760
    %3547 = vmatpush1.msra.mxu0 %v3546
    %3548 = vmatprep.subr.mxu0 0.0
    %v3549 = vand.u32 %v2362, 4294901760
    %3550 = vmatpush1.msra.mxu0 %v3549
    %3551 = vmatprep.subr.mxu0 0.0
    %v3552 = vand.u32 %v2363, 4294901760
    %3553 = vmatpush1.msra.mxu0 %v3552
    %3554 = vmatprep.subr.mxu0 0.0
    %v3555 = vand.u32 %v2364, 4294901760
    %3556 = vmatpush1.msra.mxu0 %v3555
    %3557 = vmatprep.subr.mxu0 0.0
    %v3558 = vand.u32 %v2365, 4294901760
    %3559 = vmatpush1.msra.mxu0 %v3558
    %3560 = vmatprep.subr.mxu0 0.0
    %v3561 = vand.u32 %v2366, 4294901760
    %3562 = vmatpush1.msra.mxu0 %v3561
    %3563 = vmatprep.subr.mxu0 0.0
    %v3564 = vand.u32 %v2367, 4294901760
    %3565 = vmatpush1.msra.mxu0 %v3564
    %3566 = vmatprep.subr.mxu0 0.0
    %v3567 = vand.u32 %v2368, 4294901760
    %3568 = vmatpush1.msra.mxu0 %v3567
    %3569 = vmatprep.subr.mxu0 0.0
    %v3570 = vand.u32 %v2369, 4294901760
    %3571 = vmatpush1.msra.mxu0 %v3570
    %3572 = vmatprep.subr.mxu0 0.0
    %v3573 = vand.u32 %v2370, 4294901760
    %3574 = vmatpush1.msra.mxu0 %v3573
    %3575 = vmatprep.subr.mxu0 0.0
    %v3576 = vand.u32 %v2371, 4294901760
    %3577 = vmatpush1.msra.mxu0 %v3576
    %3578 = vmatprep.subr.mxu0 0.0
    %v3579 = vand.u32 %v2372, 4294901760
    %3580 = vmatpush1.msra.mxu0 %v3579
    %3581 = vmatprep.subr.mxu0 0.0
    %v3582 = vand.u32 %v2373, 4294901760
    %3583 = vmatpush1.msra.mxu0 %v3582
    %3584 = vmatprep.subr.mxu0 0.0
    %v3585 = vand.u32 %v2374, 4294901760
    %3586 = vmatpush1.msra.mxu0 %v3585
    %3587 = vmatprep.subr.mxu0 0.0
    %v3588 = vand.u32 %v2375, 4294901760
    %3589 = vmatpush1.msra.mxu0 %v3588
    %3590 = vmatprep.subr.mxu0 0.0
    %v3591 = vand.u32 %v2376, 4294901760
    %3592 = vmatpush1.msra.mxu0 %v3591
    %3593 = vmatprep.subr.mxu0 0.0
    %v3594 = vand.u32 %v2377, 4294901760
    %3595 = vmatpush1.msra.mxu0 %v3594
    %3596 = vmatprep.subr.mxu0 0.0
    %v3597 = vand.u32 %v2378, 4294901760
    %3598 = vmatpush1.msra.mxu0 %v3597
    %v3599 = vand.u32 %v2324, 4294901760
    %3600 = vmatprep.mubr.f32.mxu0 %v3599
    %v3601 = vand.u32 %v2323, 4294901760
    %3602 = vmatmul.mubr.f32.gmra.mrb[0].mxu0 %v3601
    %v3603 = vpop.f32.mrb[0].mxu0
    %v3604 = vadd.f32 %v3451, %v3603
    %v3605 = vpop.f32.mrb[0].mxu0
    %v3606 = vand.u32 %v2327, 4294901760
    %3607 = vmatprep.mubr.f32.mxu0 %v3606
    %v3608 = vand.u32 %v2326, 4294901760
    %3609 = vmatmul.mubr.f32.gmra.mrb[0].mxu0 %v3608
    %v3610 = vpop.f32.mrb[0].mxu0
    %v3611 = vadd.f32 %v3458, %v3610
    %v3612 = vpop.f32.mrb[0].mxu0
    %v3613 = vand.u32 %v2330, 4294901760
    %3614 = vmatprep.mubr.f32.mxu0 %v3613
    %v3615 = vand.u32 %v2329, 4294901760
    %3616 = vmatmul.mubr.f32.gmra.mrb[0].mxu0 %v3615
    %v3617 = vpop.f32.mrb[0].mxu0
    %v3618 = vadd.f32 %v3465, %v3617
    %v3619 = vpop.f32.mrb[0].mxu0
    %v3620 = vand.u32 %v2333, 4294901760
    %3621 = vmatprep.mubr.f32.mxu0 %v3620
    %v3622 = vand.u32 %v2332, 4294901760
    %3623 = vmatmul.mubr.f32.gmra.mrb[0].mxu0 %v3622
    %v3624 = vpop.f32.mrb[0].mxu0
    %v3625 = vadd.f32 %v3472, %v3624
    %v3626 = vpop.f32.mrb[0].mxu0
    %v3627 = vand.u32 %v2336, 4294901760
    %3628 = vmatprep.mubr.f32.mxu0 %v3627
    %v3629 = vand.u32 %v2335, 4294901760
    %3630 = vmatmul.mubr.f32.gmra.mrb[0].mxu0 %v3629
    %v3631 = vpop.f32.mrb[0].mxu0
    %v3632 = vadd.f32 %v3479, %v3631
    %v3633 = vpop.f32.mrb[0].mxu0
    %v3634 = vand.u32 %v2339, 4294901760
    %3635 = vmatprep.mubr.f32.mxu0 %v3634
    %v3636 = vand.u32 %v2338, 4294901760
    %3637 = vmatmul.mubr.f32.gmra.mrb[0].mxu0 %v3636
    %v3638 = vpop.f32.mrb[0].mxu0
    %v3639 = vadd.f32 %v3486, %v3638
    %v3640 = vpop.f32.mrb[0].mxu0
    %v3641 = vand.u32 %v2342, 4294901760
    %3642 = vmatprep.mubr.f32.mxu0 %v3641
    %v3643 = vand.u32 %v2341, 4294901760
    %3644 = vmatmul.mubr.f32.gmra.mrb[0].mxu0 %v3643
    %v3645 = vpop.f32.mrb[0].mxu0
    %v3646 = vadd.f32 %v3493, %v3645
    %v3647 = vpop.f32.mrb[0].mxu0
    %v3648 = vand.u32 %v2345, 4294901760
    %3649 = vmatprep.mubr.f32.mxu0 %v3648
    %v3650 = vand.u32 %v2344, 4294901760
    %3651 = vmatmul.mubr.f32.gmra.mrb[0].mxu0 %v3650
    %v3652 = vpop.f32.mrb[0].mxu0
    %v3653 = vadd.f32 %v3500, %v3652
    %v3654 = vpop.f32.mrb[0].mxu0
    %3655 = vdwg.mxu0
    %3656 = vmatprep.subr.mxu0 0.0
    %v3657 = vand.u32 %v2379, 4294901760
    %3658 = vmatpush1.msra.mxu0 %v3657
    %3659 = vmatprep.subr.mxu0 0.0
    %v3660 = vand.u32 %v2380, 4294901760
    %3661 = vmatpush1.msra.mxu0 %v3660
    %3662 = vmatprep.subr.mxu0 0.0
    %v3663 = vand.u32 %v2381, 4294901760
    %3664 = vmatpush1.msra.mxu0 %v3663
    %3665 = vmatprep.subr.mxu0 0.0
    %v3666 = vand.u32 %v2382, 4294901760
    %3667 = vmatpush1.msra.mxu0 %v3666
    %3668 = vmatprep.subr.mxu0 0.0
    %v3669 = vand.u32 %v2383, 4294901760
    %3670 = vmatpush1.msra.mxu0 %v3669
    %3671 = vmatprep.subr.mxu0 0.0
    %v3672 = vand.u32 %v2384, 4294901760
    %3673 = vmatpush1.msra.mxu0 %v3672
    %3674 = vmatprep.subr.mxu0 0.0
    %v3675 = vand.u32 %v2385, 4294901760
    %3676 = vmatpush1.msra.mxu0 %v3675
    %3677 = vmatprep.subr.mxu0 0.0
    %v3678 = vand.u32 %v2386, 4294901760
    %3679 = vmatpush1.msra.mxu0 %v3678
    %3680 = vmatprep.subr.mxu0 0.0
    %v3681 = vand.u32 %v2387, 4294901760
    %3682 = vmatpush1.msra.mxu0 %v3681
    %3683 = vmatprep.subr.mxu0 0.0
    %v3684 = vand.u32 %v2388, 4294901760
    %3685 = vmatpush1.msra.mxu0 %v3684
    %3686 = vmatprep.subr.mxu0 0.0
    %v3687 = vand.u32 %v2389, 4294901760
    %3688 = vmatpush1.msra.mxu0 %v3687
    %3689 = vmatprep.subr.mxu0 0.0
    %v3690 = vand.u32 %v2390, 4294901760
    %3691 = vmatpush1.msra.mxu0 %v3690
    %3692 = vmatprep.subr.mxu0 0.0
    %v3693 = vand.u32 %v2391, 4294901760
    %3694 = vmatpush1.msra.mxu0 %v3693
    %3695 = vmatprep.subr.mxu0 0.0
    %v3696 = vand.u32 %v2392, 4294901760
    %3697 = vmatpush1.msra.mxu0 %v3696
    %3698 = vmatprep.subr.mxu0 0.0
    %v3699 = vand.u32 %v2393, 4294901760
    %3700 = vmatpush1.msra.mxu0 %v3699
    %3701 = vmatprep.subr.mxu0 0.0
    %v3702 = vand.u32 %v2394, 4294901760
    %3703 = vmatpush1.msra.mxu0 %v3702
    %3704 = vmatprep.subr.mxu0 0.0
    %3705 = vmatpush1.msra.mxu0 0.0
    %3706 = vmatprep.subr.mxu0 0.0
    %3707 = vmatpush1.msra.mxu0 0.0
    %3708 = vmatprep.subr.mxu0 0.0
    %3709 = vmatpush1.msra.mxu0 0.0
    %3710 = vmatprep.subr.mxu0 0.0
    %3711 = vmatpush1.msra.mxu0 0.0
    %3712 = vmatprep.subr.mxu0 0.0
    %3713 = vmatpush1.msra.mxu0 0.0
    %3714 = vmatprep.subr.mxu0 0.0
    %3715 = vmatpush1.msra.mxu0 0.0
    %3716 = vmatprep.subr.mxu0 0.0
    %3717 = vmatpush1.msra.mxu0 0.0
    %3718 = vmatprep.subr.mxu0 0.0
    %3719 = vmatpush1.msra.mxu0 0.0
    %3720 = vmatprep.subr.mxu0 0.0
    %3721 = vmatpush1.msra.mxu0 0.0
    %3722 = vmatprep.subr.mxu0 0.0
    %3723 = vmatpush1.msra.mxu0 0.0
    %3724 = vmatprep.subr.mxu0 0.0
    %3725 = vmatpush1.msra.mxu0 0.0
    %3726 = vmatprep.subr.mxu0 0.0
    %3727 = vmatpush1.msra.mxu0 0.0
    %3728 = vmatprep.subr.mxu0 0.0
    %3729 = vmatpush1.msra.mxu0 0.0
    %3730 = vmatprep.subr.mxu0 0.0
    %3731 = vmatpush1.msra.mxu0 0.0
    %3732 = vmatprep.subr.mxu0 0.0
    %3733 = vmatpush1.msra.mxu0 0.0
    %3734 = vmatprep.subr.mxu0 0.0
    %3735 = vmatpush1.msra.mxu0 0.0
    %3736 = vmatprep.mubr.f32.mxu0 0.0
    %v3737 = vand.u32 %v2325, 4294901760
    %v3738 = vsub.f32 %v2325, %v3737
    %v3739 = vand.u32 %v3738, 4294901760
    %v3740 = vsub.f32 %v3738, %v3739
    %v3741 = vand.u32 %v3740, 4294901760
    %3742 = vmatmul.mubr.f32.gmra.mrb[0].mxu0 %v3741
    %v3743 = vpop.f32.mrb[0].mxu0
    %v3744 = vadd.f32 %v3604, %v3743
    %v3745 = vpop.f32.mrb[0].mxu0
    %3746 = vmatprep.mubr.f32.mxu0 0.0
    %v3747 = vand.u32 %v2328, 4294901760
    %v3748 = vsub.f32 %v2328, %v3747
    %v3749 = vand.u32 %v3748, 4294901760
    %v3750 = vsub.f32 %v3748, %v3749
    %v3751 = vand.u32 %v3750, 4294901760
    %3752 = vmatmul.mubr.f32.gmra.mrb[0].mxu0 %v3751
    %v3753 = vpop.f32.mrb[0].mxu0
    %v3754 = vadd.f32 %v3611, %v3753
    %v3755 = vpop.f32.mrb[0].mxu0
    %3756 = vmatprep.mubr.f32.mxu0 0.0
    %v3757 = vand.u32 %v2331, 4294901760
    %v3758 = vsub.f32 %v2331, %v3757
    %v3759 = vand.u32 %v3758, 4294901760
    %v3760 = vsub.f32 %v3758, %v3759
    %v3761 = vand.u32 %v3760, 4294901760
    %3762 = vmatmul.mubr.f32.gmra.mrb[0].mxu0 %v3761
    %v3763 = vpop.f32.mrb[0].mxu0
    %v3764 = vadd.f32 %v3618, %v3763
    %v3765 = vpop.f32.mrb[0].mxu0
    %3766 = vmatprep.mubr.f32.mxu0 0.0
    %v3767 = vand.u32 %v2334, 4294901760
    %v3768 = vsub.f32 %v2334, %v3767
    %v3769 = vand.u32 %v3768, 4294901760
    %v3770 = vsub.f32 %v3768, %v3769
    %v3771 = vand.u32 %v3770, 4294901760
    %3772 = vmatmul.mubr.f32.gmra.mrb[0].mxu0 %v3771
    %v3773 = vpop.f32.mrb[0].mxu0
    %v3774 = vadd.f32 %v3625, %v3773
    %v3775 = vpop.f32.mrb[0].mxu0
    %3776 = vmatprep.mubr.f32.mxu0 0.0
    %v3777 = vand.u32 %v2337, 4294901760
    %v3778 = vsub.f32 %v2337, %v3777
    %v3779 = vand.u32 %v3778, 4294901760
    %v3780 = vsub.f32 %v3778, %v3779
    %v3781 = vand.u32 %v3780, 4294901760
    %3782 = vmatmul.mubr.f32.gmra.mrb[0].mxu0 %v3781
    %v3783 = vpop.f32.mrb[0].mxu0
    %v3784 = vadd.f32 %v3632, %v3783
    %v3785 = vpop.f32.mrb[0].mxu0
    %3786 = vmatprep.mubr.f32.mxu0 0.0
    %v3787 = vand.u32 %v2340, 4294901760
    %v3788 = vsub.f32 %v2340, %v3787
    %v3789 = vand.u32 %v3788, 4294901760
    %v3790 = vsub.f32 %v3788, %v3789
    %v3791 = vand.u32 %v3790, 4294901760
    %3792 = vmatmul.mubr.f32.gmra.mrb[0].mxu0 %v3791
    %v3793 = vpop.f32.mrb[0].mxu0
    %v3794 = vadd.f32 %v3639, %v3793
    %v3795 = vpop.f32.mrb[0].mxu0
    %3796 = vmatprep.mubr.f32.mxu0 0.0
    %v3797 = vand.u32 %v2343, 4294901760
    %v3798 = vsub.f32 %v2343, %v3797
    %v3799 = vand.u32 %v3798, 4294901760
    %v3800 = vsub.f32 %v3798, %v3799
    %v3801 = vand.u32 %v3800, 4294901760
    %3802 = vmatmul.mubr.f32.gmra.mrb[0].mxu0 %v3801
    %v3803 = vpop.f32.mrb[0].mxu0
    %v3804 = vadd.f32 %v3646, %v3803
    %v3805 = vpop.f32.mrb[0].mxu0
    %3806 = vmatprep.mubr.f32.mxu0 0.0
    %v3807 = vand.u32 %v2346, 4294901760
    %v3808 = vsub.f32 %v2346, %v3807
    %v3809 = vand.u32 %v3808, 4294901760
    %v3810 = vsub.f32 %v3808, %v3809
    %v3811 = vand.u32 %v3810, 4294901760
    %3812 = vmatmul.mubr.f32.gmra.mrb[0].mxu0 %v3811
    %v3813 = vpop.f32.mrb[0].mxu0
    %v3814 = vadd.f32 %v3653, %v3813
    %v3815 = vpop.f32.mrb[0].mxu0
    %3816 = vdwg.mxu0
    %3817 = vmatprep.subr.mxu0 0.0
    %v3818 = vand.u32 %v2379, 4294901760
    %v3819 = vsub.f32 %v2379, %v3818
    %v3820 = vand.u32 %v3819, 4294901760
    %v3821 = vsub.f32 %v3819, %v3820
    %v3822 = vand.u32 %v3821, 4294901760
    %3823 = vmatpush1.msra.mxu0 %v3822
    %3824 = vmatprep.subr.mxu0 0.0
    %v3825 = vand.u32 %v2380, 4294901760
    %v3826 = vsub.f32 %v2380, %v3825
    %v3827 = vand.u32 %v3826, 4294901760
    %v3828 = vsub.f32 %v3826, %v3827
    %v3829 = vand.u32 %v3828, 4294901760
    %3830 = vmatpush1.msra.mxu0 %v3829
    %3831 = vmatprep.subr.mxu0 0.0
    %v3832 = vand.u32 %v2381, 4294901760
    %v3833 = vsub.f32 %v2381, %v3832
    %v3834 = vand.u32 %v3833, 4294901760
    %v3835 = vsub.f32 %v3833, %v3834
    %v3836 = vand.u32 %v3835, 4294901760
    %3837 = vmatpush1.msra.mxu0 %v3836
    %3838 = vmatprep.subr.mxu0 0.0
    %v3839 = vand.u32 %v2382, 4294901760
    %v3840 = vsub.f32 %v2382, %v3839
    %v3841 = vand.u32 %v3840, 4294901760
    %v3842 = vsub.f32 %v3840, %v3841
    %v3843 = vand.u32 %v3842, 4294901760
    %3844 = vmatpush1.msra.mxu0 %v3843
    %3845 = vmatprep.subr.mxu0 0.0
    %v3846 = vand.u32 %v2383, 4294901760
    %v3847 = vsub.f32 %v2383, %v3846
    %v3848 = vand.u32 %v3847, 4294901760
    %v3849 = vsub.f32 %v3847, %v3848
    %v3850 = vand.u32 %v3849, 4294901760
    %3851 = vmatpush1.msra.mxu0 %v3850
    %3852 = vmatprep.subr.mxu0 0.0
    %v3853 = vand.u32 %v2384, 4294901760
    %v3854 = vsub.f32 %v2384, %v3853
    %v3855 = vand.u32 %v3854, 4294901760
    %v3856 = vsub.f32 %v3854, %v3855
    %v3857 = vand.u32 %v3856, 4294901760
    %3858 = vmatpush1.msra.mxu0 %v3857
    %3859 = vmatprep.subr.mxu0 0.0
    %v3860 = vand.u32 %v2385, 4294901760
    %v3861 = vsub.f32 %v2385, %v3860
    %v3862 = vand.u32 %v3861, 4294901760
    %v3863 = vsub.f32 %v3861, %v3862
    %v3864 = vand.u32 %v3863, 4294901760
    %3865 = vmatpush1.msra.mxu0 %v3864
    %3866 = vmatprep.subr.mxu0 0.0
    %v3867 = vand.u32 %v2386, 4294901760
    %v3868 = vsub.f32 %v2386, %v3867
    %v3869 = vand.u32 %v3868, 4294901760
    %v3870 = vsub.f32 %v3868, %v3869
    %v3871 = vand.u32 %v3870, 4294901760
    %3872 = vmatpush1.msra.mxu0 %v3871
    %3873 = vmatprep.subr.mxu0 0.0
    %v3874 = vand.u32 %v2387, 4294901760
    %v3875 = vsub.f32 %v2387, %v3874
    %v3876 = vand.u32 %v3875, 4294901760
    %v3877 = vsub.f32 %v3875, %v3876
    %v3878 = vand.u32 %v3877, 4294901760
    %3879 = vmatpush1.msra.mxu0 %v3878
    %3880 = vmatprep.subr.mxu0 0.0
    %v3881 = vand.u32 %v2388, 4294901760
    %v3882 = vsub.f32 %v2388, %v3881
    %v3883 = vand.u32 %v3882, 4294901760
    %v3884 = vsub.f32 %v3882, %v3883
    %v3885 = vand.u32 %v3884, 4294901760
    %3886 = vmatpush1.msra.mxu0 %v3885
    %3887 = vmatprep.subr.mxu0 0.0
    %v3888 = vand.u32 %v2389, 4294901760
    %v3889 = vsub.f32 %v2389, %v3888
    %v3890 = vand.u32 %v3889, 4294901760
    %v3891 = vsub.f32 %v3889, %v3890
    %v3892 = vand.u32 %v3891, 4294901760
    %3893 = vmatpush1.msra.mxu0 %v3892
    %3894 = vmatprep.subr.mxu0 0.0
    %v3895 = vand.u32 %v2390, 4294901760
    %v3896 = vsub.f32 %v2390, %v3895
    %v3897 = vand.u32 %v3896, 4294901760
    %v3898 = vsub.f32 %v3896, %v3897
    %v3899 = vand.u32 %v3898, 4294901760
    %3900 = vmatpush1.msra.mxu0 %v3899
    %3901 = vmatprep.subr.mxu0 0.0
    %v3902 = vand.u32 %v2391, 4294901760
    %v3903 = vsub.f32 %v2391, %v3902
    %v3904 = vand.u32 %v3903, 4294901760
    %v3905 = vsub.f32 %v3903, %v3904
    %v3906 = vand.u32 %v3905, 4294901760
    %3907 = vmatpush1.msra.mxu0 %v3906
    %3908 = vmatprep.subr.mxu0 0.0
    %v3909 = vand.u32 %v2392, 4294901760
    %v3910 = vsub.f32 %v2392, %v3909
    %v3911 = vand.u32 %v3910, 4294901760
    %v3912 = vsub.f32 %v3910, %v3911
    %v3913 = vand.u32 %v3912, 4294901760
    %3914 = vmatpush1.msra.mxu0 %v3913
    %3915 = vmatprep.subr.mxu0 0.0
    %v3916 = vand.u32 %v2393, 4294901760
    %v3917 = vsub.f32 %v2393, %v3916
    %v3918 = vand.u32 %v3917, 4294901760
    %v3919 = vsub.f32 %v3917, %v3918
    %v3920 = vand.u32 %v3919, 4294901760
    %3921 = vmatpush1.msra.mxu0 %v3920
    %3922 = vmatprep.subr.mxu0 0.0
    %v3923 = vand.u32 %v2394, 4294901760
    %v3924 = vsub.f32 %v2394, %v3923
    %v3925 = vand.u32 %v3924, 4294901760
    %v3926 = vsub.f32 %v3924, %v3925
    %v3927 = vand.u32 %v3926, 4294901760
    %3928 = vmatpush1.msra.mxu0 %v3927
    %3929 = vmatprep.subr.mxu0 0.0
    %3930 = vmatpush1.msra.mxu0 0.0
    %3931 = vmatprep.subr.mxu0 0.0
    %3932 = vmatpush1.msra.mxu0 0.0
    %3933 = vmatprep.subr.mxu0 0.0
    %3934 = vmatpush1.msra.mxu0 0.0
    %3935 = vmatprep.subr.mxu0 0.0
    %3936 = vmatpush1.msra.mxu0 0.0
    %3937 = vmatprep.subr.mxu0 0.0
    %3938 = vmatpush1.msra.mxu0 0.0
    %3939 = vmatprep.subr.mxu0 0.0
    %3940 = vmatpush1.msra.mxu0 0.0
    %3941 = vmatprep.subr.mxu0 0.0
    %3942 = vmatpush1.msra.mxu0 0.0
    %3943 = vmatprep.subr.mxu0 0.0
    %3944 = vmatpush1.msra.mxu0 0.0
    %3945 = vmatprep.subr.mxu0 0.0
    %3946 = vmatpush1.msra.mxu0 0.0
    %3947 = vmatprep.subr.mxu0 0.0
    %3948 = vmatpush1.msra.mxu0 0.0
    %3949 = vmatprep.subr.mxu0 0.0
    %3950 = vmatpush1.msra.mxu0 0.0
    %3951 = vmatprep.subr.mxu0 0.0
    %3952 = vmatpush1.msra.mxu0 0.0
    %3953 = vmatprep.subr.mxu0 0.0
    %3954 = vmatpush1.msra.mxu0 0.0
    %3955 = vmatprep.subr.mxu0 0.0
    %3956 = vmatpush1.msra.mxu0 0.0
    %3957 = vmatprep.subr.mxu0 0.0
    %3958 = vmatpush1.msra.mxu0 0.0
    %3959 = vmatprep.subr.mxu0 0.0
    %3960 = vmatpush1.msra.mxu0 0.0
    %3961 = vmatprep.mubr.f32.mxu0 0.0
    %v3962 = vand.u32 %v2325, 4294901760
    %3963 = vmatmul.mubr.f32.gmra.mrb[0].mxu0 %v3962
    %v3964 = vpop.f32.mrb[0].mxu0
    %v3965 = vadd.f32 %v3744, %v3964
    %v3966 = vpop.f32.mrb[0].mxu0
    %3967 = vmatprep.mubr.f32.mxu0 0.0
    %v3968 = vand.u32 %v2328, 4294901760
    %3969 = vmatmul.mubr.f32.gmra.mrb[0].mxu0 %v3968
    %v3970 = vpop.f32.mrb[0].mxu0
    %v3971 = vadd.f32 %v3754, %v3970
    %v3972 = vpop.f32.mrb[0].mxu0
    %3973 = vmatprep.mubr.f32.mxu0 0.0
    %v3974 = vand.u32 %v2331, 4294901760
    %3975 = vmatmul.mubr.f32.gmra.mrb[0].mxu0 %v3974
    %v3976 = vpop.f32.mrb[0].mxu0
    %v3977 = vadd.f32 %v3764, %v3976
    %v3978 = vpop.f32.mrb[0].mxu0
    %3979 = vmatprep.mubr.f32.mxu0 0.0
    %v3980 = vand.u32 %v2334, 4294901760
    %3981 = vmatmul.mubr.f32.gmra.mrb[0].mxu0 %v3980
    %v3982 = vpop.f32.mrb[0].mxu0
    %v3983 = vadd.f32 %v3774, %v3982
    %v3984 = vpop.f32.mrb[0].mxu0
    %3985 = vmatprep.mubr.f32.mxu0 0.0
    %v3986 = vand.u32 %v2337, 4294901760
    %3987 = vmatmul.mubr.f32.gmra.mrb[0].mxu0 %v3986
    %v3988 = vpop.f32.mrb[0].mxu0
    %v3989 = vadd.f32 %v3784, %v3988
    %v3990 = vpop.f32.mrb[0].mxu0
    %3991 = vmatprep.mubr.f32.mxu0 0.0
    %v3992 = vand.u32 %v2340, 4294901760
    %3993 = vmatmul.mubr.f32.gmra.mrb[0].mxu0 %v3992
    %v3994 = vpop.f32.mrb[0].mxu0
    %v3995 = vadd.f32 %v3794, %v3994
    %v3996 = vpop.f32.mrb[0].mxu0
    %3997 = vmatprep.mubr.f32.mxu0 0.0
    %v3998 = vand.u32 %v2343, 4294901760
    %3999 = vmatmul.mubr.f32.gmra.mrb[0].mxu0 %v3998
    %v4000 = vpop.f32.mrb[0].mxu0
    %v4001 = vadd.f32 %v3804, %v4000
    %v4002 = vpop.f32.mrb[0].mxu0
    %4003 = vmatprep.mubr.f32.mxu0 0.0
    %v4004 = vand.u32 %v2346, 4294901760
    %4005 = vmatmul.mubr.f32.gmra.mrb[0].mxu0 %v4004
    %v4006 = vpop.f32.mrb[0].mxu0
    %v4007 = vadd.f32 %v3814, %v4006
    %v4008 = vpop.f32.mrb[0].mxu0
    %4009 = vdwg.mxu0
    %4010 = vmatprep.subr.mxu0 0.0
    %v4011 = vand.u32 %v2379, 4294901760
    %v4012 = vsub.f32 %v2379, %v4011
    %4013 = vmatpush1.msra.mxu0 %v4012
    %4014 = vmatprep.subr.mxu0 0.0
    %v4015 = vand.u32 %v2380, 4294901760
    %v4016 = vsub.f32 %v2380, %v4015
    %4017 = vmatpush1.msra.mxu0 %v4016
    %4018 = vmatprep.subr.mxu0 0.0
    %v4019 = vand.u32 %v2381, 4294901760
    %v4020 = vsub.f32 %v2381, %v4019
    %4021 = vmatpush1.msra.mxu0 %v4020
    %4022 = vmatprep.subr.mxu0 0.0
    %v4023 = vand.u32 %v2382, 4294901760
    %v4024 = vsub.f32 %v2382, %v4023
    %4025 = vmatpush1.msra.mxu0 %v4024
    %4026 = vmatprep.subr.mxu0 0.0
    %v4027 = vand.u32 %v2383, 4294901760
    %v4028 = vsub.f32 %v2383, %v4027
    %4029 = vmatpush1.msra.mxu0 %v4028
    %4030 = vmatprep.subr.mxu0 0.0
    %v4031 = vand.u32 %v2384, 4294901760
    %v4032 = vsub.f32 %v2384, %v4031
    %4033 = vmatpush1.msra.mxu0 %v4032
    %4034 = vmatprep.subr.mxu0 0.0
    %v4035 = vand.u32 %v2385, 4294901760
    %v4036 = vsub.f32 %v2385, %v4035
    %4037 = vmatpush1.msra.mxu0 %v4036
    %4038 = vmatprep.subr.mxu0 0.0
    %v4039 = vand.u32 %v2386, 4294901760
    %v4040 = vsub.f32 %v2386, %v4039
    %4041 = vmatpush1.msra.mxu0 %v4040
    %4042 = vmatprep.subr.mxu0 0.0
    %v4043 = vand.u32 %v2387, 4294901760
    %v4044 = vsub.f32 %v2387, %v4043
    %4045 = vmatpush1.msra.mxu0 %v4044
    %4046 = vmatprep.subr.mxu0 0.0
    %v4047 = vand.u32 %v2388, 4294901760
    %v4048 = vsub.f32 %v2388, %v4047
    %4049 = vmatpush1.msra.mxu0 %v4048
    %4050 = vmatprep.subr.mxu0 0.0
    %v4051 = vand.u32 %v2389, 4294901760
    %v4052 = vsub.f32 %v2389, %v4051
    %4053 = vmatpush1.msra.mxu0 %v4052
    %4054 = vmatprep.subr.mxu0 0.0
    %v4055 = vand.u32 %v2390, 4294901760
    %v4056 = vsub.f32 %v2390, %v4055
    %4057 = vmatpush1.msra.mxu0 %v4056
    %4058 = vmatprep.subr.mxu0 0.0
    %v4059 = vand.u32 %v2391, 4294901760
    %v4060 = vsub.f32 %v2391, %v4059
    %4061 = vmatpush1.msra.mxu0 %v4060
    %4062 = vmatprep.subr.mxu0 0.0
    %v4063 = vand.u32 %v2392, 4294901760
    %v4064 = vsub.f32 %v2392, %v4063
    %4065 = vmatpush1.msra.mxu0 %v4064
    %4066 = vmatprep.subr.mxu0 0.0
    %v4067 = vand.u32 %v2393, 4294901760
    %v4068 = vsub.f32 %v2393, %v4067
    %4069 = vmatpush1.msra.mxu0 %v4068
    %4070 = vmatprep.subr.mxu0 0.0
    %v4071 = vand.u32 %v2394, 4294901760
    %v4072 = vsub.f32 %v2394, %v4071
    %4073 = vmatpush1.msra.mxu0 %v4072
    %4074 = vmatprep.subr.mxu0 0.0
    %4075 = vmatpush1.msra.mxu0 0.0
    %4076 = vmatprep.subr.mxu0 0.0
    %4077 = vmatpush1.msra.mxu0 0.0
    %4078 = vmatprep.subr.mxu0 0.0
    %4079 = vmatpush1.msra.mxu0 0.0
    %4080 = vmatprep.subr.mxu0 0.0
    %4081 = vmatpush1.msra.mxu0 0.0
    %4082 = vmatprep.subr.mxu0 0.0
    %4083 = vmatpush1.msra.mxu0 0.0
    %4084 = vmatprep.subr.mxu0 0.0
    %4085 = vmatpush1.msra.mxu0 0.0
    %4086 = vmatprep.subr.mxu0 0.0
    %4087 = vmatpush1.msra.mxu0 0.0
    %4088 = vmatprep.subr.mxu0 0.0
    %4089 = vmatpush1.msra.mxu0 0.0
    %4090 = vmatprep.subr.mxu0 0.0
    %4091 = vmatpush1.msra.mxu0 0.0
    %4092 = vmatprep.subr.mxu0 0.0
    %4093 = vmatpush1.msra.mxu0 0.0
    %4094 = vmatprep.subr.mxu0 0.0
    %4095 = vmatpush1.msra.mxu0 0.0
    %4096 = vmatprep.subr.mxu0 0.0
    %4097 = vmatpush1.msra.mxu0 0.0
    %4098 = vmatprep.subr.mxu0 0.0
    %4099 = vmatpush1.msra.mxu0 0.0
    %4100 = vmatprep.subr.mxu0 0.0
    %4101 = vmatpush1.msra.mxu0 0.0
    %4102 = vmatprep.subr.mxu0 0.0
    %4103 = vmatpush1.msra.mxu0 0.0
    %4104 = vmatprep.subr.mxu0 0.0
    %4105 = vmatpush1.msra.mxu0 0.0
    %4106 = vmatprep.mubr.f32.mxu0 0.0
    %v4107 = vand.u32 %v2325, 4294901760
    %v4108 = vsub.f32 %v2325, %v4107
    %4109 = vmatmul.mubr.f32.gmra.mrb[0].mxu0 %v4108
    %v4110 = vpop.f32.mrb[0].mxu0
    %v4111 = vadd.f32 %v3965, %v4110
    %v4112 = vpop.f32.mrb[0].mxu0
    %4113 = vmatprep.mubr.f32.mxu0 0.0
    %v4114 = vand.u32 %v2328, 4294901760
    %v4115 = vsub.f32 %v2328, %v4114
    %4116 = vmatmul.mubr.f32.gmra.mrb[0].mxu0 %v4115
    %v4117 = vpop.f32.mrb[0].mxu0
    %v4118 = vadd.f32 %v3971, %v4117
    %v4119 = vpop.f32.mrb[0].mxu0
    %4120 = vmatprep.mubr.f32.mxu0 0.0
    %v4121 = vand.u32 %v2331, 4294901760
    %v4122 = vsub.f32 %v2331, %v4121
    %4123 = vmatmul.mubr.f32.gmra.mrb[0].mxu0 %v4122
    %v4124 = vpop.f32.mrb[0].mxu0
    %v4125 = vadd.f32 %v3977, %v4124
    %v4126 = vpop.f32.mrb[0].mxu0
    %4127 = vmatprep.mubr.f32.mxu0 0.0
    %v4128 = vand.u32 %v2334, 4294901760
    %v4129 = vsub.f32 %v2334, %v4128
    %4130 = vmatmul.mubr.f32.gmra.mrb[0].mxu0 %v4129
    %v4131 = vpop.f32.mrb[0].mxu0
    %v4132 = vadd.f32 %v3983, %v4131
    %v4133 = vpop.f32.mrb[0].mxu0
    %4134 = vmatprep.mubr.f32.mxu0 0.0
    %v4135 = vand.u32 %v2337, 4294901760
    %v4136 = vsub.f32 %v2337, %v4135
    %4137 = vmatmul.mubr.f32.gmra.mrb[0].mxu0 %v4136
    %v4138 = vpop.f32.mrb[0].mxu0
    %v4139 = vadd.f32 %v3989, %v4138
    %v4140 = vpop.f32.mrb[0].mxu0
    %4141 = vmatprep.mubr.f32.mxu0 0.0
    %v4142 = vand.u32 %v2340, 4294901760
    %v4143 = vsub.f32 %v2340, %v4142
    %4144 = vmatmul.mubr.f32.gmra.mrb[0].mxu0 %v4143
    %v4145 = vpop.f32.mrb[0].mxu0
    %v4146 = vadd.f32 %v3995, %v4145
    %v4147 = vpop.f32.mrb[0].mxu0
    %4148 = vmatprep.mubr.f32.mxu0 0.0
    %v4149 = vand.u32 %v2343, 4294901760
    %v4150 = vsub.f32 %v2343, %v4149
    %4151 = vmatmul.mubr.f32.gmra.mrb[0].mxu0 %v4150
    %v4152 = vpop.f32.mrb[0].mxu0
    %v4153 = vadd.f32 %v4001, %v4152
    %v4154 = vpop.f32.mrb[0].mxu0
    %4155 = vmatprep.mubr.f32.mxu0 0.0
    %v4156 = vand.u32 %v2346, 4294901760
    %v4157 = vsub.f32 %v2346, %v4156
    %4158 = vmatmul.mubr.f32.gmra.mrb[0].mxu0 %v4157
    %v4159 = vpop.f32.mrb[0].mxu0
    %v4160 = vadd.f32 %v4007, %v4159
    %v4161 = vpop.f32.mrb[0].mxu0
    %4162 = vdwg.mxu0
    %4163 = vmatprep.subr.mxu0 0.0
    %v4164 = vand.u32 %v2379, 4294901760
    %4165 = vmatpush1.msra.mxu0 %v4164
    %4166 = vmatprep.subr.mxu0 0.0
    %v4167 = vand.u32 %v2380, 4294901760
    %4168 = vmatpush1.msra.mxu0 %v4167
    %4169 = vmatprep.subr.mxu0 0.0
    %v4170 = vand.u32 %v2381, 4294901760
    %4171 = vmatpush1.msra.mxu0 %v4170
    %4172 = vmatprep.subr.mxu0 0.0
    %v4173 = vand.u32 %v2382, 4294901760
    %4174 = vmatpush1.msra.mxu0 %v4173
    %4175 = vmatprep.subr.mxu0 0.0
    %v4176 = vand.u32 %v2383, 4294901760
    %4177 = vmatpush1.msra.mxu0 %v4176
    %4178 = vmatprep.subr.mxu0 0.0
    %v4179 = vand.u32 %v2384, 4294901760
    %4180 = vmatpush1.msra.mxu0 %v4179
    %4181 = vmatprep.subr.mxu0 0.0
    %v4182 = vand.u32 %v2385, 4294901760
    %4183 = vmatpush1.msra.mxu0 %v4182
    %4184 = vmatprep.subr.mxu0 0.0
    %v4185 = vand.u32 %v2386, 4294901760
    %4186 = vmatpush1.msra.mxu0 %v4185
    %4187 = vmatprep.subr.mxu0 0.0
    %v4188 = vand.u32 %v2387, 4294901760
    %4189 = vmatpush1.msra.mxu0 %v4188
    %4190 = vmatprep.subr.mxu0 0.0
    %v4191 = vand.u32 %v2388, 4294901760
    %4192 = vmatpush1.msra.mxu0 %v4191
    %4193 = vmatprep.subr.mxu0 0.0
    %v4194 = vand.u32 %v2389, 4294901760
    %4195 = vmatpush1.msra.mxu0 %v4194
    %4196 = vmatprep.subr.mxu0 0.0
    %v4197 = vand.u32 %v2390, 4294901760
    %4198 = vmatpush1.msra.mxu0 %v4197
    %4199 = vmatprep.subr.mxu0 0.0
    %v4200 = vand.u32 %v2391, 4294901760
    %4201 = vmatpush1.msra.mxu0 %v4200
    %4202 = vmatprep.subr.mxu0 0.0
    %v4203 = vand.u32 %v2392, 4294901760
    %4204 = vmatpush1.msra.mxu0 %v4203
    %4205 = vmatprep.subr.mxu0 0.0
    %v4206 = vand.u32 %v2393, 4294901760
    %4207 = vmatpush1.msra.mxu0 %v4206
    %4208 = vmatprep.subr.mxu0 0.0
    %v4209 = vand.u32 %v2394, 4294901760
    %4210 = vmatpush1.msra.mxu0 %v4209
    %4211 = vmatprep.subr.mxu0 0.0
    %4212 = vmatpush1.msra.mxu0 0.0
    %4213 = vmatprep.subr.mxu0 0.0
    %4214 = vmatpush1.msra.mxu0 0.0
    %4215 = vmatprep.subr.mxu0 0.0
    %4216 = vmatpush1.msra.mxu0 0.0
    %4217 = vmatprep.subr.mxu0 0.0
    %4218 = vmatpush1.msra.mxu0 0.0
    %4219 = vmatprep.subr.mxu0 0.0
    %4220 = vmatpush1.msra.mxu0 0.0
    %4221 = vmatprep.subr.mxu0 0.0
    %4222 = vmatpush1.msra.mxu0 0.0
    %4223 = vmatprep.subr.mxu0 0.0
    %4224 = vmatpush1.msra.mxu0 0.0
    %4225 = vmatprep.subr.mxu0 0.0
    %4226 = vmatpush1.msra.mxu0 0.0
    %4227 = vmatprep.subr.mxu0 0.0
    %4228 = vmatpush1.msra.mxu0 0.0
    %4229 = vmatprep.subr.mxu0 0.0
    %4230 = vmatpush1.msra.mxu0 0.0
    %4231 = vmatprep.subr.mxu0 0.0
    %4232 = vmatpush1.msra.mxu0 0.0
    %4233 = vmatprep.subr.mxu0 0.0
    %4234 = vmatpush1.msra.mxu0 0.0
    %4235 = vmatprep.subr.mxu0 0.0
    %4236 = vmatpush1.msra.mxu0 0.0
    %4237 = vmatprep.subr.mxu0 0.0
    %4238 = vmatpush1.msra.mxu0 0.0
    %4239 = vmatprep.subr.mxu0 0.0
    %4240 = vmatpush1.msra.mxu0 0.0
    %4241 = vmatprep.subr.mxu0 0.0
    %4242 = vmatpush1.msra.mxu0 0.0
    %4243 = vmatprep.mubr.f32.mxu0 0.0
    %v4244 = vand.u32 %v2325, 4294901760
    %v4245 = vsub.f32 %v2325, %v4244
    %v4246 = vand.u32 %v4245, 4294901760
    %4247 = vmatmul.mubr.f32.gmra.mrb[0].mxu0 %v4246
    %v4248 = vpop.f32.mrb[0].mxu0
    %v4249 = vadd.f32 %v4111, %v4248
    %v4250 = vpop.f32.mrb[0].mxu0
    %4251 = vmatprep.mubr.f32.mxu0 0.0
    %v4252 = vand.u32 %v2328, 4294901760
    %v4253 = vsub.f32 %v2328, %v4252
    %v4254 = vand.u32 %v4253, 4294901760
    %4255 = vmatmul.mubr.f32.gmra.mrb[0].mxu0 %v4254
    %v4256 = vpop.f32.mrb[0].mxu0
    %v4257 = vadd.f32 %v4118, %v4256
    %v4258 = vpop.f32.mrb[0].mxu0
    %4259 = vmatprep.mubr.f32.mxu0 0.0
    %v4260 = vand.u32 %v2331, 4294901760
    %v4261 = vsub.f32 %v2331, %v4260
    %v4262 = vand.u32 %v4261, 4294901760
    %4263 = vmatmul.mubr.f32.gmra.mrb[0].mxu0 %v4262
    %v4264 = vpop.f32.mrb[0].mxu0
    %v4265 = vadd.f32 %v4125, %v4264
    %v4266 = vpop.f32.mrb[0].mxu0
    %4267 = vmatprep.mubr.f32.mxu0 0.0
    %v4268 = vand.u32 %v2334, 4294901760
    %v4269 = vsub.f32 %v2334, %v4268
    %v4270 = vand.u32 %v4269, 4294901760
    %4271 = vmatmul.mubr.f32.gmra.mrb[0].mxu0 %v4270
    %v4272 = vpop.f32.mrb[0].mxu0
    %v4273 = vadd.f32 %v4132, %v4272
    %v4274 = vpop.f32.mrb[0].mxu0
    %4275 = vmatprep.mubr.f32.mxu0 0.0
    %v4276 = vand.u32 %v2337, 4294901760
    %v4277 = vsub.f32 %v2337, %v4276
    %v4278 = vand.u32 %v4277, 4294901760
    %4279 = vmatmul.mubr.f32.gmra.mrb[0].mxu0 %v4278
    %v4280 = vpop.f32.mrb[0].mxu0
    %v4281 = vadd.f32 %v4139, %v4280
    %v4282 = vpop.f32.mrb[0].mxu0
    %4283 = vmatprep.mubr.f32.mxu0 0.0
    %v4284 = vand.u32 %v2340, 4294901760
    %v4285 = vsub.f32 %v2340, %v4284
    %v4286 = vand.u32 %v4285, 4294901760
    %4287 = vmatmul.mubr.f32.gmra.mrb[0].mxu0 %v4286
    %v4288 = vpop.f32.mrb[0].mxu0
    %v4289 = vadd.f32 %v4146, %v4288
    %v4290 = vpop.f32.mrb[0].mxu0
    %4291 = vmatprep.mubr.f32.mxu0 0.0
    %v4292 = vand.u32 %v2343, 4294901760
    %v4293 = vsub.f32 %v2343, %v4292
    %v4294 = vand.u32 %v4293, 4294901760
    %4295 = vmatmul.mubr.f32.gmra.mrb[0].mxu0 %v4294
    %v4296 = vpop.f32.mrb[0].mxu0
    %v4297 = vadd.f32 %v4153, %v4296
    %v4298 = vpop.f32.mrb[0].mxu0
    %4299 = vmatprep.mubr.f32.mxu0 0.0
    %v4300 = vand.u32 %v2346, 4294901760
    %v4301 = vsub.f32 %v2346, %v4300
    %v4302 = vand.u32 %v4301, 4294901760
    %4303 = vmatmul.mubr.f32.gmra.mrb[0].mxu0 %v4302
    %v4304 = vpop.f32.mrb[0].mxu0
    %v4305 = vadd.f32 %v4160, %v4304
    %v4306 = vpop.f32.mrb[0].mxu0
    %4307 = vdwg.mxu0
    %4308 = vmatprep.subr.mxu0 0.0
    %v4309 = vand.u32 %v2379, 4294901760
    %v4310 = vsub.f32 %v2379, %v4309
    %v4311 = vand.u32 %v4310, 4294901760
    %4312 = vmatpush1.msra.mxu0 %v4311
    %4313 = vmatprep.subr.mxu0 0.0
    %v4314 = vand.u32 %v2380, 4294901760
    %v4315 = vsub.f32 %v2380, %v4314
    %v4316 = vand.u32 %v4315, 4294901760
    %4317 = vmatpush1.msra.mxu0 %v4316
    %4318 = vmatprep.subr.mxu0 0.0
    %v4319 = vand.u32 %v2381, 4294901760
    %v4320 = vsub.f32 %v2381, %v4319
    %v4321 = vand.u32 %v4320, 4294901760
    %4322 = vmatpush1.msra.mxu0 %v4321
    %4323 = vmatprep.subr.mxu0 0.0
    %v4324 = vand.u32 %v2382, 4294901760
    %v4325 = vsub.f32 %v2382, %v4324
    %v4326 = vand.u32 %v4325, 4294901760
    %4327 = vmatpush1.msra.mxu0 %v4326
    %4328 = vmatprep.subr.mxu0 0.0
    %v4329 = vand.u32 %v2383, 4294901760
    %v4330 = vsub.f32 %v2383, %v4329
    %v4331 = vand.u32 %v4330, 4294901760
    %4332 = vmatpush1.msra.mxu0 %v4331
    %4333 = vmatprep.subr.mxu0 0.0
    %v4334 = vand.u32 %v2384, 4294901760
    %v4335 = vsub.f32 %v2384, %v4334
    %v4336 = vand.u32 %v4335, 4294901760
    %4337 = vmatpush1.msra.mxu0 %v4336
    %4338 = vmatprep.subr.mxu0 0.0
    %v4339 = vand.u32 %v2385, 4294901760
    %v4340 = vsub.f32 %v2385, %v4339
    %v4341 = vand.u32 %v4340, 4294901760
    %4342 = vmatpush1.msra.mxu0 %v4341
    %4343 = vmatprep.subr.mxu0 0.0
    %v4344 = vand.u32 %v2386, 4294901760
    %v4345 = vsub.f32 %v2386, %v4344
    %v4346 = vand.u32 %v4345, 4294901760
    %4347 = vmatpush1.msra.mxu0 %v4346
    %4348 = vmatprep.subr.mxu0 0.0
    %v4349 = vand.u32 %v2387, 4294901760
    %v4350 = vsub.f32 %v2387, %v4349
    %v4351 = vand.u32 %v4350, 4294901760
    %4352 = vmatpush1.msra.mxu0 %v4351
    %4353 = vmatprep.subr.mxu0 0.0
    %v4354 = vand.u32 %v2388, 4294901760
    %v4355 = vsub.f32 %v2388, %v4354
    %v4356 = vand.u32 %v4355, 4294901760
    %4357 = vmatpush1.msra.mxu0 %v4356
    %4358 = vmatprep.subr.mxu0 0.0
    %v4359 = vand.u32 %v2389, 4294901760
    %v4360 = vsub.f32 %v2389, %v4359
    %v4361 = vand.u32 %v4360, 4294901760
    %4362 = vmatpush1.msra.mxu0 %v4361
    %4363 = vmatprep.subr.mxu0 0.0
    %v4364 = vand.u32 %v2390, 4294901760
    %v4365 = vsub.f32 %v2390, %v4364
    %v4366 = vand.u32 %v4365, 4294901760
    %4367 = vmatpush1.msra.mxu0 %v4366
    %4368 = vmatprep.subr.mxu0 0.0
    %v4369 = vand.u32 %v2391, 4294901760
    %v4370 = vsub.f32 %v2391, %v4369
    %v4371 = vand.u32 %v4370, 4294901760
    %4372 = vmatpush1.msra.mxu0 %v4371
    %4373 = vmatprep.subr.mxu0 0.0
    %v4374 = vand.u32 %v2392, 4294901760
    %v4375 = vsub.f32 %v2392, %v4374
    %v4376 = vand.u32 %v4375, 4294901760
    %4377 = vmatpush1.msra.mxu0 %v4376
    %4378 = vmatprep.subr.mxu0 0.0
    %v4379 = vand.u32 %v2393, 4294901760
    %v4380 = vsub.f32 %v2393, %v4379
    %v4381 = vand.u32 %v4380, 4294901760
    %4382 = vmatpush1.msra.mxu0 %v4381
    %4383 = vmatprep.subr.mxu0 0.0
    %v4384 = vand.u32 %v2394, 4294901760
    %v4385 = vsub.f32 %v2394, %v4384
    %v4386 = vand.u32 %v4385, 4294901760
    %4387 = vmatpush1.msra.mxu0 %v4386
    %4388 = vmatprep.subr.mxu0 0.0
    %4389 = vmatpush1.msra.mxu0 0.0
    %4390 = vmatprep.subr.mxu0 0.0
    %4391 = vmatpush1.msra.mxu0 0.0
    %4392 = vmatprep.subr.mxu0 0.0
    %4393 = vmatpush1.msra.mxu0 0.0
    %4394 = vmatprep.subr.mxu0 0.0
    %4395 = vmatpush1.msra.mxu0 0.0
    %4396 = vmatprep.subr.mxu0 0.0
    %4397 = vmatpush1.msra.mxu0 0.0
    %4398 = vmatprep.subr.mxu0 0.0
    %4399 = vmatpush1.msra.mxu0 0.0
    %4400 = vmatprep.subr.mxu0 0.0
    %4401 = vmatpush1.msra.mxu0 0.0
    %4402 = vmatprep.subr.mxu0 0.0
    %4403 = vmatpush1.msra.mxu0 0.0
    %4404 = vmatprep.subr.mxu0 0.0
    %4405 = vmatpush1.msra.mxu0 0.0
    %4406 = vmatprep.subr.mxu0 0.0
    %4407 = vmatpush1.msra.mxu0 0.0
    %4408 = vmatprep.subr.mxu0 0.0
    %4409 = vmatpush1.msra.mxu0 0.0
    %4410 = vmatprep.subr.mxu0 0.0
    %4411 = vmatpush1.msra.mxu0 0.0
    %4412 = vmatprep.subr.mxu0 0.0
    %4413 = vmatpush1.msra.mxu0 0.0
    %4414 = vmatprep.subr.mxu0 0.0
    %4415 = vmatpush1.msra.mxu0 0.0
    %4416 = vmatprep.subr.mxu0 0.0
    %4417 = vmatpush1.msra.mxu0 0.0
    %4418 = vmatprep.subr.mxu0 0.0
    %4419 = vmatpush1.msra.mxu0 0.0
    %4420 = vmatprep.mubr.f32.mxu0 0.0
    %v4421 = vand.u32 %v2325, 4294901760
    %4422 = vmatmul.mubr.f32.gmra.mrb[0].mxu0 %v4421
    %v4423 = vpop.f32.mrb[0].mxu0
    %v4424 = vadd.f32 %v4249, %v4423
    %v4425 = vpop.f32.mrb[0].mxu0
    %4426 = vmatprep.mubr.f32.mxu0 0.0
    %v4427 = vand.u32 %v2328, 4294901760
    %4428 = vmatmul.mubr.f32.gmra.mrb[0].mxu0 %v4427
    %v4429 = vpop.f32.mrb[0].mxu0
    %v4430 = vadd.f32 %v4257, %v4429
    %v4431 = vpop.f32.mrb[0].mxu0
    %4432 = vmatprep.mubr.f32.mxu0 0.0
    %v4433 = vand.u32 %v2331, 4294901760
    %4434 = vmatmul.mubr.f32.gmra.mrb[0].mxu0 %v4433
    %v4435 = vpop.f32.mrb[0].mxu0
    %v4436 = vadd.f32 %v4265, %v4435
    %v4437 = vpop.f32.mrb[0].mxu0
    %4438 = vmatprep.mubr.f32.mxu0 0.0
    %v4439 = vand.u32 %v2334, 4294901760
    %4440 = vmatmul.mubr.f32.gmra.mrb[0].mxu0 %v4439
    %v4441 = vpop.f32.mrb[0].mxu0
    %v4442 = vadd.f32 %v4273, %v4441
    %v4443 = vpop.f32.mrb[0].mxu0
    %4444 = vmatprep.mubr.f32.mxu0 0.0
    %v4445 = vand.u32 %v2337, 4294901760
    %4446 = vmatmul.mubr.f32.gmra.mrb[0].mxu0 %v4445
    %v4447 = vpop.f32.mrb[0].mxu0
    %v4448 = vadd.f32 %v4281, %v4447
    %v4449 = vpop.f32.mrb[0].mxu0
    %4450 = vmatprep.mubr.f32.mxu0 0.0
    %v4451 = vand.u32 %v2340, 4294901760
    %4452 = vmatmul.mubr.f32.gmra.mrb[0].mxu0 %v4451
    %v4453 = vpop.f32.mrb[0].mxu0
    %v4454 = vadd.f32 %v4289, %v4453
    %v4455 = vpop.f32.mrb[0].mxu0
    %4456 = vmatprep.mubr.f32.mxu0 0.0
    %v4457 = vand.u32 %v2343, 4294901760
    %4458 = vmatmul.mubr.f32.gmra.mrb[0].mxu0 %v4457
    %v4459 = vpop.f32.mrb[0].mxu0
    %v4460 = vadd.f32 %v4297, %v4459
    %v4461 = vpop.f32.mrb[0].mxu0
    %4462 = vmatprep.mubr.f32.mxu0 0.0
    %v4463 = vand.u32 %v2346, 4294901760
    %4464 = vmatmul.mubr.f32.gmra.mrb[0].mxu0 %v4463
    %v4465 = vpop.f32.mrb[0].mxu0
    %v4466 = vadd.f32 %v4305, %v4465
    %v4467 = vpop.f32.mrb[0].mxu0
    %4468 = vdwg.mxu0
    %4469 = vmatprep.subr.mxu0 0.0
    %v4470 = vand.u32 %v2379, 4294901760
    %4471 = vmatpush1.msra.mxu0 %v4470
    %4472 = vmatprep.subr.mxu0 0.0
    %v4473 = vand.u32 %v2380, 4294901760
    %4474 = vmatpush1.msra.mxu0 %v4473
    %4475 = vmatprep.subr.mxu0 0.0
    %v4476 = vand.u32 %v2381, 4294901760
    %4477 = vmatpush1.msra.mxu0 %v4476
    %4478 = vmatprep.subr.mxu0 0.0
    %v4479 = vand.u32 %v2382, 4294901760
    %4480 = vmatpush1.msra.mxu0 %v4479
    %4481 = vmatprep.subr.mxu0 0.0
    %v4482 = vand.u32 %v2383, 4294901760
    %4483 = vmatpush1.msra.mxu0 %v4482
    %4484 = vmatprep.subr.mxu0 0.0
    %v4485 = vand.u32 %v2384, 4294901760
    %4486 = vmatpush1.msra.mxu0 %v4485
    %4487 = vmatprep.subr.mxu0 0.0
    %v4488 = vand.u32 %v2385, 4294901760
    %4489 = vmatpush1.msra.mxu0 %v4488
    %4490 = vmatprep.subr.mxu0 0.0
    %v4491 = vand.u32 %v2386, 4294901760
    %4492 = vmatpush1.msra.mxu0 %v4491
    %4493 = vmatprep.subr.mxu0 0.0
    %v4494 = vand.u32 %v2387, 4294901760
    %4495 = vmatpush1.msra.mxu0 %v4494
    %4496 = vmatprep.subr.mxu0 0.0
    %v4497 = vand.u32 %v2388, 4294901760
    %4498 = vmatpush1.msra.mxu0 %v4497
    %4499 = vmatprep.subr.mxu0 0.0
    %v4500 = vand.u32 %v2389, 4294901760
    %4501 = vmatpush1.msra.mxu0 %v4500
    %4502 = vmatprep.subr.mxu0 0.0
    %v4503 = vand.u32 %v2390, 4294901760
    %4504 = vmatpush1.msra.mxu0 %v4503
    %4505 = vmatprep.subr.mxu0 0.0
    %v4506 = vand.u32 %v2391, 4294901760
    %4507 = vmatpush1.msra.mxu0 %v4506
    %4508 = vmatprep.subr.mxu0 0.0
    %v4509 = vand.u32 %v2392, 4294901760
    %4510 = vmatpush1.msra.mxu0 %v4509
    %4511 = vmatprep.subr.mxu0 0.0
    %v4512 = vand.u32 %v2393, 4294901760
    %4513 = vmatpush1.msra.mxu0 %v4512
    %4514 = vmatprep.subr.mxu0 0.0
    %v4515 = vand.u32 %v2394, 4294901760
    %4516 = vmatpush1.msra.mxu0 %v4515
    %4517 = vmatprep.subr.mxu0 0.0
    %4518 = vmatpush1.msra.mxu0 0.0
    %4519 = vmatprep.subr.mxu0 0.0
    %4520 = vmatpush1.msra.mxu0 0.0
    %4521 = vmatprep.subr.mxu0 0.0
    %4522 = vmatpush1.msra.mxu0 0.0
    %4523 = vmatprep.subr.mxu0 0.0
    %4524 = vmatpush1.msra.mxu0 0.0
    %4525 = vmatprep.subr.mxu0 0.0
    %4526 = vmatpush1.msra.mxu0 0.0
    %4527 = vmatprep.subr.mxu0 0.0
    %4528 = vmatpush1.msra.mxu0 0.0
    %4529 = vmatprep.subr.mxu0 0.0
    %4530 = vmatpush1.msra.mxu0 0.0
    %4531 = vmatprep.subr.mxu0 0.0
    %4532 = vmatpush1.msra.mxu0 0.0
    %4533 = vmatprep.subr.mxu0 0.0
    %4534 = vmatpush1.msra.mxu0 0.0
    %4535 = vmatprep.subr.mxu0 0.0
    %4536 = vmatpush1.msra.mxu0 0.0
    %4537 = vmatprep.subr.mxu0 0.0
    %4538 = vmatpush1.msra.mxu0 0.0
    %4539 = vmatprep.subr.mxu0 0.0
    %4540 = vmatpush1.msra.mxu0 0.0
    %4541 = vmatprep.subr.mxu0 0.0
    %4542 = vmatpush1.msra.mxu0 0.0
    %4543 = vmatprep.subr.mxu0 0.0
    %4544 = vmatpush1.msra.mxu0 0.0
    %4545 = vmatprep.subr.mxu0 0.0
    %4546 = vmatpush1.msra.mxu0 0.0
    %4547 = vmatprep.subr.mxu0 0.0
    %4548 = vmatpush1.msra.mxu0 0.0
    %4549 = vmatprep.mubr.f32.mxu0 0.0
    %v4550 = vand.u32 %v2325, 4294901760
    %4551 = vmatmul.mubr.f32.gmra.mrb[0].mxu0 %v4550
    %v4552 = vpop.f32.mrb[0].mxu0
    %v4553 = vadd.f32 %v4424, %v4552
    %v4554 = vpop.f32.mrb[0].mxu0
    %4555 = vmatprep.mubr.f32.mxu0 0.0
    %v4556 = vand.u32 %v2328, 4294901760
    %4557 = vmatmul.mubr.f32.gmra.mrb[0].mxu0 %v4556
    %v4558 = vpop.f32.mrb[0].mxu0
    %v4559 = vadd.f32 %v4430, %v4558
    %v4560 = vpop.f32.mrb[0].mxu0
    %4561 = vmatprep.mubr.f32.mxu0 0.0
    %v4562 = vand.u32 %v2331, 4294901760
    %4563 = vmatmul.mubr.f32.gmra.mrb[0].mxu0 %v4562
    %v4564 = vpop.f32.mrb[0].mxu0
    %v4565 = vadd.f32 %v4436, %v4564
    %v4566 = vpop.f32.mrb[0].mxu0
    %4567 = vmatprep.mubr.f32.mxu0 0.0
    %v4568 = vand.u32 %v2334, 4294901760
    %4569 = vmatmul.mubr.f32.gmra.mrb[0].mxu0 %v4568
    %v4570 = vpop.f32.mrb[0].mxu0
    %v4571 = vadd.f32 %v4442, %v4570
    %v4572 = vpop.f32.mrb[0].mxu0
    %4573 = vmatprep.mubr.f32.mxu0 0.0
    %v4574 = vand.u32 %v2337, 4294901760
    %4575 = vmatmul.mubr.f32.gmra.mrb[0].mxu0 %v4574
    %v4576 = vpop.f32.mrb[0].mxu0
    %v4577 = vadd.f32 %v4448, %v4576
    %v4578 = vpop.f32.mrb[0].mxu0
    %4579 = vmatprep.mubr.f32.mxu0 0.0
    %v4580 = vand.u32 %v2340, 4294901760
    %4581 = vmatmul.mubr.f32.gmra.mrb[0].mxu0 %v4580
    %v4582 = vpop.f32.mrb[0].mxu0
    %v4583 = vadd.f32 %v4454, %v4582
    %v4584 = vpop.f32.mrb[0].mxu0
    %4585 = vmatprep.mubr.f32.mxu0 0.0
    %v4586 = vand.u32 %v2343, 4294901760
    %4587 = vmatmul.mubr.f32.gmra.mrb[0].mxu0 %v4586
    %v4588 = vpop.f32.mrb[0].mxu0
    %v4589 = vadd.f32 %v4460, %v4588
    %v4590 = vpop.f32.mrb[0].mxu0
    %4591 = vmatprep.mubr.f32.mxu0 0.0
    %v4592 = vand.u32 %v2346, 4294901760
    %4593 = vmatmul.mubr.f32.gmra.mrb[0].mxu0 %v4592
    %v4594 = vpop.f32.mrb[0].mxu0
    %v4595 = vadd.f32 %v4466, %v4594
    %v4596 = vpop.f32.mrb[0].mxu0
    %4597 = vdwg.mxu0
    %4598 = vst [vmem:[#allocation9] sm:$0xff] %v4553
    %4599 = vst [vmem:[#allocation9 + $0x8] sm:$0xff] %v4559
    %4600 = vst [vmem:[#allocation9 + $0x10] sm:$0xff] %v4565
    %4601 = vst [vmem:[#allocation9 + $0x18] sm:$0xff] %v4571
    %4602 = vst [vmem:[#allocation9 + $0x20] sm:$0xff] %v4577
    %4603 = vst [vmem:[#allocation9 + $0x28] sm:$0xff] %v4583
    %4604 = vst [vmem:[#allocation9 + $0x30] sm:$0xff] %v4589
    %4605 = vst [vmem:[#allocation9 + $0x38] sm:$0xff] %v4595
    // Predicated region
    $region34: #{tpu_custom_call.1} parent=1 // pred_check
      _
    $region35: #{tpu_custom_call.1} parent=1 // pred_check_branch
      %4607 = sbr.rel (0) target = $region37
    $region36: #{tpu_custom_call.1} parent=1 // pred_region
      %s4609 = ssub.s32 1024, 1024
      %4610 = vsyncadd [#allocation5], %s4609
      %s4611 = sshll.u32 [#allocation9], 4
      %s4612 = int_to_ptr.vmem [resolvable:$true] %s4611
      %4617 = dma.vmem_to_hbm [thread:$0]  %s4612, 1024, %s5, [#allocation5], 128, 128, 8
    $region37: #{tpu_custom_call.1} parent=1 // pred_fallthru
      _
    // Predicated region
    $region38: #{tpu_custom_call.1} parent=1 // pred_check
      _
    $region39: #{tpu_custom_call.1} parent=1 // pred_check_branch
      %4619 = sbr.rel (0) target = $region41
    $region40: #{tpu_custom_call.1} parent=1 // pred_region
      %4620 = dma.done [#allocation5], 1024
    $region41: #{tpu_custom_call.1} parent=1 // pred_fallthru
      _
    %4621 = vsyncpa [#allocation4], 1
    %4622 = vsyncpa [#allocation7], 1
    %4623 = vsyncpa [#allocation5], 1

</llo_original>
